<compile_context>
chip_gen: v7x
topology: tpu7x:2x2x1
jax: 0.10.0
libtpu: 0.0.40
codegen_flags: <defaults>
</compile_context>

<pallas_src>
import functools

import jax
import jax.numpy as jnp
from jax import lax
from jax.experimental import pallas as pl
from jax.experimental.pallas import tpu as pltpu

COUT, CIN, KH = 256, 64, 3
H5, O5, W5 = 14, 2, 28            # the (1, 64, 14, 2, 28) view dims
NP = H5 * O5 * W5                 # 784 flattened positions: p = H*28 + W
TAP = O5 * W5                     # 56: one step along the height-14 axis
KTOT = KH * CIN                   # 192: contraction depth of the fused matmul


def _pick_cout_tile():
    """COUT tile per grid step: 256 (grid=(1,)) on single-TensorCore chips so
    the roll/mask prep and per-step overhead are paid once; 128 (grid=(2,),
    'parallel') on chips exposing 2 TensorCores per device (v4/v5p/v7x)."""
    try:
        kind = jax.devices()[0].device_kind.lower()
    except Exception:
        return 256
    if ("v4" in kind) or ("v5p" in kind) or ("7" in kind):
        return 128
    return 256


_COUT_TILE = _pick_cout_tile()


def _lane_roll(v, shift):
    """Circular roll along the last (lane) axis, jnp.roll semantics."""
    shift = shift % NP
    return pltpu.roll(v, shift, axis=1) if shift else v


def _fused_conv_kernel(x_ref, w_ref, o_ref, tap_ref, *, shift):
    # x_ref:   (64, 784)   f32  -- whole flattened image
    # w_ref:   (TCO, 192)  f32  -- w2[i, k*64 + c] = w[i, c, k]
    # o_ref:   (TCO, 784)  f32
    # tap_ref: (192, 784)  f32  VMEM scratch holding the K=192 tap stack
    x = x_ref[...]

    # Lane-coordinate bookkeeping.  `shift` is static, so these patterns are
    # fixed; the iota and the mod-by-28 run on a single-sublane (1,784) strip
    # and only cheap i32 sublane-broadcasts + compares touch full-size vregs.
    lane1 = lax.broadcasted_iota(jnp.int32, (1, NP), 1)
    m1 = lane1 % W5                                   # W coordinate of each lane
    lane = jnp.broadcast_to(lane1, (CIN, NP))
    m = jnp.broadcast_to(m1, (CIN, NP))

    # Pre-roll along W == the module's final roll(axis=3), commuted onto the
    # input (each output column depends only on the same input column).
    roll_a = _lane_roll(x, shift)
    if shift >= 0:
        roll_b = _lane_roll(x, shift - W5)
        xp = jnp.where(m < shift, roll_b, roll_a)
    else:
        roll_b = _lane_roll(x, shift + W5)
        xp = jnp.where(m >= W5 + shift, roll_b, roll_a)

    # Build the K=192 tap stack.  Tap k of the (height-rolled, zero-padded)
    # image is a flat lane rotation by (shift-(k-1))*56 with its wrap region
    # zeroed (== the unfold zero padding).  Each tap is stored straight into
    # the scratch so the roll temporaries die immediately; one of the three
    # rotations is 0 and costs nothing.
    for k in range(KH):
        tap = _lane_roll(xp, (shift - (k - 1)) * TAP)
        if k == 0:
            tap = jnp.where(lane < TAP, 0.0, tap)           # zero-pad row n = -1
        elif k == KH - 1:
            tap = jnp.where(lane >= NP - TAP, 0.0, tap)     # zero-pad row n = 14
        tap_ref[k * CIN:(k + 1) * CIN, :] = tap

    # Single fused MXU matmul (TCO,192) @ (192,784), single output store.
    o_ref[...] = jnp.dot(w_ref[...], tap_ref[...],
                         preferred_element_type=jnp.float32)


def prepare_weights(w):
    """One-time (init-side) weight reorg: (256,64,3) -> (256,192) with column
    order k*64 + c, matching the tap-stack rows built inside the kernel."""
    return jnp.transpose(w, (0, 2, 1)).reshape(COUT, KTOT)


@functools.partial(jax.jit, static_argnums=(2,))
def kernel_generated_4_forward(x, w2, shift):
    # x: (1, 64, 28, 28) f32 | w2: (256, 192) f32 (from prepare_weights)
    # shift: +/-1 (static)
    x_flat = x.reshape(CIN, NP)                    # contiguous -> free reshape
    tco = _COUT_TILE
    out = pl.pallas_call(
        functools.partial(_fused_conv_kernel, shift=int(shift)),
        out_shape=jax.ShapeDtypeStruct((COUT, NP), jnp.float32),
        grid=(COUT // tco,),
        in_specs=[
            pl.BlockSpec((CIN, NP), lambda i: (0, 0)),   # whole image, fetched once
            pl.BlockSpec((tco, KTOT), lambda i: (i, 0)),
        ],
        out_specs=pl.BlockSpec((tco, NP), lambda i: (i, 0)),
        scratch_shapes=[pltpu.VMEM((KTOT, NP), jnp.float32)],
        compiler_params=pltpu.CompilerParams(
            dimension_semantics=("parallel",)),      # 2 TCs on v4/v5p/v7x; 1 step elsewhere
    )(x_flat, w2)
    return out.reshape(1, COUT, 2 * H5, W5)        # contiguous -> free reshape


def _reference(x, w, shift):
    # Pure-JAX transcription of the PyTorch forward (correctness check).
    t = x.reshape(1, 64, 14, 2, 28)
    t = jnp.roll(t, shift, axis=2)
    t = t.reshape(1, 64, 14, 56)
    tp = jnp.pad(t, ((0, 0), (0, 0), (1, 1), (0, 0)))
    patches = jnp.stack([tp[:, :, k:k + 14, :] for k in range(3)], axis=2)
    patches = patches.reshape(1, 64, 3, 14, 2, 28)
    t3 = jnp.einsum('ljknom,ijk->linom', patches, w)
    y = t3.reshape(1, 256, 28, 28)
    return jnp.roll(y, shift, axis=3)


if __name__ == "__main__":
    key = jax.random.PRNGKey(0)
    kx, kw = jax.random.split(key)
    # Shapes are fixed by the hard-coded reshapes in the module.
    x = jax.random.normal(kx, (1, CIN, 28, 28), dtype=jnp.float32)
    w = jax.random.normal(kw, (COUT, CIN, KH), dtype=jnp.float32)
    w2 = prepare_weights(w)   # init-time weight reorg, not in the per-call path

    # The module picks shift_direction in {+1,-1} at init; exercise both.
    for shift_direction in (1, -1):
        y = jax.block_until_ready(
            kernel_generated_4_forward(x, w2, shift_direction))
        y_ref = _reference(x, w, shift_direction)
        assert y.shape == (1, COUT, 28, 28)
        assert jnp.allclose(y, y_ref, atol=1e-3, rtol=1e-3)

    print("KERNEL_OK")
</pallas_src>

<mosaic_0001>
module attributes {stable_mosaic.version = 11 : i64} {
  func.func @_fused_conv_kernel(%arg0: i32, %arg1: memref<64x784xf32, #tpu.memory_space<vmem>>, %arg2: memref<256x192xf32, #tpu.memory_space<vmem>>, %arg3: memref<256x784xf32, #tpu.memory_space<vmem>>, %arg4: memref<192x784xf32, #tpu.memory_space<vmem>>) attributes {dimension_semantics = [#tpu.dimension_semantics<parallel>], iteration_bounds = array<i64: 1>, scalar_prefetch = 0 : i64, scratch_operands = 1 : i64, tpu.core_type = #tpu.core_type<tc>, window_params = [{pipeline_mode = #tpu.pipeline_mode<synchronous>, transform_indices = @transform_0, window_bounds = array<i64: 64, 784>}, {transform_indices = @transform_1, window_bounds = array<i64: 256, 192>}, {transform_indices = @transform_2, window_bounds = array<i64: 256, 784>}]} {
    %c0 = arith.constant 0 : index
    %c0_0 = arith.constant 0 : index
    %0 = vector.load %arg1[%c0, %c0_0] : memref<64x784xf32, #tpu.memory_space<vmem>>, vector<64x784xf32>
    %1 = tpu.iota {dimensions = array<i32: 1>} : vector<1x784xi32>
    %c28_i32 = arith.constant 28 : i32
    %c0_i32 = arith.constant 0 : i32
    %2 = arith.cmpi eq, %c28_i32, %c0_i32 : i32
    %c1_i32 = arith.constant 1 : i32
    %3 = arith.select %2, %c1_i32, %c28_i32 : i32
    %4 = vector.broadcast %3 : i32 to vector<1x784xi32>
    %5 = arith.remsi %1, %4 : vector<1x784xi32>
    %c0_i32_1 = arith.constant 0 : i32
    %6 = vector.broadcast %c0_i32_1 : i32 to vector<1x784xi32>
    %7 = arith.cmpi ne, %5, %6 : vector<1x784xi32>
    %c0_i32_2 = arith.constant 0 : i32
    %8 = vector.broadcast %c0_i32_2 : i32 to vector<1x784xi32>
    %9 = arith.cmpi slt, %5, %8 : vector<1x784xi32>
    %c0_i32_3 = arith.constant 0 : i32
    %10 = arith.cmpi slt, %3, %c0_i32_3 : i32
    %11 = vector.broadcast %10 : i1 to vector<1x784xi1>
    %12 = vector.broadcast %11 : vector<1x784xi1> to vector<1x784xi1>
    %13 = arith.xori %9, %12 : vector<1x784xi1>
    %14 = arith.andi %13, %7 : vector<1x784xi1>
    %15 = vector.broadcast %3 : i32 to vector<1x784xi32>
    %16 = arith.addi %5, %15 : vector<1x784xi32>
    %17 = arith.select %14, %16, %5 : vector<1x784xi1>, vector<1x784xi32>
    %18 = vector.shape_cast %1 : vector<1x784xi32> to vector<1x784xi32>
    %19 = vector.broadcast %18 : vector<1x784xi32> to vector<64x784xi32>
    %20 = vector.shape_cast %17 : vector<1x784xi32> to vector<1x784xi32>
    %21 = vector.broadcast %20 : vector<1x784xi32> to vector<64x784xi32>
    %c1_i32_4 = arith.constant 1 : i32
    %22 = tpu.dynamic_rotate %0 by %c1_i32_4 dim 1 : vector<64x784xf32>, i32 -> vector<64x784xf32>
    %c757_i32 = arith.constant 757 : i32
    %23 = tpu.dynamic_rotate %0 by %c757_i32 dim 1 : vector<64x784xf32>, i32 -> vector<64x784xf32>
    %c1_i32_5 = arith.constant 1 : i32
    %24 = vector.broadcast %c1_i32_5 : i32 to vector<64x784xi32>
    %25 = arith.cmpi slt, %21, %24 : vector<64x784xi32>
    %26 = arith.select %25, %23, %22 : vector<64x784xi1>, vector<64x784xf32>
    %c112_i32 = arith.constant 112 : i32
    %27 = tpu.dynamic_rotate %26 by %c112_i32 dim 1 : vector<64x784xf32>, i32 -> vector<64x784xf32>
    %c56_i32 = arith.constant 56 : i32
    %28 = vector.broadcast %c56_i32 : i32 to vector<64x784xi32>
    %29 = arith.cmpi slt, %19, %28 : vector<64x784xi32>
    %cst = arith.constant 0.000000e+00 : f32
    %30 = vector.broadcast %cst : f32 to vector<64x784xf32>
    %31 = arith.select %29, %30, %27 : vector<64x784xi1>, vector<64x784xf32>
    %c0_6 = arith.constant 0 : index
    %c0_7 = arith.constant 0 : index
    %32 = vector.load %arg4[%c0_6, %c0_7] : memref<192x784xf32, #tpu.memory_space<vmem>>, vector<64x784xf32>
    tpu.vector_store %arg4[%c0_6, %c0_7], %31 {strides = array<i32>} : memref<192x784xf32, #tpu.memory_space<vmem>>, vector<64x784xf32>,
    %c56_i32_8 = arith.constant 56 : i32
    %33 = tpu.dynamic_rotate %26 by %c56_i32_8 dim 1 : vector<64x784xf32>, i32 -> vector<64x784xf32>
    %c64 = arith.constant 64 : index
    %c0_9 = arith.constant 0 : index
    %34 = vector.load %arg4[%c64, %c0_9] : memref<192x784xf32, #tpu.memory_space<vmem>>, vector<64x784xf32>
    tpu.vector_store %arg4[%c64, %c0_9], %33 {strides = array<i32>} : memref<192x784xf32, #tpu.memory_space<vmem>>, vector<64x784xf32>,
    %c728_i32 = arith.constant 728 : i32
    %35 = vector.broadcast %c728_i32 : i32 to vector<64x784xi32>
    %36 = arith.cmpi sge, %19, %35 : vector<64x784xi32>
    %cst_10 = arith.constant 0.000000e+00 : f32
    %37 = vector.broadcast %cst_10 : f32 to vector<64x784xf32>
    %38 = arith.select %36, %37, %26 : vector<64x784xi1>, vector<64x784xf32>
    %c128 = arith.constant 128 : index
    %c0_11 = arith.constant 0 : index
    %39 = vector.load %arg4[%c128, %c0_11] : memref<192x784xf32, #tpu.memory_space<vmem>>, vector<64x784xf32>
    tpu.vector_store %arg4[%c128, %c0_11], %38 {strides = array<i32>} : memref<192x784xf32, #tpu.memory_space<vmem>>, vector<64x784xf32>,
    %c0_12 = arith.constant 0 : index
    %c0_13 = arith.constant 0 : index
    %40 = vector.load %arg2[%c0_12, %c0_13] : memref<256x192xf32, #tpu.memory_space<vmem>>, vector<256x192xf32>
    %c0_14 = arith.constant 0 : index
    %c0_15 = arith.constant 0 : index
    %41 = vector.load %arg4[%c0_14, %c0_15] : memref<192x784xf32, #tpu.memory_space<vmem>>, vector<192x784xf32>
    %cst_16 = arith.constant dense<0.000000e+00> : vector<256x784xf32>
    %42 = tpu.matmul %40, %41, %cst_16 {dimension_numbers = #tpu.dot_dimension_numbers<[1], [0], [0], [1], [0, 0, 1, 1], [], []>} : vector<256x192xf32>, vector<192x784xf32>, vector<256x784xf32> -> vector<256x784xf32>
    %c0_17 = arith.constant 0 : index
    %c0_18 = arith.constant 0 : index
    %43 = vector.load %arg3[%c0_17, %c0_18] : memref<256x784xf32, #tpu.memory_space<vmem>>, vector<256x784xf32>
    tpu.vector_store %arg3[%c0_17, %c0_18], %42 {strides = array<i32>} : memref<256x784xf32, #tpu.memory_space<vmem>>, vector<256x784xf32>,
    return
  }
  func.func @transform_0(%arg0: i32) -> (i32, i32) {
    %c0_i32 = arith.constant 0 : i32
    %c0_i32_0 = arith.constant 0 : i32
    %c0_i32_1 = arith.constant 0 : i32
    return %c0_i32, %c0_i32_0 : i32, i32
  }
  func.func @transform_1(%arg0: i32) -> (i32, i32) {
    %c0_i32 = arith.constant 0 : i32
    %c0_i32_0 = arith.constant 0 : i32
    return %arg0, %c0_i32 : i32, i32
  }
  func.func @transform_2(%arg0: i32) -> (i32, i32) {
    %c0_i32 = arith.constant 0 : i32
    %c0_i32_0 = arith.constant 0 : i32
    return %arg0, %c0_i32 : i32, i32
  }
}

</mosaic_0001>

<llo_original>
// kernel: kernel_generated_4_forward.1
$region0: #{kernel_generated_4_forward.1}
  #allocation0 [shape = 'u32[]', space=smem, size = 0x4, offset = 0x4, fixed_abs, tag = 'smem constant byte address 0x4 - core index']
  #allocation1 [shape = 'u32[144,128]{1,0:T(1,128)}', space=vmem, size = 0x12000, scoped, tag = 'internal scratch']
  #allocation2 [shape = 'f32[192,784]{1,0:T(8,128)}', space=vmem, size = 0xa8000, scoped, tag = 'scratch operand']
  %s0 = inlined_call_operand.vmem [shape: f32[64,784], index: 0, kind: input, shape index: {}]
  %s1 = inlined_call_operand.vmem [shape: f32[256,192], index: 1, kind: input, shape index: {}]
  %s2 = inlined_call_operand.vmem [shape: f32[256,784], index: 2, kind: output, shape index: {}]
  %s3 = sld [smem:[#allocation0]]
  $region18: #{kernel_generated_4_forward.1} parent=0
    _
  %s5 = ssub.s32 1, %s3
  %s6 = scalar_select 0, %s5, %s3
  // Predicated region
  $region2: #{kernel_generated_4_forward.1} parent=0 // pred_check
    _
  $region3: #{kernel_generated_4_forward.1} parent=0 // pred_check_branch
    %8 = sbr.rel (0) target = $region5
  $region4: #{kernel_generated_4_forward.1} parent=0 // pred_region
    _
  $region5: #{kernel_generated_4_forward.1} parent=0 // pred_fallthru
    _
  // Predicated region
  $region6: #{kernel_generated_4_forward.1} parent=0 // pred_check
    _
  $region7: #{kernel_generated_4_forward.1} parent=0 // pred_check_branch
    %10 = sbr.rel (0) target = $region9
  $region8: #{kernel_generated_4_forward.1} parent=0 // pred_region
    _
  $region9: #{kernel_generated_4_forward.1} parent=0 // pred_fallthru
    _
  %v11 = vld [vmem:[%s0] sm:$0xff]
  %v12 = vld [vmem:[%s0 + $0x8] sm:$0xff]
  %v13 = vld [vmem:[%s0 + $0x10] sm:$0xff]
  %v14 = vld [vmem:[%s0 + $0x18] sm:$0xff]
  %v15 = vld [vmem:[%s0 + $0x20] sm:$0xff]
  %v16 = vld [vmem:[%s0 + $0x28] sm:$0xff]
  %v17 = vld [vmem:[%s0 + $0x30] sm:$0xff]
  %v18 = vld [vmem:[%s0 + $0x38] sm:$0xff]
  %v19 = vld [vmem:[%s0 + $0x40] sm:$0xff]
  %v20 = vld [vmem:[%s0 + $0x48] sm:$0xff]
  %v21 = vld [vmem:[%s0 + $0x50] sm:$0xff]
  %v22 = vld [vmem:[%s0 + $0x58] sm:$0xff]
  %v23 = vld [vmem:[%s0 + $0x60] sm:$0xff]
  %v24 = vld [vmem:[%s0 + $0x68] sm:$0xff]
  %v25 = vld [vmem:[%s0 + $0x70] sm:$0xff]
  %v26 = vld [vmem:[%s0 + $0x78] sm:$0xff]
  %v27 = vld [vmem:[%s0 + $0x80] sm:$0xff]
  %v28 = vld [vmem:[%s0 + $0x88] sm:$0xff]
  %v29 = vld [vmem:[%s0 + $0x90] sm:$0xff]
  %v30 = vld [vmem:[%s0 + $0x98] sm:$0xff]
  %v31 = vld [vmem:[%s0 + $0xa0] sm:$0xff]
  %v32 = vld [vmem:[%s0 + $0xa8] sm:$0xff]
  %v33 = vld [vmem:[%s0 + $0xb0] sm:$0xff]
  %v34 = vld [vmem:[%s0 + $0xb8] sm:$0xff]
  %v35 = vld [vmem:[%s0 + $0xc0] sm:$0xff]
  %v36 = vld [vmem:[%s0 + $0xc8] sm:$0xff]
  %v37 = vld [vmem:[%s0 + $0xd0] sm:$0xff]
  %v38 = vld [vmem:[%s0 + $0xd8] sm:$0xff]
  %v39 = vld [vmem:[%s0 + $0xe0] sm:$0xff]
  %v40 = vld [vmem:[%s0 + $0xe8] sm:$0xff]
  %v41 = vld [vmem:[%s0 + $0xf0] sm:$0xff]
  %v42 = vld [vmem:[%s0 + $0xf8] sm:$0xff]
  %v43 = vld [vmem:[%s0 + $0x100] sm:$0xff]
  %v44 = vld [vmem:[%s0 + $0x108] sm:$0xff]
  %v45 = vld [vmem:[%s0 + $0x110] sm:$0xff]
  %v46 = vld [vmem:[%s0 + $0x118] sm:$0xff]
  %v47 = vld [vmem:[%s0 + $0x120] sm:$0xff]
  %v48 = vld [vmem:[%s0 + $0x128] sm:$0xff]
  %v49 = vld [vmem:[%s0 + $0x130] sm:$0xff]
  %v50 = vld [vmem:[%s0 + $0x138] sm:$0xff]
  %v51 = vld [vmem:[%s0 + $0x140] sm:$0xff]
  %v52 = vld [vmem:[%s0 + $0x148] sm:$0xff]
  %v53 = vld [vmem:[%s0 + $0x150] sm:$0xff]
  %v54 = vld [vmem:[%s0 + $0x158] sm:$0xff]
  %v55 = vld [vmem:[%s0 + $0x160] sm:$0xff]
  %v56 = vld [vmem:[%s0 + $0x168] sm:$0xff]
  %v57 = vld [vmem:[%s0 + $0x170] sm:$0xff]
  %v58 = vld [vmem:[%s0 + $0x178] sm:$0xff]
  %v59 = vld [vmem:[%s0 + $0x180] sm:$0xff]
  %v60 = vld [vmem:[%s0 + $0x188] sm:$0xff]
  %v61 = vld [vmem:[%s0 + $0x190] sm:$0xff]
  %v62 = vld [vmem:[%s0 + $0x198] sm:$0xff]
  %v63 = vld [vmem:[%s0 + $0x1a0] sm:$0xff]
  %v64 = vld [vmem:[%s0 + $0x1a8] sm:$0xff]
  %v65 = vld [vmem:[%s0 + $0x1b0] sm:$0xff]
  %v66 = vld [vmem:[%s0 + $0x1b8] sm:$0xff]
  %v67 = vlaneseq
  %v68 = vand.u32 %v67, 127
  %v69 = vadd.s32 %v68, 128
  %v70 = vadd.s32 %v68, 256
  %v71 = vadd.s32 %v68, 384
  %v72 = vadd.s32 %v68, 512
  %v73 = vadd.s32 %v68, 640
  %v74 = vadd.s32 %v68, 768
  %vm75 = vcmp.lt.s32.totalorder %v68, 0
  %v76 = vsub.s32 0, %v68
  %v77 = vsel %vm75, %v76, %v68
  %v78 = vmul.u32.u64.compose %v77, 2454267026
  %v79 = vextract.low.u32 %v78
  %v80 = vextract.high.u32 %v78
  %vm81 = vc.u32 %v79, 2454267026
  %v82 = vsel %vm81, 1, 0
  %v83 = vadd.s32 %v80, %v82
  %v84 = vshrl.u32 %v83, 4
  %v85 = vmul.u32 %v84, 28
  %v86 = vsub.s32 %v77, %v85
  %v87 = vsub.s32 0, %v86
  %v88 = vsel %vm75, %v87, %v86
  %vm89 = vcmp.lt.s32.totalorder %v69, 0
  %v90 = vsub.s32 0, %v69
  %v91 = vsel %vm89, %v90, %v69
  %v92 = vmul.u32.u64.compose %v91, 2454267026
  %v93 = vextract.low.u32 %v92
  %v94 = vextract.high.u32 %v92
  %vm95 = vc.u32 %v93, 2454267026
  %v96 = vsel %vm95, 1, 0
  %v97 = vadd.s32 %v94, %v96
  %v98 = vshrl.u32 %v97, 4
  %v99 = vmul.u32 %v98, 28
  %v100 = vsub.s32 %v91, %v99
  %v101 = vsub.s32 0, %v100
  %v102 = vsel %vm89, %v101, %v100
  %vm103 = vcmp.lt.s32.totalorder %v70, 0
  %v104 = vsub.s32 0, %v70
  %v105 = vsel %vm103, %v104, %v70
  %v106 = vmul.u32.u64.compose %v105, 2454267026
  %v107 = vextract.low.u32 %v106
  %v108 = vextract.high.u32 %v106
  %vm109 = vc.u32 %v107, 2454267026
  %v110 = vsel %vm109, 1, 0
  %v111 = vadd.s32 %v108, %v110
  %v112 = vshrl.u32 %v111, 4
  %v113 = vmul.u32 %v112, 28
  %v114 = vsub.s32 %v105, %v113
  %v115 = vsub.s32 0, %v114
  %v116 = vsel %vm103, %v115, %v114
  %vm117 = vcmp.lt.s32.totalorder %v71, 0
  %v118 = vsub.s32 0, %v71
  %v119 = vsel %vm117, %v118, %v71
  %v120 = vmul.u32.u64.compose %v119, 2454267026
  %v121 = vextract.low.u32 %v120
  %v122 = vextract.high.u32 %v120
  %vm123 = vc.u32 %v121, 2454267026
  %v124 = vsel %vm123, 1, 0
  %v125 = vadd.s32 %v122, %v124
  %v126 = vshrl.u32 %v125, 4
  %v127 = vmul.u32 %v126, 28
  %v128 = vsub.s32 %v119, %v127
  %v129 = vsub.s32 0, %v128
  %v130 = vsel %vm117, %v129, %v128
  %vm131 = vcmp.lt.s32.totalorder %v72, 0
  %v132 = vsub.s32 0, %v72
  %v133 = vsel %vm131, %v132, %v72
  %v134 = vmul.u32.u64.compose %v133, 2454267026
  %v135 = vextract.low.u32 %v134
  %v136 = vextract.high.u32 %v134
  %vm137 = vc.u32 %v135, 2454267026
  %v138 = vsel %vm137, 1, 0
  %v139 = vadd.s32 %v136, %v138
  %v140 = vshrl.u32 %v139, 4
  %v141 = vmul.u32 %v140, 28
  %v142 = vsub.s32 %v133, %v141
  %v143 = vsub.s32 0, %v142
  %v144 = vsel %vm131, %v143, %v142
  %vm145 = vcmp.lt.s32.totalorder %v73, 0
  %v146 = vsub.s32 0, %v73
  %v147 = vsel %vm145, %v146, %v73
  %v148 = vmul.u32.u64.compose %v147, 2454267026
  %v149 = vextract.low.u32 %v148
  %v150 = vextract.high.u32 %v148
  %vm151 = vc.u32 %v149, 2454267026
  %v152 = vsel %vm151, 1, 0
  %v153 = vadd.s32 %v150, %v152
  %v154 = vshrl.u32 %v153, 4
  %v155 = vmul.u32 %v154, 28
  %v156 = vsub.s32 %v147, %v155
  %v157 = vsub.s32 0, %v156
  %v158 = vsel %vm145, %v157, %v156
  %vm159 = vcmp.lt.s32.totalorder %v74, 0
  %v160 = vsub.s32 0, %v74
  %v161 = vsel %vm159, %v160, %v74
  %v162 = vmul.u32.u64.compose %v161, 2454267026
  %v163 = vextract.low.u32 %v162
  %v164 = vextract.high.u32 %v162
  %vm165 = vc.u32 %v163, 2454267026
  %v166 = vsel %vm165, 1, 0
  %v167 = vadd.s32 %v164, %v166
  %v168 = vshrl.u32 %v167, 4
  %v169 = vmul.u32 %v168, 28
  %v170 = vsub.s32 %v161, %v169
  %v171 = vsub.s32 0, %v170
  %v172 = vsel %vm159, %v171, %v170
  %vm173 = vcmp.ne.s32.totalorder %v88, 0
  %vm174 = vcmp.ne.s32.totalorder %v102, 0
  %vm175 = vcmp.ne.s32.totalorder %v116, 0
  %vm176 = vcmp.ne.s32.totalorder %v130, 0
  %vm177 = vcmp.ne.s32.totalorder %v144, 0
  %vm178 = vcmp.ne.s32.totalorder %v158, 0
  %vm179 = vcmp.ne.s32.totalorder %v172, 0
  %vm180 = vcmp.lt.s32.totalorder %v88, 0
  %vm181 = vcmp.lt.s32.totalorder %v102, 0
  %vm182 = vcmp.lt.s32.totalorder %v116, 0
  %vm183 = vcmp.lt.s32.totalorder %v130, 0
  %vm184 = vcmp.lt.s32.totalorder %v144, 0
  %vm185 = vcmp.lt.s32.totalorder %v158, 0
  %vm186 = vcmp.lt.s32.totalorder %v172, 0
  %vm187 = vmand %vm180, %vm173
  %vm188 = vmand %vm181, %vm174
  %vm189 = vmand %vm182, %vm175
  %vm190 = vmand %vm183, %vm176
  %vm191 = vmand %vm184, %vm177
  %vm192 = vmand %vm185, %vm178
  %vm193 = vmand %vm186, %vm179
  %v194 = vadd.s32 %v88, 28
  %v195 = vadd.s32 %v102, 28
  %v196 = vadd.s32 %v116, 28
  %v197 = vadd.s32 %v130, 28
  %v198 = vadd.s32 %v144, 28
  %v199 = vadd.s32 %v158, 28
  %v200 = vadd.s32 %v172, 28
  %v201 = vsel %vm187, %v194, %v88
  %v202 = vsel %vm188, %v195, %v102
  %v203 = vsel %vm189, %v196, %v116
  %v204 = vsel %vm190, %v197, %v130
  %v205 = vsel %vm191, %v198, %v144
  %v206 = vsel %vm192, %v199, %v158
  %v207 = vsel %vm193, %v200, %v172
  %vm208 = vcmask 1047680
  %209 = vrot.lane.b32.xlu0 %v11, 16
  %v210 = vpop.permute.xlu0 %209
  %v211 = vsel %vm208, %v210, %v17
  %212 = vrot.lane.b32.xlu0 %v18, 16
  %v213 = vpop.permute.xlu0 %212
  %v214 = vsel %vm208, %v213, %v24
  %215 = vrot.lane.b32.xlu0 %v25, 16
  %v216 = vpop.permute.xlu0 %215
  %v217 = vsel %vm208, %v216, %v31
  %218 = vrot.lane.b32.xlu0 %v32, 16
  %v219 = vpop.permute.xlu0 %218
  %v220 = vsel %vm208, %v219, %v38
  %221 = vrot.lane.b32.xlu0 %v39, 16
  %v222 = vpop.permute.xlu0 %221
  %v223 = vsel %vm208, %v222, %v45
  %224 = vrot.lane.b32.xlu0 %v46, 16
  %v225 = vpop.permute.xlu0 %224
  %v226 = vsel %vm208, %v225, %v52
  %227 = vrot.lane.b32.xlu0 %v53, 16
  %v228 = vpop.permute.xlu0 %227
  %v229 = vsel %vm208, %v228, %v59
  %230 = vrot.lane.b32.xlu0 %v60, 16
  %v231 = vpop.permute.xlu0 %230
  %v232 = vsel %vm208, %v231, %v66
  %233 = vrot.lane.b32.xlu0 %v12, 16
  %v234 = vpop.permute.xlu0 %233
  %235 = vrot.lane.b32.xlu0 %v19, 16
  %v236 = vpop.permute.xlu0 %235
  %237 = vrot.lane.b32.xlu0 %v26, 16
  %v238 = vpop.permute.xlu0 %237
  %239 = vrot.lane.b32.xlu0 %v33, 16
  %v240 = vpop.permute.xlu0 %239
  %241 = vrot.lane.b32.xlu0 %v40, 16
  %v242 = vpop.permute.xlu0 %241
  %243 = vrot.lane.b32.xlu0 %v47, 16
  %v244 = vpop.permute.xlu0 %243
  %245 = vrot.lane.b32.xlu0 %v54, 16
  %v246 = vpop.permute.xlu0 %245
  %247 = vrot.lane.b32.xlu0 %v61, 16
  %v248 = vpop.permute.xlu0 %247
  %249 = vrot.lane.b32.xlu0 %v13, 16
  %v250 = vpop.permute.xlu0 %249
  %251 = vrot.lane.b32.xlu0 %v20, 16
  %v252 = vpop.permute.xlu0 %251
  %253 = vrot.lane.b32.xlu0 %v27, 16
  %v254 = vpop.permute.xlu0 %253
  %255 = vrot.lane.b32.xlu0 %v34, 16
  %v256 = vpop.permute.xlu0 %255
  %257 = vrot.lane.b32.xlu0 %v41, 16
  %v258 = vpop.permute.xlu0 %257
  %259 = vrot.lane.b32.xlu0 %v48, 16
  %v260 = vpop.permute.xlu0 %259
  %261 = vrot.lane.b32.xlu0 %v55, 16
  %v262 = vpop.permute.xlu0 %261
  %263 = vrot.lane.b32.xlu0 %v62, 16
  %v264 = vpop.permute.xlu0 %263
  %265 = vrot.lane.b32.xlu0 %v14, 16
  %v266 = vpop.permute.xlu0 %265
  %267 = vrot.lane.b32.xlu0 %v21, 16
  %v268 = vpop.permute.xlu0 %267
  %269 = vrot.lane.b32.xlu0 %v28, 16
  %v270 = vpop.permute.xlu0 %269
  %271 = vrot.lane.b32.xlu0 %v35, 16
  %v272 = vpop.permute.xlu0 %271
  %273 = vrot.lane.b32.xlu0 %v42, 16
  %v274 = vpop.permute.xlu0 %273
  %275 = vrot.lane.b32.xlu0 %v49, 16
  %v276 = vpop.permute.xlu0 %275
  %277 = vrot.lane.b32.xlu0 %v56, 16
  %v278 = vpop.permute.xlu0 %277
  %279 = vrot.lane.b32.xlu0 %v63, 16
  %v280 = vpop.permute.xlu0 %279
  %281 = vrot.lane.b32.xlu0 %v15, 16
  %v282 = vpop.permute.xlu0 %281
  %283 = vrot.lane.b32.xlu0 %v22, 16
  %v284 = vpop.permute.xlu0 %283
  %285 = vrot.lane.b32.xlu0 %v29, 16
  %v286 = vpop.permute.xlu0 %285
  %287 = vrot.lane.b32.xlu0 %v36, 16
  %v288 = vpop.permute.xlu0 %287
  %289 = vrot.lane.b32.xlu0 %v43, 16
  %v290 = vpop.permute.xlu0 %289
  %291 = vrot.lane.b32.xlu0 %v50, 16
  %v292 = vpop.permute.xlu0 %291
  %293 = vrot.lane.b32.xlu0 %v57, 16
  %v294 = vpop.permute.xlu0 %293
  %295 = vrot.lane.b32.xlu0 %v64, 16
  %v296 = vpop.permute.xlu0 %295
  %297 = vrot.lane.b32.xlu0 %v16, 16
  %v298 = vpop.permute.xlu0 %297
  %299 = vrot.lane.b32.xlu0 %v23, 16
  %v300 = vpop.permute.xlu0 %299
  %301 = vrot.lane.b32.xlu0 %v30, 16
  %v302 = vpop.permute.xlu0 %301
  %303 = vrot.lane.b32.xlu0 %v37, 16
  %v304 = vpop.permute.xlu0 %303
  %305 = vrot.lane.b32.xlu0 %v44, 16
  %v306 = vpop.permute.xlu0 %305
  %307 = vrot.lane.b32.xlu0 %v51, 16
  %v308 = vpop.permute.xlu0 %307
  %309 = vrot.lane.b32.xlu0 %v58, 16
  %v310 = vpop.permute.xlu0 %309
  %311 = vrot.lane.b32.xlu0 %v65, 16
  %v312 = vpop.permute.xlu0 %311
  %313 = vrot.lane.b32.xlu0 %v211, 16
  %v314 = vpop.permute.xlu0 %313
  %315 = vrot.lane.b32.xlu0 %v214, 16
  %v316 = vpop.permute.xlu0 %315
  %317 = vrot.lane.b32.xlu0 %v217, 16
  %v318 = vpop.permute.xlu0 %317
  %319 = vrot.lane.b32.xlu0 %v220, 16
  %v320 = vpop.permute.xlu0 %319
  %321 = vrot.lane.b32.xlu0 %v223, 16
  %v322 = vpop.permute.xlu0 %321
  %323 = vrot.lane.b32.xlu0 %v226, 16
  %v324 = vpop.permute.xlu0 %323
  %325 = vrot.lane.b32.xlu0 %v229, 16
  %v326 = vpop.permute.xlu0 %325
  %327 = vrot.lane.b32.xlu0 %v232, 16
  %v328 = vpop.permute.xlu0 %327
  %v329 = vsel %vm208, %v234, %v210
  %v330 = vsel %vm208, %v236, %v213
  %v331 = vsel %vm208, %v238, %v216
  %v332 = vsel %vm208, %v240, %v219
  %v333 = vsel %vm208, %v242, %v222
  %v334 = vsel %vm208, %v244, %v225
  %v335 = vsel %vm208, %v246, %v228
  %v336 = vsel %vm208, %v248, %v231
  %v337 = vsel %vm208, %v250, %v234
  %v338 = vsel %vm208, %v252, %v236
  %v339 = vsel %vm208, %v254, %v238
  %v340 = vsel %vm208, %v256, %v240
  %v341 = vsel %vm208, %v258, %v242
  %v342 = vsel %vm208, %v260, %v244
  %v343 = vsel %vm208, %v262, %v246
  %v344 = vsel %vm208, %v264, %v248
  %v345 = vsel %vm208, %v266, %v250
  %v346 = vsel %vm208, %v268, %v252
  %v347 = vsel %vm208, %v270, %v254
  %v348 = vsel %vm208, %v272, %v256
  %v349 = vsel %vm208, %v274, %v258
  %v350 = vsel %vm208, %v276, %v260
  %v351 = vsel %vm208, %v278, %v262
  %v352 = vsel %vm208, %v280, %v264
  %v353 = vsel %vm208, %v282, %v266
  %v354 = vsel %vm208, %v284, %v268
  %v355 = vsel %vm208, %v286, %v270
  %v356 = vsel %vm208, %v288, %v272
  %v357 = vsel %vm208, %v290, %v274
  %v358 = vsel %vm208, %v292, %v276
  %v359 = vsel %vm208, %v294, %v278
  %v360 = vsel %vm208, %v296, %v280
  %v361 = vsel %vm208, %v298, %v282
  %v362 = vsel %vm208, %v300, %v284
  %v363 = vsel %vm208, %v302, %v286
  %v364 = vsel %vm208, %v304, %v288
  %v365 = vsel %vm208, %v306, %v290
  %v366 = vsel %vm208, %v308, %v292
  %v367 = vsel %vm208, %v310, %v294
  %v368 = vsel %vm208, %v312, %v296
  %v369 = vsel %vm208, %v314, %v298
  %v370 = vsel %vm208, %v316, %v300
  %v371 = vsel %vm208, %v318, %v302
  %v372 = vsel %vm208, %v320, %v304
  %v373 = vsel %vm208, %v322, %v306
  %v374 = vsel %vm208, %v324, %v308
  %v375 = vsel %vm208, %v326, %v310
  %v376 = vsel %vm208, %v328, %v312
  %vm377 = vcmp.lt.s32.totalorder %v201, 1
  %vm378 = vcmp.lt.s32.totalorder %v202, 1
  %vm379 = vcmp.lt.s32.totalorder %v203, 1
  %vm380 = vcmp.lt.s32.totalorder %v204, 1
  %vm381 = vcmp.lt.s32.totalorder %v205, 1
  %vm382 = vcmp.lt.s32.totalorder %v206, 1
  %vm383 = vcmp.lt.s32.totalorder %v207, 1
  %440 = vrot.lane.b32.xlu0 %v11, 101
  %v441 = vpop.permute.xlu0 %440
  %442 = vrot.lane.b32.xlu0 %v12, 101
  %v443 = vpop.permute.xlu0 %442
  %444 = vrot.lane.b32.xlu0 %v13, 101
  %v445 = vpop.permute.xlu0 %444
  %446 = vrot.lane.b32.xlu0 %v14, 101
  %v447 = vpop.permute.xlu0 %446
  %448 = vrot.lane.b32.xlu0 %v15, 101
  %v449 = vpop.permute.xlu0 %448
  %450 = vrot.lane.b32.xlu0 %v16, 101
  %v451 = vpop.permute.xlu0 %450
  %452 = vrot.lane.b32.xlu0 %v211, 101
  %v453 = vpop.permute.xlu0 %452
  %454 = vrot.lane.b32.xlu0 %v18, 101
  %v455 = vpop.permute.xlu0 %454
  %456 = vrot.lane.b32.xlu0 %v19, 101
  %v457 = vpop.permute.xlu0 %456
  %458 = vrot.lane.b32.xlu0 %v20, 101
  %v459 = vpop.permute.xlu0 %458
  %460 = vrot.lane.b32.xlu0 %v21, 101
  %v461 = vpop.permute.xlu0 %460
  %462 = vrot.lane.b32.xlu0 %v22, 101
  %v463 = vpop.permute.xlu0 %462
  %464 = vrot.lane.b32.xlu0 %v23, 101
  %v465 = vpop.permute.xlu0 %464
  %466 = vrot.lane.b32.xlu0 %v214, 101
  %v467 = vpop.permute.xlu0 %466
  %468 = vrot.lane.b32.xlu0 %v25, 101
  %v469 = vpop.permute.xlu0 %468
  %470 = vrot.lane.b32.xlu0 %v26, 101
  %v471 = vpop.permute.xlu0 %470
  %472 = vrot.lane.b32.xlu0 %v27, 101
  %v473 = vpop.permute.xlu0 %472
  %474 = vrot.lane.b32.xlu0 %v28, 101
  %v475 = vpop.permute.xlu0 %474
  %476 = vrot.lane.b32.xlu0 %v29, 101
  %v477 = vpop.permute.xlu0 %476
  %478 = vrot.lane.b32.xlu0 %v30, 101
  %v479 = vpop.permute.xlu0 %478
  %480 = vrot.lane.b32.xlu0 %v217, 101
  %v481 = vpop.permute.xlu0 %480
  %482 = vrot.lane.b32.xlu0 %v32, 101
  %v483 = vpop.permute.xlu0 %482
  %484 = vrot.lane.b32.xlu0 %v33, 101
  %v485 = vpop.permute.xlu0 %484
  %486 = vrot.lane.b32.xlu0 %v34, 101
  %v487 = vpop.permute.xlu0 %486
  %488 = vrot.lane.b32.xlu0 %v35, 101
  %v489 = vpop.permute.xlu0 %488
  %490 = vrot.lane.b32.xlu0 %v36, 101
  %v491 = vpop.permute.xlu0 %490
  %492 = vrot.lane.b32.xlu0 %v37, 101
  %v493 = vpop.permute.xlu0 %492
  %494 = vrot.lane.b32.xlu0 %v220, 101
  %v495 = vpop.permute.xlu0 %494
  %496 = vrot.lane.b32.xlu0 %v39, 101
  %v497 = vpop.permute.xlu0 %496
  %498 = vrot.lane.b32.xlu0 %v40, 101
  %v499 = vpop.permute.xlu0 %498
  %500 = vrot.lane.b32.xlu0 %v41, 101
  %v501 = vpop.permute.xlu0 %500
  %502 = vrot.lane.b32.xlu0 %v42, 101
  %v503 = vpop.permute.xlu0 %502
  %504 = vrot.lane.b32.xlu0 %v43, 101
  %v505 = vpop.permute.xlu0 %504
  %506 = vrot.lane.b32.xlu0 %v44, 101
  %v507 = vpop.permute.xlu0 %506
  %508 = vrot.lane.b32.xlu0 %v223, 101
  %v509 = vpop.permute.xlu0 %508
  %510 = vrot.lane.b32.xlu0 %v46, 101
  %v511 = vpop.permute.xlu0 %510
  %512 = vrot.lane.b32.xlu0 %v47, 101
  %v513 = vpop.permute.xlu0 %512
  %514 = vrot.lane.b32.xlu0 %v48, 101
  %v515 = vpop.permute.xlu0 %514
  %516 = vrot.lane.b32.xlu0 %v49, 101
  %v517 = vpop.permute.xlu0 %516
  %518 = vrot.lane.b32.xlu0 %v50, 101
  %v519 = vpop.permute.xlu0 %518
  %520 = vrot.lane.b32.xlu0 %v51, 101
  %v521 = vpop.permute.xlu0 %520
  %522 = vrot.lane.b32.xlu0 %v226, 101
  %v523 = vpop.permute.xlu0 %522
  %524 = vrot.lane.b32.xlu0 %v53, 101
  %v525 = vpop.permute.xlu0 %524
  %526 = vrot.lane.b32.xlu0 %v54, 101
  %v527 = vpop.permute.xlu0 %526
  %528 = vrot.lane.b32.xlu0 %v55, 101
  %v529 = vpop.permute.xlu0 %528
  %530 = vrot.lane.b32.xlu0 %v56, 101
  %v531 = vpop.permute.xlu0 %530
  %532 = vrot.lane.b32.xlu0 %v57, 101
  %v533 = vpop.permute.xlu0 %532
  %534 = vrot.lane.b32.xlu0 %v58, 101
  %v535 = vpop.permute.xlu0 %534
  %536 = vrot.lane.b32.xlu0 %v229, 101
  %v537 = vpop.permute.xlu0 %536
  %538 = vrot.lane.b32.xlu0 %v60, 101
  %v539 = vpop.permute.xlu0 %538
  %540 = vrot.lane.b32.xlu0 %v61, 101
  %v541 = vpop.permute.xlu0 %540
  %542 = vrot.lane.b32.xlu0 %v62, 101
  %v543 = vpop.permute.xlu0 %542
  %544 = vrot.lane.b32.xlu0 %v63, 101
  %v545 = vpop.permute.xlu0 %544
  %546 = vrot.lane.b32.xlu0 %v64, 101
  %v547 = vpop.permute.xlu0 %546
  %548 = vrot.lane.b32.xlu0 %v65, 101
  %v549 = vpop.permute.xlu0 %548
  %550 = vrot.lane.b32.xlu0 %v232, 101
  %v551 = vpop.permute.xlu0 %550
  %vm552 = vcmask 826368
  %v553 = vsel %vm552, %v441, %v443
  %v554 = vsel %vm552, %v443, %v445
  %v555 = vsel %vm552, %v445, %v447
  %v556 = vsel %vm552, %v447, %v449
  %v557 = vsel %vm552, %v449, %v451
  %v558 = vsel %vm552, %v451, %v453
  %v559 = vsel %vm552, %v455, %v457
  %v560 = vsel %vm552, %v457, %v459
  %v561 = vsel %vm552, %v459, %v461
  %v562 = vsel %vm552, %v461, %v463
  %v563 = vsel %vm552, %v463, %v465
  %v564 = vsel %vm552, %v465, %v467
  %v565 = vsel %vm552, %v469, %v471
  %v566 = vsel %vm552, %v471, %v473
  %v567 = vsel %vm552, %v473, %v475
  %v568 = vsel %vm552, %v475, %v477
  %v569 = vsel %vm552, %v477, %v479
  %v570 = vsel %vm552, %v479, %v481
  %v571 = vsel %vm552, %v483, %v485
  %v572 = vsel %vm552, %v485, %v487
  %v573 = vsel %vm552, %v487, %v489
  %v574 = vsel %vm552, %v489, %v491
  %v575 = vsel %vm552, %v491, %v493
  %v576 = vsel %vm552, %v493, %v495
  %v577 = vsel %vm552, %v497, %v499
  %v578 = vsel %vm552, %v499, %v501
  %v579 = vsel %vm552, %v501, %v503
  %v580 = vsel %vm552, %v503, %v505
  %v581 = vsel %vm552, %v505, %v507
  %v582 = vsel %vm552, %v507, %v509
  %v583 = vsel %vm552, %v511, %v513
  %v584 = vsel %vm552, %v513, %v515
  %v585 = vsel %vm552, %v515, %v517
  %v586 = vsel %vm552, %v517, %v519
  %v587 = vsel %vm552, %v519, %v521
  %v588 = vsel %vm552, %v521, %v523
  %v589 = vsel %vm552, %v525, %v527
  %v590 = vsel %vm552, %v527, %v529
  %v591 = vsel %vm552, %v529, %v531
  %v592 = vsel %vm552, %v531, %v533
  %v593 = vsel %vm552, %v533, %v535
  %v594 = vsel %vm552, %v535, %v537
  %v595 = vsel %vm552, %v539, %v541
  %v596 = vsel %vm552, %v541, %v543
  %v597 = vsel %vm552, %v543, %v545
  %v598 = vsel %vm552, %v545, %v547
  %v599 = vsel %vm552, %v547, %v549
  %v600 = vsel %vm552, %v549, %v551
  %705 = vrot.lane.b32.xlu0 %v211, 113
  %v706 = vpop.permute.xlu0 %705
  %707 = vrot.lane.b32.xlu0 %v329, 113
  %v708 = vpop.permute.xlu0 %707
  %709 = vrot.lane.b32.xlu0 %v337, 113
  %v710 = vpop.permute.xlu0 %709
  %711 = vrot.lane.b32.xlu0 %v345, 113
  %v712 = vpop.permute.xlu0 %711
  %713 = vrot.lane.b32.xlu0 %v353, 113
  %v714 = vpop.permute.xlu0 %713
  %715 = vrot.lane.b32.xlu0 %v361, 113
  %v716 = vpop.permute.xlu0 %715
  %717 = vrot.lane.b32.xlu0 %v369, 113
  %v718 = vpop.permute.xlu0 %717
  %719 = vrot.lane.b32.xlu0 %v214, 113
  %v720 = vpop.permute.xlu0 %719
  %721 = vrot.lane.b32.xlu0 %v330, 113
  %v722 = vpop.permute.xlu0 %721
  %723 = vrot.lane.b32.xlu0 %v338, 113
  %v724 = vpop.permute.xlu0 %723
  %725 = vrot.lane.b32.xlu0 %v346, 113
  %v726 = vpop.permute.xlu0 %725
  %727 = vrot.lane.b32.xlu0 %v354, 113
  %v728 = vpop.permute.xlu0 %727
  %729 = vrot.lane.b32.xlu0 %v362, 113
  %v730 = vpop.permute.xlu0 %729
  %731 = vrot.lane.b32.xlu0 %v370, 113
  %v732 = vpop.permute.xlu0 %731
  %733 = vrot.lane.b32.xlu0 %v217, 113
  %v734 = vpop.permute.xlu0 %733
  %735 = vrot.lane.b32.xlu0 %v331, 113
  %v736 = vpop.permute.xlu0 %735
  %737 = vrot.lane.b32.xlu0 %v339, 113
  %v738 = vpop.permute.xlu0 %737
  %739 = vrot.lane.b32.xlu0 %v347, 113
  %v740 = vpop.permute.xlu0 %739
  %741 = vrot.lane.b32.xlu0 %v355, 113
  %v742 = vpop.permute.xlu0 %741
  %743 = vrot.lane.b32.xlu0 %v363, 113
  %v744 = vpop.permute.xlu0 %743
  %745 = vrot.lane.b32.xlu0 %v371, 113
  %v746 = vpop.permute.xlu0 %745
  %747 = vrot.lane.b32.xlu0 %v220, 113
  %v748 = vpop.permute.xlu0 %747
  %749 = vrot.lane.b32.xlu0 %v332, 113
  %v750 = vpop.permute.xlu0 %749
  %751 = vrot.lane.b32.xlu0 %v340, 113
  %v752 = vpop.permute.xlu0 %751
  %753 = vrot.lane.b32.xlu0 %v348, 113
  %v754 = vpop.permute.xlu0 %753
  %755 = vrot.lane.b32.xlu0 %v356, 113
  %v756 = vpop.permute.xlu0 %755
  %757 = vrot.lane.b32.xlu0 %v364, 113
  %v758 = vpop.permute.xlu0 %757
  %759 = vrot.lane.b32.xlu0 %v372, 113
  %v760 = vpop.permute.xlu0 %759
  %761 = vrot.lane.b32.xlu0 %v223, 113
  %v762 = vpop.permute.xlu0 %761
  %763 = vrot.lane.b32.xlu0 %v333, 113
  %v764 = vpop.permute.xlu0 %763
  %765 = vrot.lane.b32.xlu0 %v341, 113
  %v766 = vpop.permute.xlu0 %765
  %767 = vrot.lane.b32.xlu0 %v349, 113
  %v768 = vpop.permute.xlu0 %767
  %769 = vrot.lane.b32.xlu0 %v357, 113
  %v770 = vpop.permute.xlu0 %769
  %771 = vrot.lane.b32.xlu0 %v365, 113
  %v772 = vpop.permute.xlu0 %771
  %773 = vrot.lane.b32.xlu0 %v373, 113
  %v774 = vpop.permute.xlu0 %773
  %775 = vrot.lane.b32.xlu0 %v226, 113
  %v776 = vpop.permute.xlu0 %775
  %777 = vrot.lane.b32.xlu0 %v334, 113
  %v778 = vpop.permute.xlu0 %777
  %779 = vrot.lane.b32.xlu0 %v342, 113
  %v780 = vpop.permute.xlu0 %779
  %781 = vrot.lane.b32.xlu0 %v350, 113
  %v782 = vpop.permute.xlu0 %781
  %783 = vrot.lane.b32.xlu0 %v358, 113
  %v784 = vpop.permute.xlu0 %783
  %785 = vrot.lane.b32.xlu0 %v366, 113
  %v786 = vpop.permute.xlu0 %785
  %787 = vrot.lane.b32.xlu0 %v374, 113
  %v788 = vpop.permute.xlu0 %787
  %789 = vrot.lane.b32.xlu0 %v229, 113
  %v790 = vpop.permute.xlu0 %789
  %791 = vrot.lane.b32.xlu0 %v335, 113
  %v792 = vpop.permute.xlu0 %791
  %793 = vrot.lane.b32.xlu0 %v343, 113
  %v794 = vpop.permute.xlu0 %793
  %795 = vrot.lane.b32.xlu0 %v351, 113
  %v796 = vpop.permute.xlu0 %795
  %797 = vrot.lane.b32.xlu0 %v359, 113
  %v798 = vpop.permute.xlu0 %797
  %799 = vrot.lane.b32.xlu0 %v367, 113
  %v800 = vpop.permute.xlu0 %799
  %801 = vrot.lane.b32.xlu0 %v375, 113
  %v802 = vpop.permute.xlu0 %801
  %803 = vrot.lane.b32.xlu0 %v232, 113
  %v804 = vpop.permute.xlu0 %803
  %805 = vrot.lane.b32.xlu0 %v336, 113
  %v806 = vpop.permute.xlu0 %805
  %807 = vrot.lane.b32.xlu0 %v344, 113
  %v808 = vpop.permute.xlu0 %807
  %809 = vrot.lane.b32.xlu0 %v352, 113
  %v810 = vpop.permute.xlu0 %809
  %811 = vrot.lane.b32.xlu0 %v360, 113
  %v812 = vpop.permute.xlu0 %811
  %813 = vrot.lane.b32.xlu0 %v368, 113
  %v814 = vpop.permute.xlu0 %813
  %815 = vrot.lane.b32.xlu0 %v376, 113
  %v816 = vpop.permute.xlu0 %815
  %vm817 = vcmask 924672
  %v818 = vsel %vm817, %v706, %v708
  %v819 = vsel %vm817, %v708, %v710
  %v820 = vsel %vm817, %v710, %v712
  %v821 = vsel %vm817, %v712, %v714
  %v822 = vsel %vm817, %v714, %v716
  %v823 = vsel %vm817, %v716, %v718
  %v824 = vsel %vm817, %v720, %v722
  %v825 = vsel %vm817, %v722, %v724
  %v826 = vsel %vm817, %v724, %v726
  %v827 = vsel %vm817, %v726, %v728
  %v828 = vsel %vm817, %v728, %v730
  %v829 = vsel %vm817, %v730, %v732
  %v830 = vsel %vm817, %v734, %v736
  %v831 = vsel %vm817, %v736, %v738
  %v832 = vsel %vm817, %v738, %v740
  %v833 = vsel %vm817, %v740, %v742
  %v834 = vsel %vm817, %v742, %v744
  %v835 = vsel %vm817, %v744, %v746
  %v836 = vsel %vm817, %v748, %v750
  %v837 = vsel %vm817, %v750, %v752
  %v838 = vsel %vm817, %v752, %v754
  %v839 = vsel %vm817, %v754, %v756
  %v840 = vsel %vm817, %v756, %v758
  %v841 = vsel %vm817, %v758, %v760
  %v842 = vsel %vm817, %v762, %v764
  %v843 = vsel %vm817, %v764, %v766
  %v844 = vsel %vm817, %v766, %v768
  %v845 = vsel %vm817, %v768, %v770
  %v846 = vsel %vm817, %v770, %v772
  %v847 = vsel %vm817, %v772, %v774
  %v848 = vsel %vm817, %v776, %v778
  %v849 = vsel %vm817, %v778, %v780
  %v850 = vsel %vm817, %v780, %v782
  %v851 = vsel %vm817, %v782, %v784
  %v852 = vsel %vm817, %v784, %v786
  %v853 = vsel %vm817, %v786, %v788
  %v854 = vsel %vm817, %v790, %v792
  %v855 = vsel %vm817, %v792, %v794
  %v856 = vsel %vm817, %v794, %v796
  %v857 = vsel %vm817, %v796, %v798
  %v858 = vsel %vm817, %v798, %v800
  %v859 = vsel %vm817, %v800, %v802
  %v860 = vsel %vm817, %v804, %v806
  %v861 = vsel %vm817, %v806, %v808
  %v862 = vsel %vm817, %v808, %v810
  %v863 = vsel %vm817, %v810, %v812
  %v864 = vsel %vm817, %v812, %v814
  %v865 = vsel %vm817, %v814, %v816
  %v922 = vsel %vm377, %v553, %v818
  %v923 = vsel %vm378, %v554, %v819
  %v924 = vsel %vm379, %v555, %v820
  %v925 = vsel %vm380, %v556, %v821
  %v926 = vsel %vm381, %v557, %v822
  %v927 = vsel %vm382, %v558, %v823
  %v928 = vsel %vm383, %v453, %v718
  %v929 = vsel %vm377, %v559, %v824
  %v930 = vsel %vm378, %v560, %v825
  %v931 = vsel %vm379, %v561, %v826
  %v932 = vsel %vm380, %v562, %v827
  %v933 = vsel %vm381, %v563, %v828
  %v934 = vsel %vm382, %v564, %v829
  %v935 = vsel %vm383, %v467, %v732
  %v936 = vsel %vm377, %v565, %v830
  %v937 = vsel %vm378, %v566, %v831
  %v938 = vsel %vm379, %v567, %v832
  %v939 = vsel %vm380, %v568, %v833
  %v940 = vsel %vm381, %v569, %v834
  %v941 = vsel %vm382, %v570, %v835
  %v942 = vsel %vm383, %v481, %v746
  %v943 = vsel %vm377, %v571, %v836
  %v944 = vsel %vm378, %v572, %v837
  %v945 = vsel %vm379, %v573, %v838
  %v946 = vsel %vm380, %v574, %v839
  %v947 = vsel %vm381, %v575, %v840
  %v948 = vsel %vm382, %v576, %v841
  %v949 = vsel %vm383, %v495, %v760
  %v950 = vsel %vm377, %v577, %v842
  %v951 = vsel %vm378, %v578, %v843
  %v952 = vsel %vm379, %v579, %v844
  %v953 = vsel %vm380, %v580, %v845
  %v954 = vsel %vm381, %v581, %v846
  %v955 = vsel %vm382, %v582, %v847
  %v956 = vsel %vm383, %v509, %v774
  %v957 = vsel %vm377, %v583, %v848
  %v958 = vsel %vm378, %v584, %v849
  %v959 = vsel %vm379, %v585, %v850
  %v960 = vsel %vm380, %v586, %v851
  %v961 = vsel %vm381, %v587, %v852
  %v962 = vsel %vm382, %v588, %v853
  %v963 = vsel %vm383, %v523, %v788
  %v964 = vsel %vm377, %v589, %v854
  %v965 = vsel %vm378, %v590, %v855
  %v966 = vsel %vm379, %v591, %v856
  %v967 = vsel %vm380, %v592, %v857
  %v968 = vsel %vm381, %v593, %v858
  %v969 = vsel %vm382, %v594, %v859
  %v970 = vsel %vm383, %v537, %v802
  %v971 = vsel %vm377, %v595, %v860
  %v972 = vsel %vm378, %v596, %v861
  %v973 = vsel %vm379, %v597, %v862
  %v974 = vsel %vm380, %v598, %v863
  %v975 = vsel %vm381, %v599, %v864
  %v976 = vsel %vm382, %v600, %v865
  %v977 = vsel %vm383, %v551, %v816
  %978 = vrot.lane.b32.xlu0 %v922, 16
  %v979 = vpop.permute.xlu0 %978
  %980 = vrot.lane.b32.xlu0 %v929, 16
  %v981 = vpop.permute.xlu0 %980
  %982 = vrot.lane.b32.xlu0 %v936, 16
  %v983 = vpop.permute.xlu0 %982
  %984 = vrot.lane.b32.xlu0 %v943, 16
  %v985 = vpop.permute.xlu0 %984
  %986 = vrot.lane.b32.xlu0 %v950, 16
  %v987 = vpop.permute.xlu0 %986
  %988 = vrot.lane.b32.xlu0 %v957, 16
  %v989 = vpop.permute.xlu0 %988
  %990 = vrot.lane.b32.xlu0 %v964, 16
  %v991 = vpop.permute.xlu0 %990
  %992 = vrot.lane.b32.xlu0 %v971, 16
  %v993 = vpop.permute.xlu0 %992
  %994 = vrot.lane.b32.xlu0 %v923, 16
  %v995 = vpop.permute.xlu0 %994
  %996 = vrot.lane.b32.xlu0 %v930, 16
  %v997 = vpop.permute.xlu0 %996
  %998 = vrot.lane.b32.xlu0 %v937, 16
  %v999 = vpop.permute.xlu0 %998
  %1000 = vrot.lane.b32.xlu0 %v944, 16
  %v1001 = vpop.permute.xlu0 %1000
  %1002 = vrot.lane.b32.xlu0 %v951, 16
  %v1003 = vpop.permute.xlu0 %1002
  %1004 = vrot.lane.b32.xlu0 %v958, 16
  %v1005 = vpop.permute.xlu0 %1004
  %1006 = vrot.lane.b32.xlu0 %v965, 16
  %v1007 = vpop.permute.xlu0 %1006
  %1008 = vrot.lane.b32.xlu0 %v972, 16
  %v1009 = vpop.permute.xlu0 %1008
  %1010 = vrot.lane.b32.xlu0 %v924, 16
  %v1011 = vpop.permute.xlu0 %1010
  %1012 = vrot.lane.b32.xlu0 %v931, 16
  %v1013 = vpop.permute.xlu0 %1012
  %1014 = vrot.lane.b32.xlu0 %v938, 16
  %v1015 = vpop.permute.xlu0 %1014
  %1016 = vrot.lane.b32.xlu0 %v945, 16
  %v1017 = vpop.permute.xlu0 %1016
  %1018 = vrot.lane.b32.xlu0 %v952, 16
  %v1019 = vpop.permute.xlu0 %1018
  %1020 = vrot.lane.b32.xlu0 %v959, 16
  %v1021 = vpop.permute.xlu0 %1020
  %1022 = vrot.lane.b32.xlu0 %v966, 16
  %v1023 = vpop.permute.xlu0 %1022
  %1024 = vrot.lane.b32.xlu0 %v973, 16
  %v1025 = vpop.permute.xlu0 %1024
  %1026 = vrot.lane.b32.xlu0 %v925, 16
  %v1027 = vpop.permute.xlu0 %1026
  %1028 = vrot.lane.b32.xlu0 %v932, 16
  %v1029 = vpop.permute.xlu0 %1028
  %1030 = vrot.lane.b32.xlu0 %v939, 16
  %v1031 = vpop.permute.xlu0 %1030
  %1032 = vrot.lane.b32.xlu0 %v946, 16
  %v1033 = vpop.permute.xlu0 %1032
  %1034 = vrot.lane.b32.xlu0 %v953, 16
  %v1035 = vpop.permute.xlu0 %1034
  %1036 = vrot.lane.b32.xlu0 %v960, 16
  %v1037 = vpop.permute.xlu0 %1036
  %1038 = vrot.lane.b32.xlu0 %v967, 16
  %v1039 = vpop.permute.xlu0 %1038
  %1040 = vrot.lane.b32.xlu0 %v974, 16
  %v1041 = vpop.permute.xlu0 %1040
  %1042 = vrot.lane.b32.xlu0 %v926, 16
  %v1043 = vpop.permute.xlu0 %1042
  %1044 = vrot.lane.b32.xlu0 %v933, 16
  %v1045 = vpop.permute.xlu0 %1044
  %1046 = vrot.lane.b32.xlu0 %v940, 16
  %v1047 = vpop.permute.xlu0 %1046
  %1048 = vrot.lane.b32.xlu0 %v947, 16
  %v1049 = vpop.permute.xlu0 %1048
  %1050 = vrot.lane.b32.xlu0 %v954, 16
  %v1051 = vpop.permute.xlu0 %1050
  %1052 = vrot.lane.b32.xlu0 %v961, 16
  %v1053 = vpop.permute.xlu0 %1052
  %1054 = vrot.lane.b32.xlu0 %v968, 16
  %v1055 = vpop.permute.xlu0 %1054
  %1056 = vrot.lane.b32.xlu0 %v975, 16
  %v1057 = vpop.permute.xlu0 %1056
  %1058 = vrot.lane.b32.xlu0 %v927, 16
  %v1059 = vpop.permute.xlu0 %1058
  %1060 = vrot.lane.b32.xlu0 %v934, 16
  %v1061 = vpop.permute.xlu0 %1060
  %1062 = vrot.lane.b32.xlu0 %v941, 16
  %v1063 = vpop.permute.xlu0 %1062
  %1064 = vrot.lane.b32.xlu0 %v948, 16
  %v1065 = vpop.permute.xlu0 %1064
  %1066 = vrot.lane.b32.xlu0 %v955, 16
  %v1067 = vpop.permute.xlu0 %1066
  %1068 = vrot.lane.b32.xlu0 %v962, 16
  %v1069 = vpop.permute.xlu0 %1068
  %1070 = vrot.lane.b32.xlu0 %v969, 16
  %v1071 = vpop.permute.xlu0 %1070
  %1072 = vrot.lane.b32.xlu0 %v976, 16
  %v1073 = vpop.permute.xlu0 %1072
  %v1074 = vsel %vm208, %v979, %v928
  %v1075 = vsel %vm208, %v981, %v935
  %v1076 = vsel %vm208, %v983, %v942
  %v1077 = vsel %vm208, %v985, %v949
  %v1078 = vsel %vm208, %v987, %v956
  %v1079 = vsel %vm208, %v989, %v963
  %v1080 = vsel %vm208, %v991, %v970
  %v1081 = vsel %vm208, %v993, %v977
  %v1082 = vsel %vm208, %v995, %v979
  %v1083 = vsel %vm208, %v997, %v981
  %v1084 = vsel %vm208, %v999, %v983
  %v1085 = vsel %vm208, %v1001, %v985
  %v1086 = vsel %vm208, %v1003, %v987
  %v1087 = vsel %vm208, %v1005, %v989
  %v1088 = vsel %vm208, %v1007, %v991
  %v1089 = vsel %vm208, %v1009, %v993
  %v1090 = vsel %vm208, %v1011, %v995
  %v1091 = vsel %vm208, %v1013, %v997
  %v1092 = vsel %vm208, %v1015, %v999
  %v1093 = vsel %vm208, %v1017, %v1001
  %v1094 = vsel %vm208, %v1019, %v1003
  %v1095 = vsel %vm208, %v1021, %v1005
  %v1096 = vsel %vm208, %v1023, %v1007
  %v1097 = vsel %vm208, %v1025, %v1009
  %v1098 = vsel %vm208, %v1027, %v1011
  %v1099 = vsel %vm208, %v1029, %v1013
  %v1100 = vsel %vm208, %v1031, %v1015
  %v1101 = vsel %vm208, %v1033, %v1017
  %v1102 = vsel %vm208, %v1035, %v1019
  %v1103 = vsel %vm208, %v1037, %v1021
  %v1104 = vsel %vm208, %v1039, %v1023
  %v1105 = vsel %vm208, %v1041, %v1025
  %v1106 = vsel %vm208, %v1043, %v1027
  %v1107 = vsel %vm208, %v1045, %v1029
  %v1108 = vsel %vm208, %v1047, %v1031
  %v1109 = vsel %vm208, %v1049, %v1033
  %v1110 = vsel %vm208, %v1051, %v1035
  %v1111 = vsel %vm208, %v1053, %v1037
  %v1112 = vsel %vm208, %v1055, %v1039
  %v1113 = vsel %vm208, %v1057, %v1041
  %v1114 = vsel %vm208, %v1059, %v1043
  %v1115 = vsel %vm208, %v1061, %v1045
  %v1116 = vsel %vm208, %v1063, %v1047
  %v1117 = vsel %vm208, %v1065, %v1049
  %v1118 = vsel %vm208, %v1067, %v1051
  %v1119 = vsel %vm208, %v1069, %v1053
  %v1120 = vsel %vm208, %v1071, %v1055
  %v1121 = vsel %vm208, %v1073, %v1057
  %vm1122 = vcmp.lt.s32.totalorder %v68, 56
  %vm1123 = vcmp.lt.s32.totalorder %v69, 56
  %vm1124 = vcmp.lt.s32.totalorder %v70, 56
  %vm1125 = vcmp.lt.s32.totalorder %v71, 56
  %vm1126 = vcmp.lt.s32.totalorder %v72, 56
  %vm1127 = vcmp.lt.s32.totalorder %v73, 56
  %vm1128 = vcmp.lt.s32.totalorder %v74, 56
  %1185 = vrot.lane.b32.xlu0 %v927, 96
  %v1186 = vpop.permute.xlu0 %1185
  %1187 = vrot.lane.b32.xlu0 %v1074, 96
  %v1188 = vpop.permute.xlu0 %1187
  %1189 = vrot.lane.b32.xlu0 %v1082, 96
  %v1190 = vpop.permute.xlu0 %1189
  %1191 = vrot.lane.b32.xlu0 %v1090, 96
  %v1192 = vpop.permute.xlu0 %1191
  %1193 = vrot.lane.b32.xlu0 %v1098, 96
  %v1194 = vpop.permute.xlu0 %1193
  %1195 = vrot.lane.b32.xlu0 %v1106, 96
  %v1196 = vpop.permute.xlu0 %1195
  %1197 = vrot.lane.b32.xlu0 %v1114, 96
  %v1198 = vpop.permute.xlu0 %1197
  %1199 = vrot.lane.b32.xlu0 %v934, 96
  %v1200 = vpop.permute.xlu0 %1199
  %1201 = vrot.lane.b32.xlu0 %v1075, 96
  %v1202 = vpop.permute.xlu0 %1201
  %1203 = vrot.lane.b32.xlu0 %v1083, 96
  %v1204 = vpop.permute.xlu0 %1203
  %1205 = vrot.lane.b32.xlu0 %v1091, 96
  %v1206 = vpop.permute.xlu0 %1205
  %1207 = vrot.lane.b32.xlu0 %v1099, 96
  %v1208 = vpop.permute.xlu0 %1207
  %1209 = vrot.lane.b32.xlu0 %v1107, 96
  %v1210 = vpop.permute.xlu0 %1209
  %1211 = vrot.lane.b32.xlu0 %v1115, 96
  %v1212 = vpop.permute.xlu0 %1211
  %1213 = vrot.lane.b32.xlu0 %v941, 96
  %v1214 = vpop.permute.xlu0 %1213
  %1215 = vrot.lane.b32.xlu0 %v1076, 96
  %v1216 = vpop.permute.xlu0 %1215
  %1217 = vrot.lane.b32.xlu0 %v1084, 96
  %v1218 = vpop.permute.xlu0 %1217
  %1219 = vrot.lane.b32.xlu0 %v1092, 96
  %v1220 = vpop.permute.xlu0 %1219
  %1221 = vrot.lane.b32.xlu0 %v1100, 96
  %v1222 = vpop.permute.xlu0 %1221
  %1223 = vrot.lane.b32.xlu0 %v1108, 96
  %v1224 = vpop.permute.xlu0 %1223
  %1225 = vrot.lane.b32.xlu0 %v1116, 96
  %v1226 = vpop.permute.xlu0 %1225
  %1227 = vrot.lane.b32.xlu0 %v948, 96
  %v1228 = vpop.permute.xlu0 %1227
  %1229 = vrot.lane.b32.xlu0 %v1077, 96
  %v1230 = vpop.permute.xlu0 %1229
  %1231 = vrot.lane.b32.xlu0 %v1085, 96
  %v1232 = vpop.permute.xlu0 %1231
  %1233 = vrot.lane.b32.xlu0 %v1093, 96
  %v1234 = vpop.permute.xlu0 %1233
  %1235 = vrot.lane.b32.xlu0 %v1101, 96
  %v1236 = vpop.permute.xlu0 %1235
  %1237 = vrot.lane.b32.xlu0 %v1109, 96
  %v1238 = vpop.permute.xlu0 %1237
  %1239 = vrot.lane.b32.xlu0 %v1117, 96
  %v1240 = vpop.permute.xlu0 %1239
  %1241 = vrot.lane.b32.xlu0 %v955, 96
  %v1242 = vpop.permute.xlu0 %1241
  %1243 = vrot.lane.b32.xlu0 %v1078, 96
  %v1244 = vpop.permute.xlu0 %1243
  %1245 = vrot.lane.b32.xlu0 %v1086, 96
  %v1246 = vpop.permute.xlu0 %1245
  %1247 = vrot.lane.b32.xlu0 %v1094, 96
  %v1248 = vpop.permute.xlu0 %1247
  %1249 = vrot.lane.b32.xlu0 %v1102, 96
  %v1250 = vpop.permute.xlu0 %1249
  %1251 = vrot.lane.b32.xlu0 %v1110, 96
  %v1252 = vpop.permute.xlu0 %1251
  %1253 = vrot.lane.b32.xlu0 %v1118, 96
  %v1254 = vpop.permute.xlu0 %1253
  %1255 = vrot.lane.b32.xlu0 %v962, 96
  %v1256 = vpop.permute.xlu0 %1255
  %1257 = vrot.lane.b32.xlu0 %v1079, 96
  %v1258 = vpop.permute.xlu0 %1257
  %1259 = vrot.lane.b32.xlu0 %v1087, 96
  %v1260 = vpop.permute.xlu0 %1259
  %1261 = vrot.lane.b32.xlu0 %v1095, 96
  %v1262 = vpop.permute.xlu0 %1261
  %1263 = vrot.lane.b32.xlu0 %v1103, 96
  %v1264 = vpop.permute.xlu0 %1263
  %1265 = vrot.lane.b32.xlu0 %v1111, 96
  %v1266 = vpop.permute.xlu0 %1265
  %1267 = vrot.lane.b32.xlu0 %v1119, 96
  %v1268 = vpop.permute.xlu0 %1267
  %1269 = vrot.lane.b32.xlu0 %v969, 96
  %v1270 = vpop.permute.xlu0 %1269
  %1271 = vrot.lane.b32.xlu0 %v1080, 96
  %v1272 = vpop.permute.xlu0 %1271
  %1273 = vrot.lane.b32.xlu0 %v1088, 96
  %v1274 = vpop.permute.xlu0 %1273
  %1275 = vrot.lane.b32.xlu0 %v1096, 96
  %v1276 = vpop.permute.xlu0 %1275
  %1277 = vrot.lane.b32.xlu0 %v1104, 96
  %v1278 = vpop.permute.xlu0 %1277
  %1279 = vrot.lane.b32.xlu0 %v1112, 96
  %v1280 = vpop.permute.xlu0 %1279
  %1281 = vrot.lane.b32.xlu0 %v1120, 96
  %v1282 = vpop.permute.xlu0 %1281
  %1283 = vrot.lane.b32.xlu0 %v976, 96
  %v1284 = vpop.permute.xlu0 %1283
  %1285 = vrot.lane.b32.xlu0 %v1081, 96
  %v1286 = vpop.permute.xlu0 %1285
  %1287 = vrot.lane.b32.xlu0 %v1089, 96
  %v1288 = vpop.permute.xlu0 %1287
  %1289 = vrot.lane.b32.xlu0 %v1097, 96
  %v1290 = vpop.permute.xlu0 %1289
  %1291 = vrot.lane.b32.xlu0 %v1105, 96
  %v1292 = vpop.permute.xlu0 %1291
  %1293 = vrot.lane.b32.xlu0 %v1113, 96
  %v1294 = vpop.permute.xlu0 %1293
  %1295 = vrot.lane.b32.xlu0 %v1121, 96
  %v1296 = vpop.permute.xlu0 %1295
  %vm1297 = vcmask 785408
  %v1298 = vsel %vm1297, %v1186, %v1188
  %v1299 = vsel %vm1297, %v1188, %v1190
  %v1300 = vsel %vm1297, %v1190, %v1192
  %v1301 = vsel %vm1297, %v1192, %v1194
  %v1302 = vsel %vm1297, %v1194, %v1196
  %v1303 = vsel %vm1297, %v1196, %v1198
  %v1304 = vsel %vm1297, %v1200, %v1202
  %v1305 = vsel %vm1297, %v1202, %v1204
  %v1306 = vsel %vm1297, %v1204, %v1206
  %v1307 = vsel %vm1297, %v1206, %v1208
  %v1308 = vsel %vm1297, %v1208, %v1210
  %v1309 = vsel %vm1297, %v1210, %v1212
  %v1310 = vsel %vm1297, %v1214, %v1216
  %v1311 = vsel %vm1297, %v1216, %v1218
  %v1312 = vsel %vm1297, %v1218, %v1220
  %v1313 = vsel %vm1297, %v1220, %v1222
  %v1314 = vsel %vm1297, %v1222, %v1224
  %v1315 = vsel %vm1297, %v1224, %v1226
  %v1316 = vsel %vm1297, %v1228, %v1230
  %v1317 = vsel %vm1297, %v1230, %v1232
  %v1318 = vsel %vm1297, %v1232, %v1234
  %v1319 = vsel %vm1297, %v1234, %v1236
  %v1320 = vsel %vm1297, %v1236, %v1238
  %v1321 = vsel %vm1297, %v1238, %v1240
  %v1322 = vsel %vm1297, %v1242, %v1244
  %v1323 = vsel %vm1297, %v1244, %v1246
  %v1324 = vsel %vm1297, %v1246, %v1248
  %v1325 = vsel %vm1297, %v1248, %v1250
  %v1326 = vsel %vm1297, %v1250, %v1252
  %v1327 = vsel %vm1297, %v1252, %v1254
  %v1328 = vsel %vm1297, %v1256, %v1258
  %v1329 = vsel %vm1297, %v1258, %v1260
  %v1330 = vsel %vm1297, %v1260, %v1262
  %v1331 = vsel %vm1297, %v1262, %v1264
  %v1332 = vsel %vm1297, %v1264, %v1266
  %v1333 = vsel %vm1297, %v1266, %v1268
  %v1334 = vsel %vm1297, %v1270, %v1272
  %v1335 = vsel %vm1297, %v1272, %v1274
  %v1336 = vsel %vm1297, %v1274, %v1276
  %v1337 = vsel %vm1297, %v1276, %v1278
  %v1338 = vsel %vm1297, %v1278, %v1280
  %v1339 = vsel %vm1297, %v1280, %v1282
  %v1340 = vsel %vm1297, %v1284, %v1286
  %v1341 = vsel %vm1297, %v1286, %v1288
  %v1342 = vsel %vm1297, %v1288, %v1290
  %v1343 = vsel %vm1297, %v1290, %v1292
  %v1344 = vsel %vm1297, %v1292, %v1294
  %v1345 = vsel %vm1297, %v1294, %v1296
  %v1402 = vsel %vm1122, 0.0, %v1298
  %v1403 = vsel %vm1123, 0.0, %v1299
  %v1404 = vsel %vm1124, 0.0, %v1300
  %v1405 = vsel %vm1125, 0.0, %v1301
  %v1406 = vsel %vm1126, 0.0, %v1302
  %v1407 = vsel %vm1127, 0.0, %v1303
  %v1408 = vsel %vm1128, 0.0, %v1198
  %v1409 = vsel %vm1122, 0.0, %v1304
  %v1410 = vsel %vm1123, 0.0, %v1305
  %v1411 = vsel %vm1124, 0.0, %v1306
  %v1412 = vsel %vm1125, 0.0, %v1307
  %v1413 = vsel %vm1126, 0.0, %v1308
  %v1414 = vsel %vm1127, 0.0, %v1309
  %v1415 = vsel %vm1128, 0.0, %v1212
  %v1416 = vsel %vm1122, 0.0, %v1310
  %v1417 = vsel %vm1123, 0.0, %v1311
  %v1418 = vsel %vm1124, 0.0, %v1312
  %v1419 = vsel %vm1125, 0.0, %v1313
  %v1420 = vsel %vm1126, 0.0, %v1314
  %v1421 = vsel %vm1127, 0.0, %v1315
  %v1422 = vsel %vm1128, 0.0, %v1226
  %v1423 = vsel %vm1122, 0.0, %v1316
  %v1424 = vsel %vm1123, 0.0, %v1317
  %v1425 = vsel %vm1124, 0.0, %v1318
  %v1426 = vsel %vm1125, 0.0, %v1319
  %v1427 = vsel %vm1126, 0.0, %v1320
  %v1428 = vsel %vm1127, 0.0, %v1321
  %v1429 = vsel %vm1128, 0.0, %v1240
  %v1430 = vsel %vm1122, 0.0, %v1322
  %v1431 = vsel %vm1123, 0.0, %v1323
  %v1432 = vsel %vm1124, 0.0, %v1324
  %v1433 = vsel %vm1125, 0.0, %v1325
  %v1434 = vsel %vm1126, 0.0, %v1326
  %v1435 = vsel %vm1127, 0.0, %v1327
  %v1436 = vsel %vm1128, 0.0, %v1254
  %v1437 = vsel %vm1122, 0.0, %v1328
  %v1438 = vsel %vm1123, 0.0, %v1329
  %v1439 = vsel %vm1124, 0.0, %v1330
  %v1440 = vsel %vm1125, 0.0, %v1331
  %v1441 = vsel %vm1126, 0.0, %v1332
  %v1442 = vsel %vm1127, 0.0, %v1333
  %v1443 = vsel %vm1128, 0.0, %v1268
  %v1444 = vsel %vm1122, 0.0, %v1334
  %v1445 = vsel %vm1123, 0.0, %v1335
  %v1446 = vsel %vm1124, 0.0, %v1336
  %v1447 = vsel %vm1125, 0.0, %v1337
  %v1448 = vsel %vm1126, 0.0, %v1338
  %v1449 = vsel %vm1127, 0.0, %v1339
  %v1450 = vsel %vm1128, 0.0, %v1282
  %v1451 = vsel %vm1122, 0.0, %v1340
  %v1452 = vsel %vm1123, 0.0, %v1341
  %v1453 = vsel %vm1124, 0.0, %v1342
  %v1454 = vsel %vm1125, 0.0, %v1343
  %v1455 = vsel %vm1126, 0.0, %v1344
  %v1456 = vsel %vm1127, 0.0, %v1345
  %v1457 = vsel %vm1128, 0.0, %v1296
  %1458 = vst [vmem:[#allocation2] sm:$0xff] %v1402
  %1459 = vst [vmem:[#allocation2 + $0x8] sm:$0xff] %v1403
  %1460 = vst [vmem:[#allocation2 + $0x10] sm:$0xff] %v1404
  %1461 = vst [vmem:[#allocation2 + $0x18] sm:$0xff] %v1405
  %1462 = vst [vmem:[#allocation2 + $0x20] sm:$0xff] %v1406
  %1463 = vst [vmem:[#allocation2 + $0x28] sm:$0xff] %v1407
  %vm1464 = vcmask 130048
  %1465 = vst.msk [vmem:[#allocation2 + $0x30] sm:$0xff] %vm1464, %v1408
  %1466 = vst [vmem:[#allocation2 + $0x38] sm:$0xff] %v1409
  %1467 = vst [vmem:[#allocation2 + $0x40] sm:$0xff] %v1410
  %1468 = vst [vmem:[#allocation2 + $0x48] sm:$0xff] %v1411
  %1469 = vst [vmem:[#allocation2 + $0x50] sm:$0xff] %v1412
  %1470 = vst [vmem:[#allocation2 + $0x58] sm:$0xff] %v1413
  %1471 = vst [vmem:[#allocation2 + $0x60] sm:$0xff] %v1414
  %1472 = vst.msk [vmem:[#allocation2 + $0x68] sm:$0xff] %vm1464, %v1415
  %1473 = vst [vmem:[#allocation2 + $0x70] sm:$0xff] %v1416
  %1474 = vst [vmem:[#allocation2 + $0x78] sm:$0xff] %v1417
  %1475 = vst [vmem:[#allocation2 + $0x80] sm:$0xff] %v1418
  %1476 = vst [vmem:[#allocation2 + $0x88] sm:$0xff] %v1419
  %1477 = vst [vmem:[#allocation2 + $0x90] sm:$0xff] %v1420
  %1478 = vst [vmem:[#allocation2 + $0x98] sm:$0xff] %v1421
  %1479 = vst.msk [vmem:[#allocation2 + $0xa0] sm:$0xff] %vm1464, %v1422
  %1480 = vst [vmem:[#allocation2 + $0xa8] sm:$0xff] %v1423
  %1481 = vst [vmem:[#allocation2 + $0xb0] sm:$0xff] %v1424
  %1482 = vst [vmem:[#allocation2 + $0xb8] sm:$0xff] %v1425
  %1483 = vst [vmem:[#allocation2 + $0xc0] sm:$0xff] %v1426
  %1484 = vst [vmem:[#allocation2 + $0xc8] sm:$0xff] %v1427
  %1485 = vst [vmem:[#allocation2 + $0xd0] sm:$0xff] %v1428
  %1486 = vst.msk [vmem:[#allocation2 + $0xd8] sm:$0xff] %vm1464, %v1429
  %1487 = vst [vmem:[#allocation2 + $0xe0] sm:$0xff] %v1430
  %1488 = vst [vmem:[#allocation2 + $0xe8] sm:$0xff] %v1431
  %1489 = vst [vmem:[#allocation2 + $0xf0] sm:$0xff] %v1432
  %1490 = vst [vmem:[#allocation2 + $0xf8] sm:$0xff] %v1433
  %1491 = vst [vmem:[#allocation2 + $0x100] sm:$0xff] %v1434
  %1492 = vst [vmem:[#allocation2 + $0x108] sm:$0xff] %v1435
  %1493 = vst.msk [vmem:[#allocation2 + $0x110] sm:$0xff] %vm1464, %v1436
  %1494 = vst [vmem:[#allocation2 + $0x118] sm:$0xff] %v1437
  %1495 = vst [vmem:[#allocation2 + $0x120] sm:$0xff] %v1438
  %1496 = vst [vmem:[#allocation2 + $0x128] sm:$0xff] %v1439
  %1497 = vst [vmem:[#allocation2 + $0x130] sm:$0xff] %v1440
  %1498 = vst [vmem:[#allocation2 + $0x138] sm:$0xff] %v1441
  %1499 = vst [vmem:[#allocation2 + $0x140] sm:$0xff] %v1442
  %1500 = vst.msk [vmem:[#allocation2 + $0x148] sm:$0xff] %vm1464, %v1443
  %1501 = vst [vmem:[#allocation2 + $0x150] sm:$0xff] %v1444
  %1502 = vst [vmem:[#allocation2 + $0x158] sm:$0xff] %v1445
  %1503 = vst [vmem:[#allocation2 + $0x160] sm:$0xff] %v1446
  %1504 = vst [vmem:[#allocation2 + $0x168] sm:$0xff] %v1447
  %1505 = vst [vmem:[#allocation2 + $0x170] sm:$0xff] %v1448
  %1506 = vst [vmem:[#allocation2 + $0x178] sm:$0xff] %v1449
  %1507 = vst.msk [vmem:[#allocation2 + $0x180] sm:$0xff] %vm1464, %v1450
  %1508 = vst [vmem:[#allocation2 + $0x188] sm:$0xff] %v1451
  %1509 = vst [vmem:[#allocation2 + $0x190] sm:$0xff] %v1452
  %1510 = vst [vmem:[#allocation2 + $0x198] sm:$0xff] %v1453
  %1511 = vst [vmem:[#allocation2 + $0x1a0] sm:$0xff] %v1454
  %1512 = vst [vmem:[#allocation2 + $0x1a8] sm:$0xff] %v1455
  %1513 = vst [vmem:[#allocation2 + $0x1b0] sm:$0xff] %v1456
  %1514 = vst.msk [vmem:[#allocation2 + $0x1b8] sm:$0xff] %vm1464, %v1457
  %1515 = vrot.lane.b32.xlu0 %v927, 40
  %v1516 = vpop.permute.xlu0 %1515
  %1517 = vrot.lane.b32.xlu0 %v1074, 40
  %v1518 = vpop.permute.xlu0 %1517
  %1519 = vrot.lane.b32.xlu0 %v1082, 40
  %v1520 = vpop.permute.xlu0 %1519
  %1521 = vrot.lane.b32.xlu0 %v1090, 40
  %v1522 = vpop.permute.xlu0 %1521
  %1523 = vrot.lane.b32.xlu0 %v1098, 40
  %v1524 = vpop.permute.xlu0 %1523
  %1525 = vrot.lane.b32.xlu0 %v1106, 40
  %v1526 = vpop.permute.xlu0 %1525
  %1527 = vrot.lane.b32.xlu0 %v1114, 40
  %v1528 = vpop.permute.xlu0 %1527
  %1529 = vrot.lane.b32.xlu0 %v934, 40
  %v1530 = vpop.permute.xlu0 %1529
  %1531 = vrot.lane.b32.xlu0 %v1075, 40
  %v1532 = vpop.permute.xlu0 %1531
  %1533 = vrot.lane.b32.xlu0 %v1083, 40
  %v1534 = vpop.permute.xlu0 %1533
  %1535 = vrot.lane.b32.xlu0 %v1091, 40
  %v1536 = vpop.permute.xlu0 %1535
  %1537 = vrot.lane.b32.xlu0 %v1099, 40
  %v1538 = vpop.permute.xlu0 %1537
  %1539 = vrot.lane.b32.xlu0 %v1107, 40
  %v1540 = vpop.permute.xlu0 %1539
  %1541 = vrot.lane.b32.xlu0 %v1115, 40
  %v1542 = vpop.permute.xlu0 %1541
  %1543 = vrot.lane.b32.xlu0 %v941, 40
  %v1544 = vpop.permute.xlu0 %1543
  %1545 = vrot.lane.b32.xlu0 %v1076, 40
  %v1546 = vpop.permute.xlu0 %1545
  %1547 = vrot.lane.b32.xlu0 %v1084, 40
  %v1548 = vpop.permute.xlu0 %1547
  %1549 = vrot.lane.b32.xlu0 %v1092, 40
  %v1550 = vpop.permute.xlu0 %1549
  %1551 = vrot.lane.b32.xlu0 %v1100, 40
  %v1552 = vpop.permute.xlu0 %1551
  %1553 = vrot.lane.b32.xlu0 %v1108, 40
  %v1554 = vpop.permute.xlu0 %1553
  %1555 = vrot.lane.b32.xlu0 %v1116, 40
  %v1556 = vpop.permute.xlu0 %1555
  %1557 = vrot.lane.b32.xlu0 %v948, 40
  %v1558 = vpop.permute.xlu0 %1557
  %1559 = vrot.lane.b32.xlu0 %v1077, 40
  %v1560 = vpop.permute.xlu0 %1559
  %1561 = vrot.lane.b32.xlu0 %v1085, 40
  %v1562 = vpop.permute.xlu0 %1561
  %1563 = vrot.lane.b32.xlu0 %v1093, 40
  %v1564 = vpop.permute.xlu0 %1563
  %1565 = vrot.lane.b32.xlu0 %v1101, 40
  %v1566 = vpop.permute.xlu0 %1565
  %1567 = vrot.lane.b32.xlu0 %v1109, 40
  %v1568 = vpop.permute.xlu0 %1567
  %1569 = vrot.lane.b32.xlu0 %v1117, 40
  %v1570 = vpop.permute.xlu0 %1569
  %1571 = vrot.lane.b32.xlu0 %v955, 40
  %v1572 = vpop.permute.xlu0 %1571
  %1573 = vrot.lane.b32.xlu0 %v1078, 40
  %v1574 = vpop.permute.xlu0 %1573
  %1575 = vrot.lane.b32.xlu0 %v1086, 40
  %v1576 = vpop.permute.xlu0 %1575
  %1577 = vrot.lane.b32.xlu0 %v1094, 40
  %v1578 = vpop.permute.xlu0 %1577
  %1579 = vrot.lane.b32.xlu0 %v1102, 40
  %v1580 = vpop.permute.xlu0 %1579
  %1581 = vrot.lane.b32.xlu0 %v1110, 40
  %v1582 = vpop.permute.xlu0 %1581
  %1583 = vrot.lane.b32.xlu0 %v1118, 40
  %v1584 = vpop.permute.xlu0 %1583
  %1585 = vrot.lane.b32.xlu0 %v962, 40
  %v1586 = vpop.permute.xlu0 %1585
  %1587 = vrot.lane.b32.xlu0 %v1079, 40
  %v1588 = vpop.permute.xlu0 %1587
  %1589 = vrot.lane.b32.xlu0 %v1087, 40
  %v1590 = vpop.permute.xlu0 %1589
  %1591 = vrot.lane.b32.xlu0 %v1095, 40
  %v1592 = vpop.permute.xlu0 %1591
  %1593 = vrot.lane.b32.xlu0 %v1103, 40
  %v1594 = vpop.permute.xlu0 %1593
  %1595 = vrot.lane.b32.xlu0 %v1111, 40
  %v1596 = vpop.permute.xlu0 %1595
  %1597 = vrot.lane.b32.xlu0 %v1119, 40
  %v1598 = vpop.permute.xlu0 %1597
  %1599 = vrot.lane.b32.xlu0 %v969, 40
  %v1600 = vpop.permute.xlu0 %1599
  %1601 = vrot.lane.b32.xlu0 %v1080, 40
  %v1602 = vpop.permute.xlu0 %1601
  %1603 = vrot.lane.b32.xlu0 %v1088, 40
  %v1604 = vpop.permute.xlu0 %1603
  %1605 = vrot.lane.b32.xlu0 %v1096, 40
  %v1606 = vpop.permute.xlu0 %1605
  %1607 = vrot.lane.b32.xlu0 %v1104, 40
  %v1608 = vpop.permute.xlu0 %1607
  %1609 = vrot.lane.b32.xlu0 %v1112, 40
  %v1610 = vpop.permute.xlu0 %1609
  %1611 = vrot.lane.b32.xlu0 %v1120, 40
  %v1612 = vpop.permute.xlu0 %1611
  %1613 = vrot.lane.b32.xlu0 %v976, 40
  %v1614 = vpop.permute.xlu0 %1613
  %1615 = vrot.lane.b32.xlu0 %v1081, 40
  %v1616 = vpop.permute.xlu0 %1615
  %1617 = vrot.lane.b32.xlu0 %v1089, 40
  %v1618 = vpop.permute.xlu0 %1617
  %1619 = vrot.lane.b32.xlu0 %v1097, 40
  %v1620 = vpop.permute.xlu0 %1619
  %1621 = vrot.lane.b32.xlu0 %v1105, 40
  %v1622 = vpop.permute.xlu0 %1621
  %1623 = vrot.lane.b32.xlu0 %v1113, 40
  %v1624 = vpop.permute.xlu0 %1623
  %1625 = vrot.lane.b32.xlu0 %v1121, 40
  %v1626 = vpop.permute.xlu0 %1625
  %vm1627 = vcmask 326656
  %v1628 = vsel %vm1627, %v1516, %v1518
  %v1629 = vsel %vm1627, %v1518, %v1520
  %v1630 = vsel %vm1627, %v1520, %v1522
  %v1631 = vsel %vm1627, %v1522, %v1524
  %v1632 = vsel %vm1627, %v1524, %v1526
  %v1633 = vsel %vm1627, %v1526, %v1528
  %v1634 = vsel %vm1627, %v1530, %v1532
  %v1635 = vsel %vm1627, %v1532, %v1534
  %v1636 = vsel %vm1627, %v1534, %v1536
  %v1637 = vsel %vm1627, %v1536, %v1538
  %v1638 = vsel %vm1627, %v1538, %v1540
  %v1639 = vsel %vm1627, %v1540, %v1542
  %v1640 = vsel %vm1627, %v1544, %v1546
  %v1641 = vsel %vm1627, %v1546, %v1548
  %v1642 = vsel %vm1627, %v1548, %v1550
  %v1643 = vsel %vm1627, %v1550, %v1552
  %v1644 = vsel %vm1627, %v1552, %v1554
  %v1645 = vsel %vm1627, %v1554, %v1556
  %v1646 = vsel %vm1627, %v1558, %v1560
  %v1647 = vsel %vm1627, %v1560, %v1562
  %v1648 = vsel %vm1627, %v1562, %v1564
  %v1649 = vsel %vm1627, %v1564, %v1566
  %v1650 = vsel %vm1627, %v1566, %v1568
  %v1651 = vsel %vm1627, %v1568, %v1570
  %v1652 = vsel %vm1627, %v1572, %v1574
  %v1653 = vsel %vm1627, %v1574, %v1576
  %v1654 = vsel %vm1627, %v1576, %v1578
  %v1655 = vsel %vm1627, %v1578, %v1580
  %v1656 = vsel %vm1627, %v1580, %v1582
  %v1657 = vsel %vm1627, %v1582, %v1584
  %v1658 = vsel %vm1627, %v1586, %v1588
  %v1659 = vsel %vm1627, %v1588, %v1590
  %v1660 = vsel %vm1627, %v1590, %v1592
  %v1661 = vsel %vm1627, %v1592, %v1594
  %v1662 = vsel %vm1627, %v1594, %v1596
  %v1663 = vsel %vm1627, %v1596, %v1598
  %v1664 = vsel %vm1627, %v1600, %v1602
  %v1665 = vsel %vm1627, %v1602, %v1604
  %v1666 = vsel %vm1627, %v1604, %v1606
  %v1667 = vsel %vm1627, %v1606, %v1608
  %v1668 = vsel %vm1627, %v1608, %v1610
  %v1669 = vsel %vm1627, %v1610, %v1612
  %v1670 = vsel %vm1627, %v1614, %v1616
  %v1671 = vsel %vm1627, %v1616, %v1618
  %v1672 = vsel %vm1627, %v1618, %v1620
  %v1673 = vsel %vm1627, %v1620, %v1622
  %v1674 = vsel %vm1627, %v1622, %v1624
  %v1675 = vsel %vm1627, %v1624, %v1626
  %1732 = vst [vmem:[#allocation2 + $0x1c0] sm:$0xff] %v1628
  %1733 = vst [vmem:[#allocation2 + $0x1c8] sm:$0xff] %v1629
  %1734 = vst [vmem:[#allocation2 + $0x1d0] sm:$0xff] %v1630
  %1735 = vst [vmem:[#allocation2 + $0x1d8] sm:$0xff] %v1631
  %1736 = vst [vmem:[#allocation2 + $0x1e0] sm:$0xff] %v1632
  %1737 = vst [vmem:[#allocation2 + $0x1e8] sm:$0xff] %v1633
  %1738 = vst.msk [vmem:[#allocation2 + $0x1f0] sm:$0xff] %vm1464, %v1528
  %1739 = vst [vmem:[#allocation2 + $0x1f8] sm:$0xff] %v1634
  %1740 = vst [vmem:[#allocation2 + $0x200] sm:$0xff] %v1635
  %1741 = vst [vmem:[#allocation2 + $0x208] sm:$0xff] %v1636
  %1742 = vst [vmem:[#allocation2 + $0x210] sm:$0xff] %v1637
  %1743 = vst [vmem:[#allocation2 + $0x218] sm:$0xff] %v1638
  %1744 = vst [vmem:[#allocation2 + $0x220] sm:$0xff] %v1639
  %1745 = vst.msk [vmem:[#allocation2 + $0x228] sm:$0xff] %vm1464, %v1542
  %1746 = vst [vmem:[#allocation2 + $0x230] sm:$0xff] %v1640
  %1747 = vst [vmem:[#allocation2 + $0x238] sm:$0xff] %v1641
  %1748 = vst [vmem:[#allocation2 + $0x240] sm:$0xff] %v1642
  %1749 = vst [vmem:[#allocation2 + $0x248] sm:$0xff] %v1643
  %1750 = vst [vmem:[#allocation2 + $0x250] sm:$0xff] %v1644
  %1751 = vst [vmem:[#allocation2 + $0x258] sm:$0xff] %v1645
  %1752 = vst.msk [vmem:[#allocation2 + $0x260] sm:$0xff] %vm1464, %v1556
  %1753 = vst [vmem:[#allocation2 + $0x268] sm:$0xff] %v1646
  %1754 = vst [vmem:[#allocation2 + $0x270] sm:$0xff] %v1647
  %1755 = vst [vmem:[#allocation2 + $0x278] sm:$0xff] %v1648
  %1756 = vst [vmem:[#allocation2 + $0x280] sm:$0xff] %v1649
  %1757 = vst [vmem:[#allocation2 + $0x288] sm:$0xff] %v1650
  %1758 = vst [vmem:[#allocation2 + $0x290] sm:$0xff] %v1651
  %1759 = vst.msk [vmem:[#allocation2 + $0x298] sm:$0xff] %vm1464, %v1570
  %1760 = vst [vmem:[#allocation2 + $0x2a0] sm:$0xff] %v1652
  %1761 = vst [vmem:[#allocation2 + $0x2a8] sm:$0xff] %v1653
  %1762 = vst [vmem:[#allocation2 + $0x2b0] sm:$0xff] %v1654
  %1763 = vst [vmem:[#allocation2 + $0x2b8] sm:$0xff] %v1655
  %1764 = vst [vmem:[#allocation2 + $0x2c0] sm:$0xff] %v1656
  %1765 = vst [vmem:[#allocation2 + $0x2c8] sm:$0xff] %v1657
  %1766 = vst.msk [vmem:[#allocation2 + $0x2d0] sm:$0xff] %vm1464, %v1584
  %1767 = vst [vmem:[#allocation2 + $0x2d8] sm:$0xff] %v1658
  %1768 = vst [vmem:[#allocation2 + $0x2e0] sm:$0xff] %v1659
  %1769 = vst [vmem:[#allocation2 + $0x2e8] sm:$0xff] %v1660
  %1770 = vst [vmem:[#allocation2 + $0x2f0] sm:$0xff] %v1661
  %1771 = vst [vmem:[#allocation2 + $0x2f8] sm:$0xff] %v1662
  %1772 = vst [vmem:[#allocation2 + $0x300] sm:$0xff] %v1663
  %1773 = vst.msk [vmem:[#allocation2 + $0x308] sm:$0xff] %vm1464, %v1598
  %1774 = vst [vmem:[#allocation2 + $0x310] sm:$0xff] %v1664
  %1775 = vst [vmem:[#allocation2 + $0x318] sm:$0xff] %v1665
  %1776 = vst [vmem:[#allocation2 + $0x320] sm:$0xff] %v1666
  %1777 = vst [vmem:[#allocation2 + $0x328] sm:$0xff] %v1667
  %1778 = vst [vmem:[#allocation2 + $0x330] sm:$0xff] %v1668
  %1779 = vst [vmem:[#allocation2 + $0x338] sm:$0xff] %v1669
  %1780 = vst.msk [vmem:[#allocation2 + $0x340] sm:$0xff] %vm1464, %v1612
  %1781 = vst [vmem:[#allocation2 + $0x348] sm:$0xff] %v1670
  %1782 = vst [vmem:[#allocation2 + $0x350] sm:$0xff] %v1671
  %1783 = vst [vmem:[#allocation2 + $0x358] sm:$0xff] %v1672
  %1784 = vst [vmem:[#allocation2 + $0x360] sm:$0xff] %v1673
  %1785 = vst [vmem:[#allocation2 + $0x368] sm:$0xff] %v1674
  %1786 = vst [vmem:[#allocation2 + $0x370] sm:$0xff] %v1675
  %1787 = vst.msk [vmem:[#allocation2 + $0x378] sm:$0xff] %vm1464, %v1626
  %vm1788 = vcmp.ge.s32.totalorder %v68, 728
  %vm1789 = vcmp.ge.s32.totalorder %v69, 728
  %vm1790 = vcmp.ge.s32.totalorder %v70, 728
  %vm1791 = vcmp.ge.s32.totalorder %v71, 728
  %vm1792 = vcmp.ge.s32.totalorder %v72, 728
  %vm1793 = vcmp.ge.s32.totalorder %v73, 728
  %vm1794 = vcmp.ge.s32.totalorder %v74, 728
  %v1795 = vsel %vm1788, 0.0, %v922
  %v1796 = vsel %vm1789, 0.0, %v923
  %v1797 = vsel %vm1790, 0.0, %v924
  %v1798 = vsel %vm1791, 0.0, %v925
  %v1799 = vsel %vm1792, 0.0, %v926
  %v1800 = vsel %vm1793, 0.0, %v927
  %v1801 = vsel %vm1794, 0.0, %v928
  %v1802 = vsel %vm1788, 0.0, %v929
  %v1803 = vsel %vm1789, 0.0, %v930
  %v1804 = vsel %vm1790, 0.0, %v931
  %v1805 = vsel %vm1791, 0.0, %v932
  %v1806 = vsel %vm1792, 0.0, %v933
  %v1807 = vsel %vm1793, 0.0, %v934
  %v1808 = vsel %vm1794, 0.0, %v935
  %v1809 = vsel %vm1788, 0.0, %v936
  %v1810 = vsel %vm1789, 0.0, %v937
  %v1811 = vsel %vm1790, 0.0, %v938
  %v1812 = vsel %vm1791, 0.0, %v939
  %v1813 = vsel %vm1792, 0.0, %v940
  %v1814 = vsel %vm1793, 0.0, %v941
  %v1815 = vsel %vm1794, 0.0, %v942
  %v1816 = vsel %vm1788, 0.0, %v943
  %v1817 = vsel %vm1789, 0.0, %v944
  %v1818 = vsel %vm1790, 0.0, %v945
  %v1819 = vsel %vm1791, 0.0, %v946
  %v1820 = vsel %vm1792, 0.0, %v947
  %v1821 = vsel %vm1793, 0.0, %v948
  %v1822 = vsel %vm1794, 0.0, %v949
  %v1823 = vsel %vm1788, 0.0, %v950
  %v1824 = vsel %vm1789, 0.0, %v951
  %v1825 = vsel %vm1790, 0.0, %v952
  %v1826 = vsel %vm1791, 0.0, %v953
  %v1827 = vsel %vm1792, 0.0, %v954
  %v1828 = vsel %vm1793, 0.0, %v955
  %v1829 = vsel %vm1794, 0.0, %v956
  %v1830 = vsel %vm1788, 0.0, %v957
  %v1831 = vsel %vm1789, 0.0, %v958
  %v1832 = vsel %vm1790, 0.0, %v959
  %v1833 = vsel %vm1791, 0.0, %v960
  %v1834 = vsel %vm1792, 0.0, %v961
  %v1835 = vsel %vm1793, 0.0, %v962
  %v1836 = vsel %vm1794, 0.0, %v963
  %v1837 = vsel %vm1788, 0.0, %v964
  %v1838 = vsel %vm1789, 0.0, %v965
  %v1839 = vsel %vm1790, 0.0, %v966
  %v1840 = vsel %vm1791, 0.0, %v967
  %v1841 = vsel %vm1792, 0.0, %v968
  %v1842 = vsel %vm1793, 0.0, %v969
  %v1843 = vsel %vm1794, 0.0, %v970
  %v1844 = vsel %vm1788, 0.0, %v971
  %v1845 = vsel %vm1789, 0.0, %v972
  %v1846 = vsel %vm1790, 0.0, %v973
  %v1847 = vsel %vm1791, 0.0, %v974
  %v1848 = vsel %vm1792, 0.0, %v975
  %v1849 = vsel %vm1793, 0.0, %v976
  %v1850 = vsel %vm1794, 0.0, %v977
  %1851 = vst [vmem:[#allocation2 + $0x380] sm:$0xff] %v1795
  %1852 = vst [vmem:[#allocation2 + $0x388] sm:$0xff] %v1796
  %1853 = vst [vmem:[#allocation2 + $0x390] sm:$0xff] %v1797
  %1854 = vst [vmem:[#allocation2 + $0x398] sm:$0xff] %v1798
  %1855 = vst [vmem:[#allocation2 + $0x3a0] sm:$0xff] %v1799
  %1856 = vst [vmem:[#allocation2 + $0x3a8] sm:$0xff] %v1800
  %1857 = vst.msk [vmem:[#allocation2 + $0x3b0] sm:$0xff] %vm1464, %v1801
  %1858 = vst [vmem:[#allocation2 + $0x3b8] sm:$0xff] %v1802
  %1859 = vst [vmem:[#allocation2 + $0x3c0] sm:$0xff] %v1803
  %1860 = vst [vmem:[#allocation2 + $0x3c8] sm:$0xff] %v1804
  %1861 = vst [vmem:[#allocation2 + $0x3d0] sm:$0xff] %v1805
  %1862 = vst [vmem:[#allocation2 + $0x3d8] sm:$0xff] %v1806
  %1863 = vst [vmem:[#allocation2 + $0x3e0] sm:$0xff] %v1807
  %1864 = vst.msk [vmem:[#allocation2 + $0x3e8] sm:$0xff] %vm1464, %v1808
  %1865 = vst [vmem:[#allocation2 + $0x3f0] sm:$0xff] %v1809
  %1866 = vst [vmem:[#allocation2 + $0x3f8] sm:$0xff] %v1810
  %1867 = vst [vmem:[#allocation2 + $0x400] sm:$0xff] %v1811
  %1868 = vst [vmem:[#allocation2 + $0x408] sm:$0xff] %v1812
  %1869 = vst [vmem:[#allocation2 + $0x410] sm:$0xff] %v1813
  %1870 = vst [vmem:[#allocation2 + $0x418] sm:$0xff] %v1814
  %1871 = vst.msk [vmem:[#allocation2 + $0x420] sm:$0xff] %vm1464, %v1815
  %1872 = vst [vmem:[#allocation2 + $0x428] sm:$0xff] %v1816
  %1873 = vst [vmem:[#allocation2 + $0x430] sm:$0xff] %v1817
  %1874 = vst [vmem:[#allocation2 + $0x438] sm:$0xff] %v1818
  %1875 = vst [vmem:[#allocation2 + $0x440] sm:$0xff] %v1819
  %1876 = vst [vmem:[#allocation2 + $0x448] sm:$0xff] %v1820
  %1877 = vst [vmem:[#allocation2 + $0x450] sm:$0xff] %v1821
  %1878 = vst.msk [vmem:[#allocation2 + $0x458] sm:$0xff] %vm1464, %v1822
  %1879 = vst [vmem:[#allocation2 + $0x460] sm:$0xff] %v1823
  %1880 = vst [vmem:[#allocation2 + $0x468] sm:$0xff] %v1824
  %1881 = vst [vmem:[#allocation2 + $0x470] sm:$0xff] %v1825
  %1882 = vst [vmem:[#allocation2 + $0x478] sm:$0xff] %v1826
  %1883 = vst [vmem:[#allocation2 + $0x480] sm:$0xff] %v1827
  %1884 = vst [vmem:[#allocation2 + $0x488] sm:$0xff] %v1828
  %1885 = vst.msk [vmem:[#allocation2 + $0x490] sm:$0xff] %vm1464, %v1829
  %1886 = vst [vmem:[#allocation2 + $0x498] sm:$0xff] %v1830
  %1887 = vst [vmem:[#allocation2 + $0x4a0] sm:$0xff] %v1831
  %1888 = vst [vmem:[#allocation2 + $0x4a8] sm:$0xff] %v1832
  %1889 = vst [vmem:[#allocation2 + $0x4b0] sm:$0xff] %v1833
  %1890 = vst [vmem:[#allocation2 + $0x4b8] sm:$0xff] %v1834
  %1891 = vst [vmem:[#allocation2 + $0x4c0] sm:$0xff] %v1835
  %1892 = vst.msk [vmem:[#allocation2 + $0x4c8] sm:$0xff] %vm1464, %v1836
  %1893 = vst [vmem:[#allocation2 + $0x4d0] sm:$0xff] %v1837
  %1894 = vst [vmem:[#allocation2 + $0x4d8] sm:$0xff] %v1838
  %1895 = vst [vmem:[#allocation2 + $0x4e0] sm:$0xff] %v1839
  %1896 = vst [vmem:[#allocation2 + $0x4e8] sm:$0xff] %v1840
  %1897 = vst [vmem:[#allocation2 + $0x4f0] sm:$0xff] %v1841
  %1898 = vst [vmem:[#allocation2 + $0x4f8] sm:$0xff] %v1842
  %1899 = vst.msk [vmem:[#allocation2 + $0x500] sm:$0xff] %vm1464, %v1843
  %1900 = vst [vmem:[#allocation2 + $0x508] sm:$0xff] %v1844
  %1901 = vst [vmem:[#allocation2 + $0x510] sm:$0xff] %v1845
  %1902 = vst [vmem:[#allocation2 + $0x518] sm:$0xff] %v1846
  %1903 = vst [vmem:[#allocation2 + $0x520] sm:$0xff] %v1847
  %1904 = vst [vmem:[#allocation2 + $0x528] sm:$0xff] %v1848
  %1905 = vst [vmem:[#allocation2 + $0x530] sm:$0xff] %v1849
  %1906 = vst.msk [vmem:[#allocation2 + $0x538] sm:$0xff] %vm1464, %v1850
  %v1907 = vld [vmem:[%s1] sm:$0xff]
  %v1908 = vld [vmem:[%s1 + $0x8] sm:$0xff]
  %v1909 = vld [vmem:[%s1 + $0x10] sm:$0xff]
  %v1910 = vld [vmem:[%s1 + $0x18] sm:$0xff]
  %v1911 = vld [vmem:[%s1 + $0x20] sm:$0xff]
  %v1912 = vld [vmem:[%s1 + $0x28] sm:$0xff]
  %v1913 = vld [vmem:[%s1 + $0x30] sm:$0xff]
  %v1914 = vld [vmem:[%s1 + $0x38] sm:$0xff]
  %v1915 = vld [vmem:[%s1 + $0x40] sm:$0xff]
  %v1916 = vld [vmem:[%s1 + $0x48] sm:$0xff]
  %v1917 = vld [vmem:[%s1 + $0x50] sm:$0xff]
  %v1918 = vld [vmem:[%s1 + $0x58] sm:$0xff]
  %v1919 = vld [vmem:[%s1 + $0x60] sm:$0xff]
  %v1920 = vld [vmem:[%s1 + $0x68] sm:$0xff]
  %v1921 = vld [vmem:[%s1 + $0x70] sm:$0xff]
  %v1922 = vld [vmem:[%s1 + $0x78] sm:$0xff]
  %v1923 = vld [vmem:[%s1 + $0x80] sm:$0xff]
  %v1924 = vld [vmem:[%s1 + $0x88] sm:$0xff]
  %v1925 = vld [vmem:[%s1 + $0x90] sm:$0xff]
  %v1926 = vld [vmem:[%s1 + $0x98] sm:$0xff]
  %v1927 = vld [vmem:[%s1 + $0xa0] sm:$0xff]
  %v1928 = vld [vmem:[%s1 + $0xa8] sm:$0xff]
  %v1929 = vld [vmem:[%s1 + $0xb0] sm:$0xff]
  %v1930 = vld [vmem:[%s1 + $0xb8] sm:$0xff]
  %v1931 = vld [vmem:[%s1 + $0xc0] sm:$0xff]
  %v1932 = vld [vmem:[%s1 + $0xc8] sm:$0xff]
  %v1933 = vld [vmem:[%s1 + $0xd0] sm:$0xff]
  %v1934 = vld [vmem:[%s1 + $0xd8] sm:$0xff]
  %v1935 = vld [vmem:[%s1 + $0xe0] sm:$0xff]
  %v1936 = vld [vmem:[%s1 + $0xe8] sm:$0xff]
  %v1937 = vld [vmem:[%s1 + $0xf0] sm:$0xff]
  %v1938 = vld [vmem:[%s1 + $0xf8] sm:$0xff]
  %v1939 = vld [vmem:[%s1 + $0x100] sm:$0xff]
  %v1940 = vld [vmem:[%s1 + $0x108] sm:$0xff]
  %v1941 = vld [vmem:[%s1 + $0x110] sm:$0xff]
  %v1942 = vld [vmem:[%s1 + $0x118] sm:$0xff]
  %v1943 = vld [vmem:[%s1 + $0x120] sm:$0xff]
  %v1944 = vld [vmem:[%s1 + $0x128] sm:$0xff]
  %v1945 = vld [vmem:[%s1 + $0x130] sm:$0xff]
  %v1946 = vld [vmem:[%s1 + $0x138] sm:$0xff]
  %v1947 = vld [vmem:[%s1 + $0x140] sm:$0xff]
  %v1948 = vld [vmem:[%s1 + $0x148] sm:$0xff]
  %v1949 = vld [vmem:[%s1 + $0x150] sm:$0xff]
  %v1950 = vld [vmem:[%s1 + $0x158] sm:$0xff]
  %v1951 = vld [vmem:[%s1 + $0x160] sm:$0xff]
  %v1952 = vld [vmem:[%s1 + $0x168] sm:$0xff]
  %v1953 = vld [vmem:[%s1 + $0x170] sm:$0xff]
  %v1954 = vld [vmem:[%s1 + $0x178] sm:$0xff]
  %v1955 = vld [vmem:[%s1 + $0x180] sm:$0xff]
  %v1956 = vld [vmem:[%s1 + $0x188] sm:$0xff]
  %v1957 = vld [vmem:[%s1 + $0x190] sm:$0xff]
  %v1958 = vld [vmem:[%s1 + $0x198] sm:$0xff]
  %v1959 = vld [vmem:[%s1 + $0x1a0] sm:$0xff]
  %v1960 = vld [vmem:[%s1 + $0x1a8] sm:$0xff]
  %v1961 = vld [vmem:[%s1 + $0x1b0] sm:$0xff]
  %v1962 = vld [vmem:[%s1 + $0x1b8] sm:$0xff]
  %v1963 = vld [vmem:[%s1 + $0x1c0] sm:$0xff]
  %v1964 = vld [vmem:[%s1 + $0x1c8] sm:$0xff]
  %v1965 = vld [vmem:[%s1 + $0x1d0] sm:$0xff]
  %v1966 = vld [vmem:[%s1 + $0x1d8] sm:$0xff]
  %v1967 = vld [vmem:[%s1 + $0x1e0] sm:$0xff]
  %v1968 = vld [vmem:[%s1 + $0x1e8] sm:$0xff]
  %v1969 = vld [vmem:[%s1 + $0x1f0] sm:$0xff]
  %v1970 = vld [vmem:[%s1 + $0x1f8] sm:$0xff]
  %v1971 = vld [vmem:[#allocation2] sm:$0xff]
  %v1972 = vld [vmem:[#allocation2 + $0x8] sm:$0xff]
  %v1973 = vld [vmem:[#allocation2 + $0x10] sm:$0xff]
  %v1974 = vld [vmem:[#allocation2 + $0x18] sm:$0xff]
  %v1975 = vld [vmem:[#allocation2 + $0x20] sm:$0xff]
  %v1976 = vld [vmem:[#allocation2 + $0x28] sm:$0xff]
  %v1977 = vld [vmem:[#allocation2 + $0x30] sm:$0xff]
  %v1978 = vld [vmem:[#allocation2 + $0x38] sm:$0xff]
  %v1979 = vld [vmem:[#allocation2 + $0x40] sm:$0xff]
  %v1980 = vld [vmem:[#allocation2 + $0x48] sm:$0xff]
  %v1981 = vld [vmem:[#allocation2 + $0x50] sm:$0xff]
  %v1982 = vld [vmem:[#allocation2 + $0x58] sm:$0xff]
  %v1983 = vld [vmem:[#allocation2 + $0x60] sm:$0xff]
  %v1984 = vld [vmem:[#allocation2 + $0x68] sm:$0xff]
  %v1985 = vld [vmem:[#allocation2 + $0x70] sm:$0xff]
  %v1986 = vld [vmem:[#allocation2 + $0x78] sm:$0xff]
  %v1987 = vld [vmem:[#allocation2 + $0x80] sm:$0xff]
  %v1988 = vld [vmem:[#allocation2 + $0x88] sm:$0xff]
  %v1989 = vld [vmem:[#allocation2 + $0x90] sm:$0xff]
  %v1990 = vld [vmem:[#allocation2 + $0x98] sm:$0xff]
  %v1991 = vld [vmem:[#allocation2 + $0xa0] sm:$0xff]
  %v1992 = vld [vmem:[#allocation2 + $0xa8] sm:$0xff]
  %v1993 = vld [vmem:[#allocation2 + $0xb0] sm:$0xff]
  %v1994 = vld [vmem:[#allocation2 + $0xb8] sm:$0xff]
  %v1995 = vld [vmem:[#allocation2 + $0xc0] sm:$0xff]
  %v1996 = vld [vmem:[#allocation2 + $0xc8] sm:$0xff]
  %v1997 = vld [vmem:[#allocation2 + $0xd0] sm:$0xff]
  %v1998 = vld [vmem:[#allocation2 + $0xd8] sm:$0xff]
  %v1999 = vld [vmem:[#allocation2 + $0xe0] sm:$0xff]
  %v2000 = vld [vmem:[#allocation2 + $0xe8] sm:$0xff]
  %v2001 = vld [vmem:[#allocation2 + $0xf0] sm:$0xff]
  %v2002 = vld [vmem:[#allocation2 + $0xf8] sm:$0xff]
  %v2003 = vld [vmem:[#allocation2 + $0x100] sm:$0xff]
  %v2004 = vld [vmem:[#allocation2 + $0x108] sm:$0xff]
  %v2005 = vld [vmem:[#allocation2 + $0x110] sm:$0xff]
  %v2006 = vld [vmem:[#allocation2 + $0x118] sm:$0xff]
  %v2007 = vld [vmem:[#allocation2 + $0x120] sm:$0xff]
  %v2008 = vld [vmem:[#allocation2 + $0x128] sm:$0xff]
  %v2009 = vld [vmem:[#allocation2 + $0x130] sm:$0xff]
  %v2010 = vld [vmem:[#allocation2 + $0x138] sm:$0xff]
  %v2011 = vld [vmem:[#allocation2 + $0x140] sm:$0xff]
  %v2012 = vld [vmem:[#allocation2 + $0x148] sm:$0xff]
  %v2013 = vld [vmem:[#allocation2 + $0x150] sm:$0xff]
  %v2014 = vld [vmem:[#allocation2 + $0x158] sm:$0xff]
  %v2015 = vld [vmem:[#allocation2 + $0x160] sm:$0xff]
  %v2016 = vld [vmem:[#allocation2 + $0x168] sm:$0xff]
  %v2017 = vld [vmem:[#allocation2 + $0x170] sm:$0xff]
  %v2018 = vld [vmem:[#allocation2 + $0x178] sm:$0xff]
  %v2019 = vld [vmem:[#allocation2 + $0x180] sm:$0xff]
  %v2020 = vld [vmem:[#allocation2 + $0x188] sm:$0xff]
  %v2021 = vld [vmem:[#allocation2 + $0x190] sm:$0xff]
  %v2022 = vld [vmem:[#allocation2 + $0x198] sm:$0xff]
  %v2023 = vld [vmem:[#allocation2 + $0x1a0] sm:$0xff]
  %v2024 = vld [vmem:[#allocation2 + $0x1a8] sm:$0xff]
  %v2025 = vld [vmem:[#allocation2 + $0x1b0] sm:$0xff]
  %v2026 = vld [vmem:[#allocation2 + $0x1b8] sm:$0xff]
  %v2027 = vld [vmem:[#allocation2 + $0x1c0] sm:$0xff]
  %v2028 = vld [vmem:[#allocation2 + $0x1c8] sm:$0xff]
  %v2029 = vld [vmem:[#allocation2 + $0x1d0] sm:$0xff]
  %v2030 = vld [vmem:[#allocation2 + $0x1d8] sm:$0xff]
  %v2031 = vld [vmem:[#allocation2 + $0x1e0] sm:$0xff]
  %v2032 = vld [vmem:[#allocation2 + $0x1e8] sm:$0xff]
  %v2033 = vld [vmem:[#allocation2 + $0x1f0] sm:$0xff]
  %v2034 = vld [vmem:[#allocation2 + $0x1f8] sm:$0xff]
  %v2035 = vld [vmem:[#allocation2 + $0x200] sm:$0xff]
  %v2036 = vld [vmem:[#allocation2 + $0x208] sm:$0xff]
  %v2037 = vld [vmem:[#allocation2 + $0x210] sm:$0xff]
  %v2038 = vld [vmem:[#allocation2 + $0x218] sm:$0xff]
  %v2039 = vld [vmem:[#allocation2 + $0x220] sm:$0xff]
  %v2040 = vld [vmem:[#allocation2 + $0x228] sm:$0xff]
  %v2041 = vld [vmem:[#allocation2 + $0x230] sm:$0xff]
  %v2042 = vld [vmem:[#allocation2 + $0x238] sm:$0xff]
  %v2043 = vld [vmem:[#allocation2 + $0x240] sm:$0xff]
  %v2044 = vld [vmem:[#allocation2 + $0x248] sm:$0xff]
  %v2045 = vld [vmem:[#allocation2 + $0x250] sm:$0xff]
  %v2046 = vld [vmem:[#allocation2 + $0x258] sm:$0xff]
  %v2047 = vld [vmem:[#allocation2 + $0x260] sm:$0xff]
  %v2048 = vld [vmem:[#allocation2 + $0x268] sm:$0xff]
  %v2049 = vld [vmem:[#allocation2 + $0x270] sm:$0xff]
  %v2050 = vld [vmem:[#allocation2 + $0x278] sm:$0xff]
  %v2051 = vld [vmem:[#allocation2 + $0x280] sm:$0xff]
  %v2052 = vld [vmem:[#allocation2 + $0x288] sm:$0xff]
  %v2053 = vld [vmem:[#allocation2 + $0x290] sm:$0xff]
  %v2054 = vld [vmem:[#allocation2 + $0x298] sm:$0xff]
  %v2055 = vld [vmem:[#allocation2 + $0x2a0] sm:$0xff]
  %v2056 = vld [vmem:[#allocation2 + $0x2a8] sm:$0xff]
  %v2057 = vld [vmem:[#allocation2 + $0x2b0] sm:$0xff]
  %v2058 = vld [vmem:[#allocation2 + $0x2b8] sm:$0xff]
  %v2059 = vld [vmem:[#allocation2 + $0x2c0] sm:$0xff]
  %v2060 = vld [vmem:[#allocation2 + $0x2c8] sm:$0xff]
  %v2061 = vld [vmem:[#allocation2 + $0x2d0] sm:$0xff]
  %v2062 = vld [vmem:[#allocation2 + $0x2d8] sm:$0xff]
  %v2063 = vld [vmem:[#allocation2 + $0x2e0] sm:$0xff]
  %v2064 = vld [vmem:[#allocation2 + $0x2e8] sm:$0xff]
  %v2065 = vld [vmem:[#allocation2 + $0x2f0] sm:$0xff]
  %v2066 = vld [vmem:[#allocation2 + $0x2f8] sm:$0xff]
  %v2067 = vld [vmem:[#allocation2 + $0x300] sm:$0xff]
  %v2068 = vld [vmem:[#allocation2 + $0x308] sm:$0xff]
  %v2069 = vld [vmem:[#allocation2 + $0x310] sm:$0xff]
  %v2070 = vld [vmem:[#allocation2 + $0x318] sm:$0xff]
  %v2071 = vld [vmem:[#allocation2 + $0x320] sm:$0xff]
  %v2072 = vld [vmem:[#allocation2 + $0x328] sm:$0xff]
  %v2073 = vld [vmem:[#allocation2 + $0x330] sm:$0xff]
  %v2074 = vld [vmem:[#allocation2 + $0x338] sm:$0xff]
  %v2075 = vld [vmem:[#allocation2 + $0x340] sm:$0xff]
  %v2076 = vld [vmem:[#allocation2 + $0x348] sm:$0xff]
  %v2077 = vld [vmem:[#allocation2 + $0x350] sm:$0xff]
  %v2078 = vld [vmem:[#allocation2 + $0x358] sm:$0xff]
  %v2079 = vld [vmem:[#allocation2 + $0x360] sm:$0xff]
  %v2080 = vld [vmem:[#allocation2 + $0x368] sm:$0xff]
  %v2081 = vld [vmem:[#allocation2 + $0x370] sm:$0xff]
  %v2082 = vld [vmem:[#allocation2 + $0x378] sm:$0xff]
  %v2083 = vld [vmem:[#allocation2 + $0x380] sm:$0xff]
  %v2084 = vld [vmem:[#allocation2 + $0x388] sm:$0xff]
  %v2085 = vld [vmem:[#allocation2 + $0x390] sm:$0xff]
  %v2086 = vld [vmem:[#allocation2 + $0x398] sm:$0xff]
  %v2087 = vld [vmem:[#allocation2 + $0x3a0] sm:$0xff]
  %v2088 = vld [vmem:[#allocation2 + $0x3a8] sm:$0xff]
  %v2089 = vld [vmem:[#allocation2 + $0x3b0] sm:$0xff]
  %v2090 = vld [vmem:[#allocation2 + $0x3b8] sm:$0xff]
  %v2091 = vld [vmem:[#allocation2 + $0x3c0] sm:$0xff]
  %v2092 = vld [vmem:[#allocation2 + $0x3c8] sm:$0xff]
  %v2093 = vld [vmem:[#allocation2 + $0x3d0] sm:$0xff]
  %v2094 = vld [vmem:[#allocation2 + $0x3d8] sm:$0xff]
  %v2095 = vld [vmem:[#allocation2 + $0x3e0] sm:$0xff]
  %v2096 = vld [vmem:[#allocation2 + $0x3e8] sm:$0xff]
  %v2097 = vld [vmem:[#allocation2 + $0x3f0] sm:$0xff]
  %v2098 = vld [vmem:[#allocation2 + $0x3f8] sm:$0xff]
  %v2099 = vld [vmem:[#allocation2 + $0x400] sm:$0xff]
  %v2100 = vld [vmem:[#allocation2 + $0x408] sm:$0xff]
  %v2101 = vld [vmem:[#allocation2 + $0x410] sm:$0xff]
  %v2102 = vld [vmem:[#allocation2 + $0x418] sm:$0xff]
  %v2103 = vld [vmem:[#allocation2 + $0x420] sm:$0xff]
  %v2104 = vld [vmem:[#allocation2 + $0x428] sm:$0xff]
  %v2105 = vld [vmem:[#allocation2 + $0x430] sm:$0xff]
  %v2106 = vld [vmem:[#allocation2 + $0x438] sm:$0xff]
  %v2107 = vld [vmem:[#allocation2 + $0x440] sm:$0xff]
  %v2108 = vld [vmem:[#allocation2 + $0x448] sm:$0xff]
  %v2109 = vld [vmem:[#allocation2 + $0x450] sm:$0xff]
  %v2110 = vld [vmem:[#allocation2 + $0x458] sm:$0xff]
  %v2111 = vld [vmem:[#allocation2 + $0x460] sm:$0xff]
  %v2112 = vld [vmem:[#allocation2 + $0x468] sm:$0xff]
  %v2113 = vld [vmem:[#allocation2 + $0x470] sm:$0xff]
  %v2114 = vld [vmem:[#allocation2 + $0x478] sm:$0xff]
  %v2115 = vld [vmem:[#allocation2 + $0x480] sm:$0xff]
  %v2116 = vld [vmem:[#allocation2 + $0x488] sm:$0xff]
  %v2117 = vld [vmem:[#allocation2 + $0x490] sm:$0xff]
  %v2118 = vld [vmem:[#allocation2 + $0x498] sm:$0xff]
  %v2119 = vld [vmem:[#allocation2 + $0x4a0] sm:$0xff]
  %v2120 = vld [vmem:[#allocation2 + $0x4a8] sm:$0xff]
  %v2121 = vld [vmem:[#allocation2 + $0x4b0] sm:$0xff]
  %v2122 = vld [vmem:[#allocation2 + $0x4b8] sm:$0xff]
  %v2123 = vld [vmem:[#allocation2 + $0x4c0] sm:$0xff]
  %v2124 = vld [vmem:[#allocation2 + $0x4c8] sm:$0xff]
  %v2125 = vld [vmem:[#allocation2 + $0x4d0] sm:$0xff]
  %v2126 = vld [vmem:[#allocation2 + $0x4d8] sm:$0xff]
  %v2127 = vld [vmem:[#allocation2 + $0x4e0] sm:$0xff]
  %v2128 = vld [vmem:[#allocation2 + $0x4e8] sm:$0xff]
  %v2129 = vld [vmem:[#allocation2 + $0x4f0] sm:$0xff]
  %v2130 = vld [vmem:[#allocation2 + $0x4f8] sm:$0xff]
  %v2131 = vld [vmem:[#allocation2 + $0x500] sm:$0xff]
  %v2132 = vld [vmem:[#allocation2 + $0x508] sm:$0xff]
  %v2133 = vld [vmem:[#allocation2 + $0x510] sm:$0xff]
  %v2134 = vld [vmem:[#allocation2 + $0x518] sm:$0xff]
  %v2135 = vld [vmem:[#allocation2 + $0x520] sm:$0xff]
  %v2136 = vld [vmem:[#allocation2 + $0x528] sm:$0xff]
  %v2137 = vld [vmem:[#allocation2 + $0x530] sm:$0xff]
  %v2138 = vld [vmem:[#allocation2 + $0x538] sm:$0xff]
  %vm2139 = vcmask 523264
  %v2141 = vsel %vm2139, %v1908, 0
  %v2144 = vsel %vm2139, %v1910, 0
  %v2147 = vsel %vm2139, %v1912, 0
  %v2150 = vsel %vm2139, %v1914, 0
  %v2153 = vsel %vm2139, %v1916, 0
  %v2156 = vsel %vm2139, %v1918, 0
  %v2159 = vsel %vm2139, %v1920, 0
  %v2162 = vsel %vm2139, %v1922, 0
  %v2165 = vsel %vm2139, %v1924, 0
  %v2168 = vsel %vm2139, %v1926, 0
  %v2171 = vsel %vm2139, %v1928, 0
  %v2174 = vsel %vm2139, %v1930, 0
  %v2177 = vsel %vm2139, %v1932, 0
  %v2180 = vsel %vm2139, %v1934, 0
  %v2183 = vsel %vm2139, %v1936, 0
  %v2186 = vsel %vm2139, %v1938, 0
  %v2189 = vsel %vm2139, %v1940, 0
  %v2192 = vsel %vm2139, %v1942, 0
  %v2195 = vsel %vm2139, %v1944, 0
  %v2198 = vsel %vm2139, %v1946, 0
  %v2201 = vsel %vm2139, %v1948, 0
  %v2204 = vsel %vm2139, %v1950, 0
  %v2207 = vsel %vm2139, %v1952, 0
  %v2210 = vsel %vm2139, %v1954, 0
  %v2213 = vsel %vm2139, %v1956, 0
  %v2216 = vsel %vm2139, %v1958, 0
  %v2219 = vsel %vm2139, %v1960, 0
  %v2222 = vsel %vm2139, %v1962, 0
  %v2225 = vsel %vm2139, %v1964, 0
  %v2228 = vsel %vm2139, %v1966, 0
  %v2231 = vsel %vm2139, %v1968, 0
  %v2234 = vsel %vm2139, %v1970, 0
  %2236 = vmatprep.subr.mxu0 %v1972
  %2237 = vmatpush1.msra.mxu0 %v1971
  %2238 = vmatprep.subr.mxu0 %v1979
  %2239 = vmatpush1.msra.mxu0 %v1978
  %2240 = vmatprep.subr.mxu0 %v1986
  %2241 = vmatpush1.msra.mxu0 %v1985
  %2242 = vmatprep.subr.mxu0 %v1993
  %2243 = vmatpush1.msra.mxu0 %v1992
  %2244 = vmatprep.subr.mxu0 %v2000
  %2245 = vmatpush1.msra.mxu0 %v1999
  %2246 = vmatprep.subr.mxu0 %v2007
  %2247 = vmatpush1.msra.mxu0 %v2006
  %2248 = vmatprep.subr.mxu0 %v2014
  %2249 = vmatpush1.msra.mxu0 %v2013
  %2250 = vmatprep.subr.mxu0 %v2021
  %2251 = vmatpush1.msra.mxu0 %v2020
  %2252 = vmatprep.subr.mxu0 %v2028
  %2253 = vmatpush1.msra.mxu0 %v2027
  %2254 = vmatprep.subr.mxu0 %v2035
  %2255 = vmatpush1.msra.mxu0 %v2034
  %2256 = vmatprep.subr.mxu0 %v2042
  %2257 = vmatpush1.msra.mxu0 %v2041
  %2258 = vmatprep.subr.mxu0 %v2049
  %2259 = vmatpush1.msra.mxu0 %v2048
  %2260 = vmatprep.subr.mxu0 %v2056
  %2261 = vmatpush1.msra.mxu0 %v2055
  %2262 = vmatprep.subr.mxu0 %v2063
  %2263 = vmatpush1.msra.mxu0 %v2062
  %2264 = vmatprep.subr.mxu0 %v2070
  %2265 = vmatpush1.msra.mxu0 %v2069
  %2266 = vmatprep.subr.mxu0 %v2077
  %2267 = vmatpush1.msra.mxu0 %v2076
  %2268 = vmatprep.subr.mxu0 %v2084
  %2269 = vmatpush1.msra.mxu0 %v2083
  %2270 = vmatprep.subr.mxu0 %v2091
  %2271 = vmatpush1.msra.mxu0 %v2090
  %2272 = vmatprep.subr.mxu0 %v2098
  %2273 = vmatpush1.msra.mxu0 %v2097
  %2274 = vmatprep.subr.mxu0 %v2105
  %2275 = vmatpush1.msra.mxu0 %v2104
  %2276 = vmatprep.subr.mxu0 %v2112
  %2277 = vmatpush1.msra.mxu0 %v2111
  %2278 = vmatprep.subr.mxu0 %v2119
  %2279 = vmatpush1.msra.mxu0 %v2118
  %2280 = vmatprep.subr.mxu0 %v2126
  %2281 = vmatpush1.msra.mxu0 %v2125
  %2282 = vmatprep.subr.mxu0 %v2133
  %2283 = vmatpush1.msra.mxu0 %v2132
  %2284 = vmatprep.subr.mxu0 0.0
  %2285 = vmatpush1.msra.mxu0 0.0
  %2286 = vmatprep.subr.mxu0 0.0
  %2287 = vmatpush1.msra.mxu0 0.0
  %2288 = vmatprep.subr.mxu0 0.0
  %2289 = vmatpush1.msra.mxu0 0.0
  %2290 = vmatprep.subr.mxu0 0.0
  %2291 = vmatpush1.msra.mxu0 0.0
  %2292 = vmatprep.subr.mxu0 0.0
  %2293 = vmatpush1.msra.mxu0 0.0
  %2294 = vmatprep.subr.mxu0 0.0
  %2295 = vmatpush1.msra.mxu0 0.0
  %2296 = vmatprep.subr.mxu0 0.0
  %2297 = vmatpush1.msra.mxu0 0.0
  %2298 = vmatprep.subr.mxu0 0.0
  %2299 = vmatpush1.msra.mxu0 0.0
  %2300 = vmatprep.mubr.f32.mxu0 %v2141
  %2301 = vmatmul.mubr.f32.gmra.mrb[0].mxu0 %v1907
  %v2302 = vpop.f32.mrb[0].mxu0
  %v2303 = vadd.f32 0.0, %v2302
  %v2304 = vpop.f32.mrb[0].mxu0
  %v2305 = vadd.f32 0.0, %v2304
  %2306 = vmatprep.mubr.f32.mxu0 %v2144
  %2307 = vmatmul.mubr.f32.gmra.mrb[0].mxu0 %v1909
  %v2308 = vpop.f32.mrb[0].mxu0
  %v2309 = vadd.f32 0.0, %v2308
  %v2310 = vpop.f32.mrb[0].mxu0
  %v2311 = vadd.f32 0.0, %v2310
  %2312 = vmatprep.mubr.f32.mxu0 %v2147
  %2313 = vmatmul.mubr.f32.gmra.mrb[0].mxu0 %v1911
  %v2314 = vpop.f32.mrb[0].mxu0
  %v2315 = vadd.f32 0.0, %v2314
  %v2316 = vpop.f32.mrb[0].mxu0
  %v2317 = vadd.f32 0.0, %v2316
  %2318 = vmatprep.mubr.f32.mxu0 %v2150
  %2319 = vmatmul.mubr.f32.gmra.mrb[0].mxu0 %v1913
  %v2320 = vpop.f32.mrb[0].mxu0
  %v2321 = vadd.f32 0.0, %v2320
  %v2322 = vpop.f32.mrb[0].mxu0
  %v2323 = vadd.f32 0.0, %v2322
  %2324 = vmatprep.mubr.f32.mxu0 %v2153
  %2325 = vmatmul.mubr.f32.gmra.mrb[0].mxu0 %v1915
  %v2326 = vpop.f32.mrb[0].mxu0
  %v2327 = vadd.f32 0.0, %v2326
  %v2328 = vpop.f32.mrb[0].mxu0
  %v2329 = vadd.f32 0.0, %v2328
  %2330 = vmatprep.mubr.f32.mxu0 %v2156
  %2331 = vmatmul.mubr.f32.gmra.mrb[0].mxu0 %v1917
  %v2332 = vpop.f32.mrb[0].mxu0
  %v2333 = vadd.f32 0.0, %v2332
  %v2334 = vpop.f32.mrb[0].mxu0
  %v2335 = vadd.f32 0.0, %v2334
  %2336 = vmatprep.mubr.f32.mxu0 %v2159
  %2337 = vmatmul.mubr.f32.gmra.mrb[0].mxu0 %v1919
  %v2338 = vpop.f32.mrb[0].mxu0
  %v2339 = vadd.f32 0.0, %v2338
  %v2340 = vpop.f32.mrb[0].mxu0
  %v2341 = vadd.f32 0.0, %v2340
  %2342 = vmatprep.mubr.f32.mxu0 %v2162
  %2343 = vmatmul.mubr.f32.gmra.mrb[0].mxu0 %v1921
  %v2344 = vpop.f32.mrb[0].mxu0
  %v2345 = vadd.f32 0.0, %v2344
  %v2346 = vpop.f32.mrb[0].mxu0
  %v2347 = vadd.f32 0.0, %v2346
  %2348 = vmatprep.mubr.f32.mxu0 %v2165
  %2349 = vmatmul.mubr.f32.gmra.mrb[0].mxu0 %v1923
  %v2350 = vpop.f32.mrb[0].mxu0
  %v2351 = vadd.f32 0.0, %v2350
  %v2352 = vpop.f32.mrb[0].mxu0
  %v2353 = vadd.f32 0.0, %v2352
  %2354 = vmatprep.mubr.f32.mxu0 %v2168
  %2355 = vmatmul.mubr.f32.gmra.mrb[0].mxu0 %v1925
  %v2356 = vpop.f32.mrb[0].mxu0
  %v2357 = vadd.f32 0.0, %v2356
  %v2358 = vpop.f32.mrb[0].mxu0
  %v2359 = vadd.f32 0.0, %v2358
  %2360 = vmatprep.mubr.f32.mxu0 %v2171
  %2361 = vmatmul.mubr.f32.gmra.mrb[0].mxu0 %v1927
  %v2362 = vpop.f32.mrb[0].mxu0
  %v2363 = vadd.f32 0.0, %v2362
  %v2364 = vpop.f32.mrb[0].mxu0
  %v2365 = vadd.f32 0.0, %v2364
  %2366 = vmatprep.mubr.f32.mxu0 %v2174
  %2367 = vmatmul.mubr.f32.gmra.mrb[0].mxu0 %v1929
  %v2368 = vpop.f32.mrb[0].mxu0
  %v2369 = vadd.f32 0.0, %v2368
  %v2370 = vpop.f32.mrb[0].mxu0
  %v2371 = vadd.f32 0.0, %v2370
  %2372 = vmatprep.mubr.f32.mxu0 %v2177
  %2373 = vmatmul.mubr.f32.gmra.mrb[0].mxu0 %v1931
  %v2374 = vpop.f32.mrb[0].mxu0
  %v2375 = vadd.f32 0.0, %v2374
  %v2376 = vpop.f32.mrb[0].mxu0
  %v2377 = vadd.f32 0.0, %v2376
  %2378 = vmatprep.mubr.f32.mxu0 %v2180
  %2379 = vmatmul.mubr.f32.gmra.mrb[0].mxu0 %v1933
  %v2380 = vpop.f32.mrb[0].mxu0
  %v2381 = vadd.f32 0.0, %v2380
  %v2382 = vpop.f32.mrb[0].mxu0
  %v2383 = vadd.f32 0.0, %v2382
  %2384 = vmatprep.mubr.f32.mxu0 %v2183
  %2385 = vmatmul.mubr.f32.gmra.mrb[0].mxu0 %v1935
  %v2386 = vpop.f32.mrb[0].mxu0
  %v2387 = vadd.f32 0.0, %v2386
  %v2388 = vpop.f32.mrb[0].mxu0
  %v2389 = vadd.f32 0.0, %v2388
  %2390 = vmatprep.mubr.f32.mxu0 %v2186
  %2391 = vmatmul.mubr.f32.gmra.mrb[0].mxu0 %v1937
  %v2392 = vpop.f32.mrb[0].mxu0
  %v2393 = vadd.f32 0.0, %v2392
  %v2394 = vpop.f32.mrb[0].mxu0
  %v2395 = vadd.f32 0.0, %v2394
  %2396 = vmatprep.mubr.f32.mxu0 %v2189
  %2397 = vmatmul.mubr.f32.gmra.mrb[0].mxu0 %v1939
  %v2398 = vpop.f32.mrb[0].mxu0
  %v2399 = vadd.f32 0.0, %v2398
  %v2400 = vpop.f32.mrb[0].mxu0
  %v2401 = vadd.f32 0.0, %v2400
  %2402 = vmatprep.mubr.f32.mxu0 %v2192
  %2403 = vmatmul.mubr.f32.gmra.mrb[0].mxu0 %v1941
  %v2404 = vpop.f32.mrb[0].mxu0
  %v2405 = vadd.f32 0.0, %v2404
  %v2406 = vpop.f32.mrb[0].mxu0
  %v2407 = vadd.f32 0.0, %v2406
  %2408 = vmatprep.mubr.f32.mxu0 %v2195
  %2409 = vmatmul.mubr.f32.gmra.mrb[0].mxu0 %v1943
  %v2410 = vpop.f32.mrb[0].mxu0
  %v2411 = vadd.f32 0.0, %v2410
  %v2412 = vpop.f32.mrb[0].mxu0
  %v2413 = vadd.f32 0.0, %v2412
  %2414 = vmatprep.mubr.f32.mxu0 %v2198
  %2415 = vmatmul.mubr.f32.gmra.mrb[0].mxu0 %v1945
  %v2416 = vpop.f32.mrb[0].mxu0
  %v2417 = vadd.f32 0.0, %v2416
  %v2418 = vpop.f32.mrb[0].mxu0
  %v2419 = vadd.f32 0.0, %v2418
  %2420 = vmatprep.mubr.f32.mxu0 %v2201
  %2421 = vmatmul.mubr.f32.gmra.mrb[0].mxu0 %v1947
  %v2422 = vpop.f32.mrb[0].mxu0
  %v2423 = vadd.f32 0.0, %v2422
  %v2424 = vpop.f32.mrb[0].mxu0
  %v2425 = vadd.f32 0.0, %v2424
  %2426 = vmatprep.mubr.f32.mxu0 %v2204
  %2427 = vmatmul.mubr.f32.gmra.mrb[0].mxu0 %v1949
  %v2428 = vpop.f32.mrb[0].mxu0
  %v2429 = vadd.f32 0.0, %v2428
  %v2430 = vpop.f32.mrb[0].mxu0
  %v2431 = vadd.f32 0.0, %v2430
  %2432 = vmatprep.mubr.f32.mxu0 %v2207
  %2433 = vmatmul.mubr.f32.gmra.mrb[0].mxu0 %v1951
  %v2434 = vpop.f32.mrb[0].mxu0
  %v2435 = vadd.f32 0.0, %v2434
  %v2436 = vpop.f32.mrb[0].mxu0
  %v2437 = vadd.f32 0.0, %v2436
  %2438 = vmatprep.mubr.f32.mxu0 %v2210
  %2439 = vmatmul.mubr.f32.gmra.mrb[0].mxu0 %v1953
  %v2440 = vpop.f32.mrb[0].mxu0
  %v2441 = vadd.f32 0.0, %v2440
  %v2442 = vpop.f32.mrb[0].mxu0
  %v2443 = vadd.f32 0.0, %v2442
  %2444 = vmatprep.mubr.f32.mxu0 %v2213
  %2445 = vmatmul.mubr.f32.gmra.mrb[0].mxu0 %v1955
  %v2446 = vpop.f32.mrb[0].mxu0
  %v2447 = vadd.f32 0.0, %v2446
  %v2448 = vpop.f32.mrb[0].mxu0
  %v2449 = vadd.f32 0.0, %v2448
  %2450 = vmatprep.mubr.f32.mxu0 %v2216
  %2451 = vmatmul.mubr.f32.gmra.mrb[0].mxu0 %v1957
  %v2452 = vpop.f32.mrb[0].mxu0
  %v2453 = vadd.f32 0.0, %v2452
  %v2454 = vpop.f32.mrb[0].mxu0
  %v2455 = vadd.f32 0.0, %v2454
  %2456 = vmatprep.mubr.f32.mxu0 %v2219
  %2457 = vmatmul.mubr.f32.gmra.mrb[0].mxu0 %v1959
  %v2458 = vpop.f32.mrb[0].mxu0
  %v2459 = vadd.f32 0.0, %v2458
  %v2460 = vpop.f32.mrb[0].mxu0
  %v2461 = vadd.f32 0.0, %v2460
  %2462 = vmatprep.mubr.f32.mxu0 %v2222
  %2463 = vmatmul.mubr.f32.gmra.mrb[0].mxu0 %v1961
  %v2464 = vpop.f32.mrb[0].mxu0
  %v2465 = vadd.f32 0.0, %v2464
  %v2466 = vpop.f32.mrb[0].mxu0
  %v2467 = vadd.f32 0.0, %v2466
  %2468 = vmatprep.mubr.f32.mxu0 %v2225
  %2469 = vmatmul.mubr.f32.gmra.mrb[0].mxu0 %v1963
  %v2470 = vpop.f32.mrb[0].mxu0
  %v2471 = vadd.f32 0.0, %v2470
  %v2472 = vpop.f32.mrb[0].mxu0
  %v2473 = vadd.f32 0.0, %v2472
  %2474 = vmatprep.mubr.f32.mxu0 %v2228
  %2475 = vmatmul.mubr.f32.gmra.mrb[0].mxu0 %v1965
  %v2476 = vpop.f32.mrb[0].mxu0
  %v2477 = vadd.f32 0.0, %v2476
  %v2478 = vpop.f32.mrb[0].mxu0
  %v2479 = vadd.f32 0.0, %v2478
  %2480 = vmatprep.mubr.f32.mxu0 %v2231
  %2481 = vmatmul.mubr.f32.gmra.mrb[0].mxu0 %v1967
  %v2482 = vpop.f32.mrb[0].mxu0
  %v2483 = vadd.f32 0.0, %v2482
  %v2484 = vpop.f32.mrb[0].mxu0
  %v2485 = vadd.f32 0.0, %v2484
  %2486 = vmatprep.mubr.f32.mxu0 %v2234
  %2487 = vmatmul.mubr.f32.gmra.mrb[0].mxu0 %v1969
  %v2488 = vpop.f32.mrb[0].mxu0
  %v2489 = vadd.f32 0.0, %v2488
  %v2490 = vpop.f32.mrb[0].mxu0
  %v2491 = vadd.f32 0.0, %v2490
  %2492 = vdwg.mxu0
  %2493 = vmatprep.subr.mxu0 %v1974
  %2494 = vmatpush1.msra.mxu0 %v1973
  %2495 = vmatprep.subr.mxu0 %v1981
  %2496 = vmatpush1.msra.mxu0 %v1980
  %2497 = vmatprep.subr.mxu0 %v1988
  %2498 = vmatpush1.msra.mxu0 %v1987
  %2499 = vmatprep.subr.mxu0 %v1995
  %2500 = vmatpush1.msra.mxu0 %v1994
  %2501 = vmatprep.subr.mxu0 %v2002
  %2502 = vmatpush1.msra.mxu0 %v2001
  %2503 = vmatprep.subr.mxu0 %v2009
  %2504 = vmatpush1.msra.mxu0 %v2008
  %2505 = vmatprep.subr.mxu0 %v2016
  %2506 = vmatpush1.msra.mxu0 %v2015
  %2507 = vmatprep.subr.mxu0 %v2023
  %2508 = vmatpush1.msra.mxu0 %v2022
  %2509 = vmatprep.subr.mxu0 %v2030
  %2510 = vmatpush1.msra.mxu0 %v2029
  %2511 = vmatprep.subr.mxu0 %v2037
  %2512 = vmatpush1.msra.mxu0 %v2036
  %2513 = vmatprep.subr.mxu0 %v2044
  %2514 = vmatpush1.msra.mxu0 %v2043
  %2515 = vmatprep.subr.mxu0 %v2051
  %2516 = vmatpush1.msra.mxu0 %v2050
  %2517 = vmatprep.subr.mxu0 %v2058
  %2518 = vmatpush1.msra.mxu0 %v2057
  %2519 = vmatprep.subr.mxu0 %v2065
  %2520 = vmatpush1.msra.mxu0 %v2064
  %2521 = vmatprep.subr.mxu0 %v2072
  %2522 = vmatpush1.msra.mxu0 %v2071
  %2523 = vmatprep.subr.mxu0 %v2079
  %2524 = vmatpush1.msra.mxu0 %v2078
  %2525 = vmatprep.subr.mxu0 %v2086
  %2526 = vmatpush1.msra.mxu0 %v2085
  %2527 = vmatprep.subr.mxu0 %v2093
  %2528 = vmatpush1.msra.mxu0 %v2092
  %2529 = vmatprep.subr.mxu0 %v2100
  %2530 = vmatpush1.msra.mxu0 %v2099
  %2531 = vmatprep.subr.mxu0 %v2107
  %2532 = vmatpush1.msra.mxu0 %v2106
  %2533 = vmatprep.subr.mxu0 %v2114
  %2534 = vmatpush1.msra.mxu0 %v2113
  %2535 = vmatprep.subr.mxu0 %v2121
  %2536 = vmatpush1.msra.mxu0 %v2120
  %2537 = vmatprep.subr.mxu0 %v2128
  %2538 = vmatpush1.msra.mxu0 %v2127
  %2539 = vmatprep.subr.mxu0 %v2135
  %2540 = vmatpush1.msra.mxu0 %v2134
  %2541 = vmatprep.subr.mxu0 0.0
  %2542 = vmatpush1.msra.mxu0 0.0
  %2543 = vmatprep.subr.mxu0 0.0
  %2544 = vmatpush1.msra.mxu0 0.0
  %2545 = vmatprep.subr.mxu0 0.0
  %2546 = vmatpush1.msra.mxu0 0.0
  %2547 = vmatprep.subr.mxu0 0.0
  %2548 = vmatpush1.msra.mxu0 0.0
  %2549 = vmatprep.subr.mxu0 0.0
  %2550 = vmatpush1.msra.mxu0 0.0
  %2551 = vmatprep.subr.mxu0 0.0
  %2552 = vmatpush1.msra.mxu0 0.0
  %2553 = vmatprep.subr.mxu0 0.0
  %2554 = vmatpush1.msra.mxu0 0.0
  %2555 = vmatprep.subr.mxu0 0.0
  %2556 = vmatpush1.msra.mxu0 0.0
  %2557 = vmatprep.mubr.f32.mxu0 %v2141
  %2558 = vmatmul.mubr.f32.gmra.mrb[0].mxu0 %v1907
  %v2559 = vpop.f32.mrb[0].mxu0
  %v2560 = vadd.f32 0.0, %v2559
  %v2561 = vpop.f32.mrb[0].mxu0
  %v2562 = vadd.f32 0.0, %v2561
  %2563 = vmatprep.mubr.f32.mxu0 %v2144
  %2564 = vmatmul.mubr.f32.gmra.mrb[0].mxu0 %v1909
  %v2565 = vpop.f32.mrb[0].mxu0
  %v2566 = vadd.f32 0.0, %v2565
  %v2567 = vpop.f32.mrb[0].mxu0
  %v2568 = vadd.f32 0.0, %v2567
  %2569 = vmatprep.mubr.f32.mxu0 %v2147
  %2570 = vmatmul.mubr.f32.gmra.mrb[0].mxu0 %v1911
  %v2571 = vpop.f32.mrb[0].mxu0
  %v2572 = vadd.f32 0.0, %v2571
  %v2573 = vpop.f32.mrb[0].mxu0
  %v2574 = vadd.f32 0.0, %v2573
  %2575 = vmatprep.mubr.f32.mxu0 %v2150
  %2576 = vmatmul.mubr.f32.gmra.mrb[0].mxu0 %v1913
  %v2577 = vpop.f32.mrb[0].mxu0
  %v2578 = vadd.f32 0.0, %v2577
  %v2579 = vpop.f32.mrb[0].mxu0
  %v2580 = vadd.f32 0.0, %v2579
  %2581 = vmatprep.mubr.f32.mxu0 %v2153
  %2582 = vmatmul.mubr.f32.gmra.mrb[0].mxu0 %v1915
  %v2583 = vpop.f32.mrb[0].mxu0
  %v2584 = vadd.f32 0.0, %v2583
  %v2585 = vpop.f32.mrb[0].mxu0
  %v2586 = vadd.f32 0.0, %v2585
  %2587 = vmatprep.mubr.f32.mxu0 %v2156
  %2588 = vmatmul.mubr.f32.gmra.mrb[0].mxu0 %v1917
  %v2589 = vpop.f32.mrb[0].mxu0
  %v2590 = vadd.f32 0.0, %v2589
  %v2591 = vpop.f32.mrb[0].mxu0
  %v2592 = vadd.f32 0.0, %v2591
  %2593 = vmatprep.mubr.f32.mxu0 %v2159
  %2594 = vmatmul.mubr.f32.gmra.mrb[0].mxu0 %v1919
  %v2595 = vpop.f32.mrb[0].mxu0
  %v2596 = vadd.f32 0.0, %v2595
  %v2597 = vpop.f32.mrb[0].mxu0
  %v2598 = vadd.f32 0.0, %v2597
  %2599 = vmatprep.mubr.f32.mxu0 %v2162
  %2600 = vmatmul.mubr.f32.gmra.mrb[0].mxu0 %v1921
  %v2601 = vpop.f32.mrb[0].mxu0
  %v2602 = vadd.f32 0.0, %v2601
  %v2603 = vpop.f32.mrb[0].mxu0
  %v2604 = vadd.f32 0.0, %v2603
  %2605 = vmatprep.mubr.f32.mxu0 %v2165
  %2606 = vmatmul.mubr.f32.gmra.mrb[0].mxu0 %v1923
  %v2607 = vpop.f32.mrb[0].mxu0
  %v2608 = vadd.f32 0.0, %v2607
  %v2609 = vpop.f32.mrb[0].mxu0
  %v2610 = vadd.f32 0.0, %v2609
  %2611 = vmatprep.mubr.f32.mxu0 %v2168
  %2612 = vmatmul.mubr.f32.gmra.mrb[0].mxu0 %v1925
  %v2613 = vpop.f32.mrb[0].mxu0
  %v2614 = vadd.f32 0.0, %v2613
  %v2615 = vpop.f32.mrb[0].mxu0
  %v2616 = vadd.f32 0.0, %v2615
  %2617 = vmatprep.mubr.f32.mxu0 %v2171
  %2618 = vmatmul.mubr.f32.gmra.mrb[0].mxu0 %v1927
  %v2619 = vpop.f32.mrb[0].mxu0
  %v2620 = vadd.f32 0.0, %v2619
  %v2621 = vpop.f32.mrb[0].mxu0
  %v2622 = vadd.f32 0.0, %v2621
  %2623 = vmatprep.mubr.f32.mxu0 %v2174
  %2624 = vmatmul.mubr.f32.gmra.mrb[0].mxu0 %v1929
  %v2625 = vpop.f32.mrb[0].mxu0
  %v2626 = vadd.f32 0.0, %v2625
  %v2627 = vpop.f32.mrb[0].mxu0
  %v2628 = vadd.f32 0.0, %v2627
  %2629 = vmatprep.mubr.f32.mxu0 %v2177
  %2630 = vmatmul.mubr.f32.gmra.mrb[0].mxu0 %v1931
  %v2631 = vpop.f32.mrb[0].mxu0
  %v2632 = vadd.f32 0.0, %v2631
  %v2633 = vpop.f32.mrb[0].mxu0
  %v2634 = vadd.f32 0.0, %v2633
  %2635 = vmatprep.mubr.f32.mxu0 %v2180
  %2636 = vmatmul.mubr.f32.gmra.mrb[0].mxu0 %v1933
  %v2637 = vpop.f32.mrb[0].mxu0
  %v2638 = vadd.f32 0.0, %v2637
  %v2639 = vpop.f32.mrb[0].mxu0
  %v2640 = vadd.f32 0.0, %v2639
  %2641 = vmatprep.mubr.f32.mxu0 %v2183
  %2642 = vmatmul.mubr.f32.gmra.mrb[0].mxu0 %v1935
  %v2643 = vpop.f32.mrb[0].mxu0
  %v2644 = vadd.f32 0.0, %v2643
  %v2645 = vpop.f32.mrb[0].mxu0
  %v2646 = vadd.f32 0.0, %v2645
  %2647 = vmatprep.mubr.f32.mxu0 %v2186
  %2648 = vmatmul.mubr.f32.gmra.mrb[0].mxu0 %v1937
  %v2649 = vpop.f32.mrb[0].mxu0
  %v2650 = vadd.f32 0.0, %v2649
  %v2651 = vpop.f32.mrb[0].mxu0
  %v2652 = vadd.f32 0.0, %v2651
  %2653 = vmatprep.mubr.f32.mxu0 %v2189
  %2654 = vmatmul.mubr.f32.gmra.mrb[0].mxu0 %v1939
  %v2655 = vpop.f32.mrb[0].mxu0
  %v2656 = vadd.f32 0.0, %v2655
  %v2657 = vpop.f32.mrb[0].mxu0
  %v2658 = vadd.f32 0.0, %v2657
  %2659 = vmatprep.mubr.f32.mxu0 %v2192
  %2660 = vmatmul.mubr.f32.gmra.mrb[0].mxu0 %v1941
  %v2661 = vpop.f32.mrb[0].mxu0
  %v2662 = vadd.f32 0.0, %v2661
  %v2663 = vpop.f32.mrb[0].mxu0
  %v2664 = vadd.f32 0.0, %v2663
  %2665 = vmatprep.mubr.f32.mxu0 %v2195
  %2666 = vmatmul.mubr.f32.gmra.mrb[0].mxu0 %v1943
  %v2667 = vpop.f32.mrb[0].mxu0
  %v2668 = vadd.f32 0.0, %v2667
  %v2669 = vpop.f32.mrb[0].mxu0
  %v2670 = vadd.f32 0.0, %v2669
  %2671 = vmatprep.mubr.f32.mxu0 %v2198
  %2672 = vmatmul.mubr.f32.gmra.mrb[0].mxu0 %v1945
  %v2673 = vpop.f32.mrb[0].mxu0
  %v2674 = vadd.f32 0.0, %v2673
  %v2675 = vpop.f32.mrb[0].mxu0
  %v2676 = vadd.f32 0.0, %v2675
  %2677 = vmatprep.mubr.f32.mxu0 %v2201
  %2678 = vmatmul.mubr.f32.gmra.mrb[0].mxu0 %v1947
  %v2679 = vpop.f32.mrb[0].mxu0
  %v2680 = vadd.f32 0.0, %v2679
  %v2681 = vpop.f32.mrb[0].mxu0
  %v2682 = vadd.f32 0.0, %v2681
  %2683 = vmatprep.mubr.f32.mxu0 %v2204
  %2684 = vmatmul.mubr.f32.gmra.mrb[0].mxu0 %v1949
  %v2685 = vpop.f32.mrb[0].mxu0
  %v2686 = vadd.f32 0.0, %v2685
  %v2687 = vpop.f32.mrb[0].mxu0
  %v2688 = vadd.f32 0.0, %v2687
  %2689 = vmatprep.mubr.f32.mxu0 %v2207
  %2690 = vmatmul.mubr.f32.gmra.mrb[0].mxu0 %v1951
  %v2691 = vpop.f32.mrb[0].mxu0
  %v2692 = vadd.f32 0.0, %v2691
  %v2693 = vpop.f32.mrb[0].mxu0
  %v2694 = vadd.f32 0.0, %v2693
  %2695 = vmatprep.mubr.f32.mxu0 %v2210
  %2696 = vmatmul.mubr.f32.gmra.mrb[0].mxu0 %v1953
  %v2697 = vpop.f32.mrb[0].mxu0
  %v2698 = vadd.f32 0.0, %v2697
  %v2699 = vpop.f32.mrb[0].mxu0
  %v2700 = vadd.f32 0.0, %v2699
  %2701 = vmatprep.mubr.f32.mxu0 %v2213
  %2702 = vmatmul.mubr.f32.gmra.mrb[0].mxu0 %v1955
  %v2703 = vpop.f32.mrb[0].mxu0
  %v2704 = vadd.f32 0.0, %v2703
  %v2705 = vpop.f32.mrb[0].mxu0
  %v2706 = vadd.f32 0.0, %v2705
  %2707 = vmatprep.mubr.f32.mxu0 %v2216
  %2708 = vmatmul.mubr.f32.gmra.mrb[0].mxu0 %v1957
  %v2709 = vpop.f32.mrb[0].mxu0
  %v2710 = vadd.f32 0.0, %v2709
  %v2711 = vpop.f32.mrb[0].mxu0
  %v2712 = vadd.f32 0.0, %v2711
  %2713 = vmatprep.mubr.f32.mxu0 %v2219
  %2714 = vmatmul.mubr.f32.gmra.mrb[0].mxu0 %v1959
  %v2715 = vpop.f32.mrb[0].mxu0
  %v2716 = vadd.f32 0.0, %v2715
  %v2717 = vpop.f32.mrb[0].mxu0
  %v2718 = vadd.f32 0.0, %v2717
  %2719 = vmatprep.mubr.f32.mxu0 %v2222
  %2720 = vmatmul.mubr.f32.gmra.mrb[0].mxu0 %v1961
  %v2721 = vpop.f32.mrb[0].mxu0
  %v2722 = vadd.f32 0.0, %v2721
  %v2723 = vpop.f32.mrb[0].mxu0
  %v2724 = vadd.f32 0.0, %v2723
  %2725 = vmatprep.mubr.f32.mxu0 %v2225
  %2726 = vmatmul.mubr.f32.gmra.mrb[0].mxu0 %v1963
  %v2727 = vpop.f32.mrb[0].mxu0
  %v2728 = vadd.f32 0.0, %v2727
  %v2729 = vpop.f32.mrb[0].mxu0
  %v2730 = vadd.f32 0.0, %v2729
  %2731 = vmatprep.mubr.f32.mxu0 %v2228
  %2732 = vmatmul.mubr.f32.gmra.mrb[0].mxu0 %v1965
  %v2733 = vpop.f32.mrb[0].mxu0
  %v2734 = vadd.f32 0.0, %v2733
  %v2735 = vpop.f32.mrb[0].mxu0
  %v2736 = vadd.f32 0.0, %v2735
  %2737 = vmatprep.mubr.f32.mxu0 %v2231
  %2738 = vmatmul.mubr.f32.gmra.mrb[0].mxu0 %v1967
  %v2739 = vpop.f32.mrb[0].mxu0
  %v2740 = vadd.f32 0.0, %v2739
  %v2741 = vpop.f32.mrb[0].mxu0
  %v2742 = vadd.f32 0.0, %v2741
  %2743 = vmatprep.mubr.f32.mxu0 %v2234
  %2744 = vmatmul.mubr.f32.gmra.mrb[0].mxu0 %v1969
  %v2745 = vpop.f32.mrb[0].mxu0
  %v2746 = vadd.f32 0.0, %v2745
  %v2747 = vpop.f32.mrb[0].mxu0
  %v2748 = vadd.f32 0.0, %v2747
  %2749 = vdwg.mxu0
  %2750 = vmatprep.subr.mxu0 %v1976
  %2751 = vmatpush1.msra.mxu0 %v1975
  %2752 = vmatprep.subr.mxu0 %v1983
  %2753 = vmatpush1.msra.mxu0 %v1982
  %2754 = vmatprep.subr.mxu0 %v1990
  %2755 = vmatpush1.msra.mxu0 %v1989
  %2756 = vmatprep.subr.mxu0 %v1997
  %2757 = vmatpush1.msra.mxu0 %v1996
  %2758 = vmatprep.subr.mxu0 %v2004
  %2759 = vmatpush1.msra.mxu0 %v2003
  %2760 = vmatprep.subr.mxu0 %v2011
  %2761 = vmatpush1.msra.mxu0 %v2010
  %2762 = vmatprep.subr.mxu0 %v2018
  %2763 = vmatpush1.msra.mxu0 %v2017
  %2764 = vmatprep.subr.mxu0 %v2025
  %2765 = vmatpush1.msra.mxu0 %v2024
  %2766 = vmatprep.subr.mxu0 %v2032
  %2767 = vmatpush1.msra.mxu0 %v2031
  %2768 = vmatprep.subr.mxu0 %v2039
  %2769 = vmatpush1.msra.mxu0 %v2038
  %2770 = vmatprep.subr.mxu0 %v2046
  %2771 = vmatpush1.msra.mxu0 %v2045
  %2772 = vmatprep.subr.mxu0 %v2053
  %2773 = vmatpush1.msra.mxu0 %v2052
  %2774 = vmatprep.subr.mxu0 %v2060
  %2775 = vmatpush1.msra.mxu0 %v2059
  %2776 = vmatprep.subr.mxu0 %v2067
  %2777 = vmatpush1.msra.mxu0 %v2066
  %2778 = vmatprep.subr.mxu0 %v2074
  %2779 = vmatpush1.msra.mxu0 %v2073
  %2780 = vmatprep.subr.mxu0 %v2081
  %2781 = vmatpush1.msra.mxu0 %v2080
  %2782 = vmatprep.subr.mxu0 %v2088
  %2783 = vmatpush1.msra.mxu0 %v2087
  %2784 = vmatprep.subr.mxu0 %v2095
  %2785 = vmatpush1.msra.mxu0 %v2094
  %2786 = vmatprep.subr.mxu0 %v2102
  %2787 = vmatpush1.msra.mxu0 %v2101
  %2788 = vmatprep.subr.mxu0 %v2109
  %2789 = vmatpush1.msra.mxu0 %v2108
  %2790 = vmatprep.subr.mxu0 %v2116
  %2791 = vmatpush1.msra.mxu0 %v2115
  %2792 = vmatprep.subr.mxu0 %v2123
  %2793 = vmatpush1.msra.mxu0 %v2122
  %2794 = vmatprep.subr.mxu0 %v2130
  %2795 = vmatpush1.msra.mxu0 %v2129
  %2796 = vmatprep.subr.mxu0 %v2137
  %2797 = vmatpush1.msra.mxu0 %v2136
  %2798 = vmatprep.subr.mxu0 0.0
  %2799 = vmatpush1.msra.mxu0 0.0
  %2800 = vmatprep.subr.mxu0 0.0
  %2801 = vmatpush1.msra.mxu0 0.0
  %2802 = vmatprep.subr.mxu0 0.0
  %2803 = vmatpush1.msra.mxu0 0.0
  %2804 = vmatprep.subr.mxu0 0.0
  %2805 = vmatpush1.msra.mxu0 0.0
  %2806 = vmatprep.subr.mxu0 0.0
  %2807 = vmatpush1.msra.mxu0 0.0
  %2808 = vmatprep.subr.mxu0 0.0
  %2809 = vmatpush1.msra.mxu0 0.0
  %2810 = vmatprep.subr.mxu0 0.0
  %2811 = vmatpush1.msra.mxu0 0.0
  %2812 = vmatprep.subr.mxu0 0.0
  %2813 = vmatpush1.msra.mxu0 0.0
  %2814 = vmatprep.mubr.f32.mxu0 %v2141
  %2815 = vmatmul.mubr.f32.gmra.mrb[0].mxu0 %v1907
  %v2816 = vpop.f32.mrb[0].mxu0
  %v2817 = vadd.f32 0.0, %v2816
  %v2818 = vpop.f32.mrb[0].mxu0
  %v2819 = vadd.f32 0.0, %v2818
  %2820 = vmatprep.mubr.f32.mxu0 %v2144
  %2821 = vmatmul.mubr.f32.gmra.mrb[0].mxu0 %v1909
  %v2822 = vpop.f32.mrb[0].mxu0
  %v2823 = vadd.f32 0.0, %v2822
  %v2824 = vpop.f32.mrb[0].mxu0
  %v2825 = vadd.f32 0.0, %v2824
  %2826 = vmatprep.mubr.f32.mxu0 %v2147
  %2827 = vmatmul.mubr.f32.gmra.mrb[0].mxu0 %v1911
  %v2828 = vpop.f32.mrb[0].mxu0
  %v2829 = vadd.f32 0.0, %v2828
  %v2830 = vpop.f32.mrb[0].mxu0
  %v2831 = vadd.f32 0.0, %v2830
  %2832 = vmatprep.mubr.f32.mxu0 %v2150
  %2833 = vmatmul.mubr.f32.gmra.mrb[0].mxu0 %v1913
  %v2834 = vpop.f32.mrb[0].mxu0
  %v2835 = vadd.f32 0.0, %v2834
  %v2836 = vpop.f32.mrb[0].mxu0
  %v2837 = vadd.f32 0.0, %v2836
  %2838 = vmatprep.mubr.f32.mxu0 %v2153
  %2839 = vmatmul.mubr.f32.gmra.mrb[0].mxu0 %v1915
  %v2840 = vpop.f32.mrb[0].mxu0
  %v2841 = vadd.f32 0.0, %v2840
  %v2842 = vpop.f32.mrb[0].mxu0
  %v2843 = vadd.f32 0.0, %v2842
  %2844 = vmatprep.mubr.f32.mxu0 %v2156
  %2845 = vmatmul.mubr.f32.gmra.mrb[0].mxu0 %v1917
  %v2846 = vpop.f32.mrb[0].mxu0
  %v2847 = vadd.f32 0.0, %v2846
  %v2848 = vpop.f32.mrb[0].mxu0
  %v2849 = vadd.f32 0.0, %v2848
  %2850 = vmatprep.mubr.f32.mxu0 %v2159
  %2851 = vmatmul.mubr.f32.gmra.mrb[0].mxu0 %v1919
  %v2852 = vpop.f32.mrb[0].mxu0
  %v2853 = vadd.f32 0.0, %v2852
  %v2854 = vpop.f32.mrb[0].mxu0
  %v2855 = vadd.f32 0.0, %v2854
  %2856 = vmatprep.mubr.f32.mxu0 %v2162
  %2857 = vmatmul.mubr.f32.gmra.mrb[0].mxu0 %v1921
  %v2858 = vpop.f32.mrb[0].mxu0
  %v2859 = vadd.f32 0.0, %v2858
  %v2860 = vpop.f32.mrb[0].mxu0
  %v2861 = vadd.f32 0.0, %v2860
  %2862 = vmatprep.mubr.f32.mxu0 %v2165
  %2863 = vmatmul.mubr.f32.gmra.mrb[0].mxu0 %v1923
  %v2864 = vpop.f32.mrb[0].mxu0
  %v2865 = vadd.f32 0.0, %v2864
  %v2866 = vpop.f32.mrb[0].mxu0
  %v2867 = vadd.f32 0.0, %v2866
  %2868 = vmatprep.mubr.f32.mxu0 %v2168
  %2869 = vmatmul.mubr.f32.gmra.mrb[0].mxu0 %v1925
  %v2870 = vpop.f32.mrb[0].mxu0
  %v2871 = vadd.f32 0.0, %v2870
  %v2872 = vpop.f32.mrb[0].mxu0
  %v2873 = vadd.f32 0.0, %v2872
  %2874 = vmatprep.mubr.f32.mxu0 %v2171
  %2875 = vmatmul.mubr.f32.gmra.mrb[0].mxu0 %v1927
  %v2876 = vpop.f32.mrb[0].mxu0
  %v2877 = vadd.f32 0.0, %v2876
  %v2878 = vpop.f32.mrb[0].mxu0
  %v2879 = vadd.f32 0.0, %v2878
  %2880 = vmatprep.mubr.f32.mxu0 %v2174
  %2881 = vmatmul.mubr.f32.gmra.mrb[0].mxu0 %v1929
  %v2882 = vpop.f32.mrb[0].mxu0
  %v2883 = vadd.f32 0.0, %v2882
  %v2884 = vpop.f32.mrb[0].mxu0
  %v2885 = vadd.f32 0.0, %v2884
  %2886 = vmatprep.mubr.f32.mxu0 %v2177
  %2887 = vmatmul.mubr.f32.gmra.mrb[0].mxu0 %v1931
  %v2888 = vpop.f32.mrb[0].mxu0
  %v2889 = vadd.f32 0.0, %v2888
  %v2890 = vpop.f32.mrb[0].mxu0
  %v2891 = vadd.f32 0.0, %v2890
  %2892 = vmatprep.mubr.f32.mxu0 %v2180
  %2893 = vmatmul.mubr.f32.gmra.mrb[0].mxu0 %v1933
  %v2894 = vpop.f32.mrb[0].mxu0
  %v2895 = vadd.f32 0.0, %v2894
  %v2896 = vpop.f32.mrb[0].mxu0
  %v2897 = vadd.f32 0.0, %v2896
  %2898 = vmatprep.mubr.f32.mxu0 %v2183
  %2899 = vmatmul.mubr.f32.gmra.mrb[0].mxu0 %v1935
  %v2900 = vpop.f32.mrb[0].mxu0
  %v2901 = vadd.f32 0.0, %v2900
  %v2902 = vpop.f32.mrb[0].mxu0
  %v2903 = vadd.f32 0.0, %v2902
  %2904 = vmatprep.mubr.f32.mxu0 %v2186
  %2905 = vmatmul.mubr.f32.gmra.mrb[0].mxu0 %v1937
  %v2906 = vpop.f32.mrb[0].mxu0
  %v2907 = vadd.f32 0.0, %v2906
  %v2908 = vpop.f32.mrb[0].mxu0
  %v2909 = vadd.f32 0.0, %v2908
  %2910 = vmatprep.mubr.f32.mxu0 %v2189
  %2911 = vmatmul.mubr.f32.gmra.mrb[0].mxu0 %v1939
  %v2912 = vpop.f32.mrb[0].mxu0
  %v2913 = vadd.f32 0.0, %v2912
  %v2914 = vpop.f32.mrb[0].mxu0
  %v2915 = vadd.f32 0.0, %v2914
  %2916 = vmatprep.mubr.f32.mxu0 %v2192
  %2917 = vmatmul.mubr.f32.gmra.mrb[0].mxu0 %v1941
  %v2918 = vpop.f32.mrb[0].mxu0
  %v2919 = vadd.f32 0.0, %v2918
  %v2920 = vpop.f32.mrb[0].mxu0
  %v2921 = vadd.f32 0.0, %v2920
  %2922 = vmatprep.mubr.f32.mxu0 %v2195
  %2923 = vmatmul.mubr.f32.gmra.mrb[0].mxu0 %v1943
  %v2924 = vpop.f32.mrb[0].mxu0
  %v2925 = vadd.f32 0.0, %v2924
  %v2926 = vpop.f32.mrb[0].mxu0
  %v2927 = vadd.f32 0.0, %v2926
  %2928 = vmatprep.mubr.f32.mxu0 %v2198
  %2929 = vmatmul.mubr.f32.gmra.mrb[0].mxu0 %v1945
  %v2930 = vpop.f32.mrb[0].mxu0
  %v2931 = vadd.f32 0.0, %v2930
  %v2932 = vpop.f32.mrb[0].mxu0
  %v2933 = vadd.f32 0.0, %v2932
  %2934 = vmatprep.mubr.f32.mxu0 %v2201
  %2935 = vmatmul.mubr.f32.gmra.mrb[0].mxu0 %v1947
  %v2936 = vpop.f32.mrb[0].mxu0
  %v2937 = vadd.f32 0.0, %v2936
  %v2938 = vpop.f32.mrb[0].mxu0
  %v2939 = vadd.f32 0.0, %v2938
  %2940 = vmatprep.mubr.f32.mxu0 %v2204
  %2941 = vmatmul.mubr.f32.gmra.mrb[0].mxu0 %v1949
  %v2942 = vpop.f32.mrb[0].mxu0
  %v2943 = vadd.f32 0.0, %v2942
  %v2944 = vpop.f32.mrb[0].mxu0
  %v2945 = vadd.f32 0.0, %v2944
  %2946 = vmatprep.mubr.f32.mxu0 %v2207
  %2947 = vmatmul.mubr.f32.gmra.mrb[0].mxu0 %v1951
  %v2948 = vpop.f32.mrb[0].mxu0
  %v2949 = vadd.f32 0.0, %v2948
  %v2950 = vpop.f32.mrb[0].mxu0
  %v2951 = vadd.f32 0.0, %v2950
  %2952 = vmatprep.mubr.f32.mxu0 %v2210
  %2953 = vmatmul.mubr.f32.gmra.mrb[0].mxu0 %v1953
  %v2954 = vpop.f32.mrb[0].mxu0
  %v2955 = vadd.f32 0.0, %v2954
  %v2956 = vpop.f32.mrb[0].mxu0
  %v2957 = vadd.f32 0.0, %v2956
  %2958 = vmatprep.mubr.f32.mxu0 %v2213
  %2959 = vmatmul.mubr.f32.gmra.mrb[0].mxu0 %v1955
  %v2960 = vpop.f32.mrb[0].mxu0
  %v2961 = vadd.f32 0.0, %v2960
  %v2962 = vpop.f32.mrb[0].mxu0
  %v2963 = vadd.f32 0.0, %v2962
  %2964 = vmatprep.mubr.f32.mxu0 %v2216
  %2965 = vmatmul.mubr.f32.gmra.mrb[0].mxu0 %v1957
  %v2966 = vpop.f32.mrb[0].mxu0
  %v2967 = vadd.f32 0.0, %v2966
  %v2968 = vpop.f32.mrb[0].mxu0
  %v2969 = vadd.f32 0.0, %v2968
  %2970 = vmatprep.mubr.f32.mxu0 %v2219
  %2971 = vmatmul.mubr.f32.gmra.mrb[0].mxu0 %v1959
  %v2972 = vpop.f32.mrb[0].mxu0
  %v2973 = vadd.f32 0.0, %v2972
  %v2974 = vpop.f32.mrb[0].mxu0
  %v2975 = vadd.f32 0.0, %v2974
  %2976 = vmatprep.mubr.f32.mxu0 %v2222
  %2977 = vmatmul.mubr.f32.gmra.mrb[0].mxu0 %v1961
  %v2978 = vpop.f32.mrb[0].mxu0
  %v2979 = vadd.f32 0.0, %v2978
  %v2980 = vpop.f32.mrb[0].mxu0
  %v2981 = vadd.f32 0.0, %v2980
  %2982 = vmatprep.mubr.f32.mxu0 %v2225
  %2983 = vmatmul.mubr.f32.gmra.mrb[0].mxu0 %v1963
  %v2984 = vpop.f32.mrb[0].mxu0
  %v2985 = vadd.f32 0.0, %v2984
  %v2986 = vpop.f32.mrb[0].mxu0
  %v2987 = vadd.f32 0.0, %v2986
  %2988 = vmatprep.mubr.f32.mxu0 %v2228
  %2989 = vmatmul.mubr.f32.gmra.mrb[0].mxu0 %v1965
  %v2990 = vpop.f32.mrb[0].mxu0
  %v2991 = vadd.f32 0.0, %v2990
  %v2992 = vpop.f32.mrb[0].mxu0
  %v2993 = vadd.f32 0.0, %v2992
  %2994 = vmatprep.mubr.f32.mxu0 %v2231
  %2995 = vmatmul.mubr.f32.gmra.mrb[0].mxu0 %v1967
  %v2996 = vpop.f32.mrb[0].mxu0
  %v2997 = vadd.f32 0.0, %v2996
  %v2998 = vpop.f32.mrb[0].mxu0
  %v2999 = vadd.f32 0.0, %v2998
  %3000 = vmatprep.mubr.f32.mxu0 %v2234
  %3001 = vmatmul.mubr.f32.gmra.mrb[0].mxu0 %v1969
  %v3002 = vpop.f32.mrb[0].mxu0
  %v3003 = vadd.f32 0.0, %v3002
  %v3004 = vpop.f32.mrb[0].mxu0
  %v3005 = vadd.f32 0.0, %v3004
  %3006 = vdwg.mxu0
  %3007 = vmatprep.subr.mxu0 0.0
  %3008 = vmatpush1.msra.mxu0 %v1977
  %3009 = vmatprep.subr.mxu0 0.0
  %3010 = vmatpush1.msra.mxu0 %v1984
  %3011 = vmatprep.subr.mxu0 0.0
  %3012 = vmatpush1.msra.mxu0 %v1991
  %3013 = vmatprep.subr.mxu0 0.0
  %3014 = vmatpush1.msra.mxu0 %v1998
  %3015 = vmatprep.subr.mxu0 0.0
  %3016 = vmatpush1.msra.mxu0 %v2005
  %3017 = vmatprep.subr.mxu0 0.0
  %3018 = vmatpush1.msra.mxu0 %v2012
  %3019 = vmatprep.subr.mxu0 0.0
  %3020 = vmatpush1.msra.mxu0 %v2019
  %3021 = vmatprep.subr.mxu0 0.0
  %3022 = vmatpush1.msra.mxu0 %v2026
  %3023 = vmatprep.subr.mxu0 0.0
  %3024 = vmatpush1.msra.mxu0 %v2033
  %3025 = vmatprep.subr.mxu0 0.0
  %3026 = vmatpush1.msra.mxu0 %v2040
  %3027 = vmatprep.subr.mxu0 0.0
  %3028 = vmatpush1.msra.mxu0 %v2047
  %3029 = vmatprep.subr.mxu0 0.0
  %3030 = vmatpush1.msra.mxu0 %v2054
  %3031 = vmatprep.subr.mxu0 0.0
  %3032 = vmatpush1.msra.mxu0 %v2061
  %3033 = vmatprep.subr.mxu0 0.0
  %3034 = vmatpush1.msra.mxu0 %v2068
  %3035 = vmatprep.subr.mxu0 0.0
  %3036 = vmatpush1.msra.mxu0 %v2075
  %3037 = vmatprep.subr.mxu0 0.0
  %3038 = vmatpush1.msra.mxu0 %v2082
  %3039 = vmatprep.subr.mxu0 0.0
  %3040 = vmatpush1.msra.mxu0 %v2089
  %3041 = vmatprep.subr.mxu0 0.0
  %3042 = vmatpush1.msra.mxu0 %v2096
  %3043 = vmatprep.subr.mxu0 0.0
  %3044 = vmatpush1.msra.mxu0 %v2103
  %3045 = vmatprep.subr.mxu0 0.0
  %3046 = vmatpush1.msra.mxu0 %v2110
  %3047 = vmatprep.subr.mxu0 0.0
  %3048 = vmatpush1.msra.mxu0 %v2117
  %3049 = vmatprep.subr.mxu0 0.0
  %3050 = vmatpush1.msra.mxu0 %v2124
  %3051 = vmatprep.subr.mxu0 0.0
  %3052 = vmatpush1.msra.mxu0 %v2131
  %3053 = vmatprep.subr.mxu0 0.0
  %3054 = vmatpush1.msra.mxu0 %v2138
  %3055 = vmatprep.subr.mxu0 0.0
  %3056 = vmatpush1.msra.mxu0 0.0
  %3057 = vmatprep.subr.mxu0 0.0
  %3058 = vmatpush1.msra.mxu0 0.0
  %3059 = vmatprep.subr.mxu0 0.0
  %3060 = vmatpush1.msra.mxu0 0.0
  %3061 = vmatprep.subr.mxu0 0.0
  %3062 = vmatpush1.msra.mxu0 0.0
  %3063 = vmatprep.subr.mxu0 0.0
  %3064 = vmatpush1.msra.mxu0 0.0
  %3065 = vmatprep.subr.mxu0 0.0
  %3066 = vmatpush1.msra.mxu0 0.0
  %3067 = vmatprep.subr.mxu0 0.0
  %3068 = vmatpush1.msra.mxu0 0.0
  %3069 = vmatprep.subr.mxu0 0.0
  %3070 = vmatpush1.msra.mxu0 0.0
  %3071 = vmatprep.mubr.f32.mxu0 %v2141
  %3072 = vmatmul.mubr.f32.gmra.mrb[0].mxu0 %v1907
  %v3073 = vpop.f32.mrb[0].mxu0
  %v3074 = vadd.f32 0.0, %v3073
  %v3075 = vpop.f32.mrb[0].mxu0
  %3076 = vmatprep.mubr.f32.mxu0 %v2144
  %3077 = vmatmul.mubr.f32.gmra.mrb[0].mxu0 %v1909
  %v3078 = vpop.f32.mrb[0].mxu0
  %v3079 = vadd.f32 0.0, %v3078
  %v3080 = vpop.f32.mrb[0].mxu0
  %3081 = vmatprep.mubr.f32.mxu0 %v2147
  %3082 = vmatmul.mubr.f32.gmra.mrb[0].mxu0 %v1911
  %v3083 = vpop.f32.mrb[0].mxu0
  %v3084 = vadd.f32 0.0, %v3083
  %v3085 = vpop.f32.mrb[0].mxu0
  %3086 = vmatprep.mubr.f32.mxu0 %v2150
  %3087 = vmatmul.mubr.f32.gmra.mrb[0].mxu0 %v1913
  %v3088 = vpop.f32.mrb[0].mxu0
  %v3089 = vadd.f32 0.0, %v3088
  %v3090 = vpop.f32.mrb[0].mxu0
  %3091 = vmatprep.mubr.f32.mxu0 %v2153
  %3092 = vmatmul.mubr.f32.gmra.mrb[0].mxu0 %v1915
  %v3093 = vpop.f32.mrb[0].mxu0
  %v3094 = vadd.f32 0.0, %v3093
  %v3095 = vpop.f32.mrb[0].mxu0
  %3096 = vmatprep.mubr.f32.mxu0 %v2156
  %3097 = vmatmul.mubr.f32.gmra.mrb[0].mxu0 %v1917
  %v3098 = vpop.f32.mrb[0].mxu0
  %v3099 = vadd.f32 0.0, %v3098
  %v3100 = vpop.f32.mrb[0].mxu0
  %3101 = vmatprep.mubr.f32.mxu0 %v2159
  %3102 = vmatmul.mubr.f32.gmra.mrb[0].mxu0 %v1919
  %v3103 = vpop.f32.mrb[0].mxu0
  %v3104 = vadd.f32 0.0, %v3103
  %v3105 = vpop.f32.mrb[0].mxu0
  %3106 = vmatprep.mubr.f32.mxu0 %v2162
  %3107 = vmatmul.mubr.f32.gmra.mrb[0].mxu0 %v1921
  %v3108 = vpop.f32.mrb[0].mxu0
  %v3109 = vadd.f32 0.0, %v3108
  %v3110 = vpop.f32.mrb[0].mxu0
  %3111 = vmatprep.mubr.f32.mxu0 %v2165
  %3112 = vmatmul.mubr.f32.gmra.mrb[0].mxu0 %v1923
  %v3113 = vpop.f32.mrb[0].mxu0
  %v3114 = vadd.f32 0.0, %v3113
  %v3115 = vpop.f32.mrb[0].mxu0
  %3116 = vmatprep.mubr.f32.mxu0 %v2168
  %3117 = vmatmul.mubr.f32.gmra.mrb[0].mxu0 %v1925
  %v3118 = vpop.f32.mrb[0].mxu0
  %v3119 = vadd.f32 0.0, %v3118
  %v3120 = vpop.f32.mrb[0].mxu0
  %3121 = vmatprep.mubr.f32.mxu0 %v2171
  %3122 = vmatmul.mubr.f32.gmra.mrb[0].mxu0 %v1927
  %v3123 = vpop.f32.mrb[0].mxu0
  %v3124 = vadd.f32 0.0, %v3123
  %v3125 = vpop.f32.mrb[0].mxu0
  %3126 = vmatprep.mubr.f32.mxu0 %v2174
  %3127 = vmatmul.mubr.f32.gmra.mrb[0].mxu0 %v1929
  %v3128 = vpop.f32.mrb[0].mxu0
  %v3129 = vadd.f32 0.0, %v3128
  %v3130 = vpop.f32.mrb[0].mxu0
  %3131 = vmatprep.mubr.f32.mxu0 %v2177
  %3132 = vmatmul.mubr.f32.gmra.mrb[0].mxu0 %v1931
  %v3133 = vpop.f32.mrb[0].mxu0
  %v3134 = vadd.f32 0.0, %v3133
  %v3135 = vpop.f32.mrb[0].mxu0
  %3136 = vmatprep.mubr.f32.mxu0 %v2180
  %3137 = vmatmul.mubr.f32.gmra.mrb[0].mxu0 %v1933
  %v3138 = vpop.f32.mrb[0].mxu0
  %v3139 = vadd.f32 0.0, %v3138
  %v3140 = vpop.f32.mrb[0].mxu0
  %3141 = vmatprep.mubr.f32.mxu0 %v2183
  %3142 = vmatmul.mubr.f32.gmra.mrb[0].mxu0 %v1935
  %v3143 = vpop.f32.mrb[0].mxu0
  %v3144 = vadd.f32 0.0, %v3143
  %v3145 = vpop.f32.mrb[0].mxu0
  %3146 = vmatprep.mubr.f32.mxu0 %v2186
  %3147 = vmatmul.mubr.f32.gmra.mrb[0].mxu0 %v1937
  %v3148 = vpop.f32.mrb[0].mxu0
  %v3149 = vadd.f32 0.0, %v3148
  %v3150 = vpop.f32.mrb[0].mxu0
  %3151 = vmatprep.mubr.f32.mxu0 %v2189
  %3152 = vmatmul.mubr.f32.gmra.mrb[0].mxu0 %v1939
  %v3153 = vpop.f32.mrb[0].mxu0
  %v3154 = vadd.f32 0.0, %v3153
  %v3155 = vpop.f32.mrb[0].mxu0
  %3156 = vmatprep.mubr.f32.mxu0 %v2192
  %3157 = vmatmul.mubr.f32.gmra.mrb[0].mxu0 %v1941
  %v3158 = vpop.f32.mrb[0].mxu0
  %v3159 = vadd.f32 0.0, %v3158
  %v3160 = vpop.f32.mrb[0].mxu0
  %3161 = vmatprep.mubr.f32.mxu0 %v2195
  %3162 = vmatmul.mubr.f32.gmra.mrb[0].mxu0 %v1943
  %v3163 = vpop.f32.mrb[0].mxu0
  %v3164 = vadd.f32 0.0, %v3163
  %v3165 = vpop.f32.mrb[0].mxu0
  %3166 = vmatprep.mubr.f32.mxu0 %v2198
  %3167 = vmatmul.mubr.f32.gmra.mrb[0].mxu0 %v1945
  %v3168 = vpop.f32.mrb[0].mxu0
  %v3169 = vadd.f32 0.0, %v3168
  %v3170 = vpop.f32.mrb[0].mxu0
  %3171 = vmatprep.mubr.f32.mxu0 %v2201
  %3172 = vmatmul.mubr.f32.gmra.mrb[0].mxu0 %v1947
  %v3173 = vpop.f32.mrb[0].mxu0
  %v3174 = vadd.f32 0.0, %v3173
  %v3175 = vpop.f32.mrb[0].mxu0
  %3176 = vmatprep.mubr.f32.mxu0 %v2204
  %3177 = vmatmul.mubr.f32.gmra.mrb[0].mxu0 %v1949
  %v3178 = vpop.f32.mrb[0].mxu0
  %v3179 = vadd.f32 0.0, %v3178
  %v3180 = vpop.f32.mrb[0].mxu0
  %3181 = vmatprep.mubr.f32.mxu0 %v2207
  %3182 = vmatmul.mubr.f32.gmra.mrb[0].mxu0 %v1951
  %v3183 = vpop.f32.mrb[0].mxu0
  %v3184 = vadd.f32 0.0, %v3183
  %v3185 = vpop.f32.mrb[0].mxu0
  %3186 = vmatprep.mubr.f32.mxu0 %v2210
  %3187 = vmatmul.mubr.f32.gmra.mrb[0].mxu0 %v1953
  %v3188 = vpop.f32.mrb[0].mxu0
  %v3189 = vadd.f32 0.0, %v3188
  %v3190 = vpop.f32.mrb[0].mxu0
  %3191 = vmatprep.mubr.f32.mxu0 %v2213
  %3192 = vmatmul.mubr.f32.gmra.mrb[0].mxu0 %v1955
  %v3193 = vpop.f32.mrb[0].mxu0
  %v3194 = vadd.f32 0.0, %v3193
  %v3195 = vpop.f32.mrb[0].mxu0
  %3196 = vmatprep.mubr.f32.mxu0 %v2216
  %3197 = vmatmul.mubr.f32.gmra.mrb[0].mxu0 %v1957
  %v3198 = vpop.f32.mrb[0].mxu0
  %v3199 = vadd.f32 0.0, %v3198
  %v3200 = vpop.f32.mrb[0].mxu0
  %3201 = vmatprep.mubr.f32.mxu0 %v2219
  %3202 = vmatmul.mubr.f32.gmra.mrb[0].mxu0 %v1959
  %v3203 = vpop.f32.mrb[0].mxu0
  %v3204 = vadd.f32 0.0, %v3203
  %v3205 = vpop.f32.mrb[0].mxu0
  %3206 = vmatprep.mubr.f32.mxu0 %v2222
  %3207 = vmatmul.mubr.f32.gmra.mrb[0].mxu0 %v1961
  %v3208 = vpop.f32.mrb[0].mxu0
  %v3209 = vadd.f32 0.0, %v3208
  %v3210 = vpop.f32.mrb[0].mxu0
  %3211 = vmatprep.mubr.f32.mxu0 %v2225
  %3212 = vmatmul.mubr.f32.gmra.mrb[0].mxu0 %v1963
  %v3213 = vpop.f32.mrb[0].mxu0
  %v3214 = vadd.f32 0.0, %v3213
  %v3215 = vpop.f32.mrb[0].mxu0
  %3216 = vmatprep.mubr.f32.mxu0 %v2228
  %3217 = vmatmul.mubr.f32.gmra.mrb[0].mxu0 %v1965
  %v3218 = vpop.f32.mrb[0].mxu0
  %v3219 = vadd.f32 0.0, %v3218
  %v3220 = vpop.f32.mrb[0].mxu0
  %3221 = vmatprep.mubr.f32.mxu0 %v2231
  %3222 = vmatmul.mubr.f32.gmra.mrb[0].mxu0 %v1967
  %v3223 = vpop.f32.mrb[0].mxu0
  %v3224 = vadd.f32 0.0, %v3223
  %v3225 = vpop.f32.mrb[0].mxu0
  %3226 = vmatprep.mubr.f32.mxu0 %v2234
  %3227 = vmatmul.mubr.f32.gmra.mrb[0].mxu0 %v1969
  %v3228 = vpop.f32.mrb[0].mxu0
  %v3229 = vadd.f32 0.0, %v3228
  %v3230 = vpop.f32.mrb[0].mxu0
  %3231 = vdwg.mxu0
  %3232 = vst [vmem:[%s2] sm:$0xff] %v2303
  %3233 = vst [vmem:[%s2 + $0x8] sm:$0xff] %v2305
  %3234 = vst [vmem:[%s2 + $0x10] sm:$0xff] %v2560
  %3235 = vst [vmem:[%s2 + $0x18] sm:$0xff] %v2562
  %3236 = vst [vmem:[%s2 + $0x20] sm:$0xff] %v2817
  %3237 = vst [vmem:[%s2 + $0x28] sm:$0xff] %v2819
  %3238 = vst.msk [vmem:[%s2 + $0x30] sm:$0xff] %vm1464, %v3074
  %3239 = vst [vmem:[%s2 + $0x38] sm:$0xff] %v2309
  %3240 = vst [vmem:[%s2 + $0x40] sm:$0xff] %v2311
  %3241 = vst [vmem:[%s2 + $0x48] sm:$0xff] %v2566
  %3242 = vst [vmem:[%s2 + $0x50] sm:$0xff] %v2568
  %3243 = vst [vmem:[%s2 + $0x58] sm:$0xff] %v2823
  %3244 = vst [vmem:[%s2 + $0x60] sm:$0xff] %v2825
  %3245 = vst.msk [vmem:[%s2 + $0x68] sm:$0xff] %vm1464, %v3079
  %3246 = vst [vmem:[%s2 + $0x70] sm:$0xff] %v2315
  %3247 = vst [vmem:[%s2 + $0x78] sm:$0xff] %v2317
  %3248 = vst [vmem:[%s2 + $0x80] sm:$0xff] %v2572
  %3249 = vst [vmem:[%s2 + $0x88] sm:$0xff] %v2574
  %3250 = vst [vmem:[%s2 + $0x90] sm:$0xff] %v2829
  %3251 = vst [vmem:[%s2 + $0x98] sm:$0xff] %v2831
  %3252 = vst.msk [vmem:[%s2 + $0xa0] sm:$0xff] %vm1464, %v3084
  %3253 = vst [vmem:[%s2 + $0xa8] sm:$0xff] %v2321
  %3254 = vst [vmem:[%s2 + $0xb0] sm:$0xff] %v2323
  %3255 = vst [vmem:[%s2 + $0xb8] sm:$0xff] %v2578
  %3256 = vst [vmem:[%s2 + $0xc0] sm:$0xff] %v2580
  %3257 = vst [vmem:[%s2 + $0xc8] sm:$0xff] %v2835
  %3258 = vst [vmem:[%s2 + $0xd0] sm:$0xff] %v2837
  %3259 = vst.msk [vmem:[%s2 + $0xd8] sm:$0xff] %vm1464, %v3089
  %3260 = vst [vmem:[%s2 + $0xe0] sm:$0xff] %v2327
  %3261 = vst [vmem:[%s2 + $0xe8] sm:$0xff] %v2329
  %3262 = vst [vmem:[%s2 + $0xf0] sm:$0xff] %v2584
  %3263 = vst [vmem:[%s2 + $0xf8] sm:$0xff] %v2586
  %3264 = vst [vmem:[%s2 + $0x100] sm:$0xff] %v2841
  %3265 = vst [vmem:[%s2 + $0x108] sm:$0xff] %v2843
  %3266 = vst.msk [vmem:[%s2 + $0x110] sm:$0xff] %vm1464, %v3094
  %3267 = vst [vmem:[%s2 + $0x118] sm:$0xff] %v2333
  %3268 = vst [vmem:[%s2 + $0x120] sm:$0xff] %v2335
  %3269 = vst [vmem:[%s2 + $0x128] sm:$0xff] %v2590
  %3270 = vst [vmem:[%s2 + $0x130] sm:$0xff] %v2592
  %3271 = vst [vmem:[%s2 + $0x138] sm:$0xff] %v2847
  %3272 = vst [vmem:[%s2 + $0x140] sm:$0xff] %v2849
  %3273 = vst.msk [vmem:[%s2 + $0x148] sm:$0xff] %vm1464, %v3099
  %3274 = vst [vmem:[%s2 + $0x150] sm:$0xff] %v2339
  %3275 = vst [vmem:[%s2 + $0x158] sm:$0xff] %v2341
  %3276 = vst [vmem:[%s2 + $0x160] sm:$0xff] %v2596
  %3277 = vst [vmem:[%s2 + $0x168] sm:$0xff] %v2598
  %3278 = vst [vmem:[%s2 + $0x170] sm:$0xff] %v2853
  %3279 = vst [vmem:[%s2 + $0x178] sm:$0xff] %v2855
  %3280 = vst.msk [vmem:[%s2 + $0x180] sm:$0xff] %vm1464, %v3104
  %3281 = vst [vmem:[%s2 + $0x188] sm:$0xff] %v2345
  %3282 = vst [vmem:[%s2 + $0x190] sm:$0xff] %v2347
  %3283 = vst [vmem:[%s2 + $0x198] sm:$0xff] %v2602
  %3284 = vst [vmem:[%s2 + $0x1a0] sm:$0xff] %v2604
  %3285 = vst [vmem:[%s2 + $0x1a8] sm:$0xff] %v2859
  %3286 = vst [vmem:[%s2 + $0x1b0] sm:$0xff] %v2861
  %3287 = vst.msk [vmem:[%s2 + $0x1b8] sm:$0xff] %vm1464, %v3109
  %3288 = vst [vmem:[%s2 + $0x1c0] sm:$0xff] %v2351
  %3289 = vst [vmem:[%s2 + $0x1c8] sm:$0xff] %v2353
  %3290 = vst [vmem:[%s2 + $0x1d0] sm:$0xff] %v2608
  %3291 = vst [vmem:[%s2 + $0x1d8] sm:$0xff] %v2610
  %3292 = vst [vmem:[%s2 + $0x1e0] sm:$0xff] %v2865
  %3293 = vst [vmem:[%s2 + $0x1e8] sm:$0xff] %v2867
  %3294 = vst.msk [vmem:[%s2 + $0x1f0] sm:$0xff] %vm1464, %v3114
  %3295 = vst [vmem:[%s2 + $0x1f8] sm:$0xff] %v2357
  %3296 = vst [vmem:[%s2 + $0x200] sm:$0xff] %v2359
  %3297 = vst [vmem:[%s2 + $0x208] sm:$0xff] %v2614
  %3298 = vst [vmem:[%s2 + $0x210] sm:$0xff] %v2616
  %3299 = vst [vmem:[%s2 + $0x218] sm:$0xff] %v2871
  %3300 = vst [vmem:[%s2 + $0x220] sm:$0xff] %v2873
  %3301 = vst.msk [vmem:[%s2 + $0x228] sm:$0xff] %vm1464, %v3119
  %3302 = vst [vmem:[%s2 + $0x230] sm:$0xff] %v2363
  %3303 = vst [vmem:[%s2 + $0x238] sm:$0xff] %v2365
  %3304 = vst [vmem:[%s2 + $0x240] sm:$0xff] %v2620
  %3305 = vst [vmem:[%s2 + $0x248] sm:$0xff] %v2622
  %3306 = vst [vmem:[%s2 + $0x250] sm:$0xff] %v2877
  %3307 = vst [vmem:[%s2 + $0x258] sm:$0xff] %v2879
  %3308 = vst.msk [vmem:[%s2 + $0x260] sm:$0xff] %vm1464, %v3124
  %3309 = vst [vmem:[%s2 + $0x268] sm:$0xff] %v2369
  %3310 = vst [vmem:[%s2 + $0x270] sm:$0xff] %v2371
  %3311 = vst [vmem:[%s2 + $0x278] sm:$0xff] %v2626
  %3312 = vst [vmem:[%s2 + $0x280] sm:$0xff] %v2628
  %3313 = vst [vmem:[%s2 + $0x288] sm:$0xff] %v2883
  %3314 = vst [vmem:[%s2 + $0x290] sm:$0xff] %v2885
  %3315 = vst.msk [vmem:[%s2 + $0x298] sm:$0xff] %vm1464, %v3129
  %3316 = vst [vmem:[%s2 + $0x2a0] sm:$0xff] %v2375
  %3317 = vst [vmem:[%s2 + $0x2a8] sm:$0xff] %v2377
  %3318 = vst [vmem:[%s2 + $0x2b0] sm:$0xff] %v2632
  %3319 = vst [vmem:[%s2 + $0x2b8] sm:$0xff] %v2634
  %3320 = vst [vmem:[%s2 + $0x2c0] sm:$0xff] %v2889
  %3321 = vst [vmem:[%s2 + $0x2c8] sm:$0xff] %v2891
  %3322 = vst.msk [vmem:[%s2 + $0x2d0] sm:$0xff] %vm1464, %v3134
  %3323 = vst [vmem:[%s2 + $0x2d8] sm:$0xff] %v2381
  %3324 = vst [vmem:[%s2 + $0x2e0] sm:$0xff] %v2383
  %3325 = vst [vmem:[%s2 + $0x2e8] sm:$0xff] %v2638
  %3326 = vst [vmem:[%s2 + $0x2f0] sm:$0xff] %v2640
  %3327 = vst [vmem:[%s2 + $0x2f8] sm:$0xff] %v2895
  %3328 = vst [vmem:[%s2 + $0x300] sm:$0xff] %v2897
  %3329 = vst.msk [vmem:[%s2 + $0x308] sm:$0xff] %vm1464, %v3139
  %3330 = vst [vmem:[%s2 + $0x310] sm:$0xff] %v2387
  %3331 = vst [vmem:[%s2 + $0x318] sm:$0xff] %v2389
  %3332 = vst [vmem:[%s2 + $0x320] sm:$0xff] %v2644
  %3333 = vst [vmem:[%s2 + $0x328] sm:$0xff] %v2646
  %3334 = vst [vmem:[%s2 + $0x330] sm:$0xff] %v2901
  %3335 = vst [vmem:[%s2 + $0x338] sm:$0xff] %v2903
  %3336 = vst.msk [vmem:[%s2 + $0x340] sm:$0xff] %vm1464, %v3144
  %3337 = vst [vmem:[%s2 + $0x348] sm:$0xff] %v2393
  %3338 = vst [vmem:[%s2 + $0x350] sm:$0xff] %v2395
  %3339 = vst [vmem:[%s2 + $0x358] sm:$0xff] %v2650
  %3340 = vst [vmem:[%s2 + $0x360] sm:$0xff] %v2652
  %3341 = vst [vmem:[%s2 + $0x368] sm:$0xff] %v2907
  %3342 = vst [vmem:[%s2 + $0x370] sm:$0xff] %v2909
  %3343 = vst.msk [vmem:[%s2 + $0x378] sm:$0xff] %vm1464, %v3149
  %3344 = vst [vmem:[%s2 + $0x380] sm:$0xff] %v2399
  %3345 = vst [vmem:[%s2 + $0x388] sm:$0xff] %v2401
  %3346 = vst [vmem:[%s2 + $0x390] sm:$0xff] %v2656
  %3347 = vst [vmem:[%s2 + $0x398] sm:$0xff] %v2658
  %3348 = vst [vmem:[%s2 + $0x3a0] sm:$0xff] %v2913
  %3349 = vst [vmem:[%s2 + $0x3a8] sm:$0xff] %v2915
  %3350 = vst.msk [vmem:[%s2 + $0x3b0] sm:$0xff] %vm1464, %v3154
  %3351 = vst [vmem:[%s2 + $0x3b8] sm:$0xff] %v2405
  %3352 = vst [vmem:[%s2 + $0x3c0] sm:$0xff] %v2407
  %3353 = vst [vmem:[%s2 + $0x3c8] sm:$0xff] %v2662
  %3354 = vst [vmem:[%s2 + $0x3d0] sm:$0xff] %v2664
  %3355 = vst [vmem:[%s2 + $0x3d8] sm:$0xff] %v2919
  %3356 = vst [vmem:[%s2 + $0x3e0] sm:$0xff] %v2921
  %3357 = vst.msk [vmem:[%s2 + $0x3e8] sm:$0xff] %vm1464, %v3159
  %3358 = vst [vmem:[%s2 + $0x3f0] sm:$0xff] %v2411
  %3359 = vst [vmem:[%s2 + $0x3f8] sm:$0xff] %v2413
  %3360 = vst [vmem:[%s2 + $0x400] sm:$0xff] %v2668
  %3361 = vst [vmem:[%s2 + $0x408] sm:$0xff] %v2670
  %3362 = vst [vmem:[%s2 + $0x410] sm:$0xff] %v2925
  %3363 = vst [vmem:[%s2 + $0x418] sm:$0xff] %v2927
  %3364 = vst.msk [vmem:[%s2 + $0x420] sm:$0xff] %vm1464, %v3164
  %3365 = vst [vmem:[%s2 + $0x428] sm:$0xff] %v2417
  %3366 = vst [vmem:[%s2 + $0x430] sm:$0xff] %v2419
  %3367 = vst [vmem:[%s2 + $0x438] sm:$0xff] %v2674
  %3368 = vst [vmem:[%s2 + $0x440] sm:$0xff] %v2676
  %3369 = vst [vmem:[%s2 + $0x448] sm:$0xff] %v2931
  %3370 = vst [vmem:[%s2 + $0x450] sm:$0xff] %v2933
  %3371 = vst.msk [vmem:[%s2 + $0x458] sm:$0xff] %vm1464, %v3169
  %3372 = vst [vmem:[%s2 + $0x460] sm:$0xff] %v2423
  %3373 = vst [vmem:[%s2 + $0x468] sm:$0xff] %v2425
  %3374 = vst [vmem:[%s2 + $0x470] sm:$0xff] %v2680
  %3375 = vst [vmem:[%s2 + $0x478] sm:$0xff] %v2682
  %3376 = vst [vmem:[%s2 + $0x480] sm:$0xff] %v2937
  %3377 = vst [vmem:[%s2 + $0x488] sm:$0xff] %v2939
  %3378 = vst.msk [vmem:[%s2 + $0x490] sm:$0xff] %vm1464, %v3174
  %3379 = vst [vmem:[%s2 + $0x498] sm:$0xff] %v2429
  %3380 = vst [vmem:[%s2 + $0x4a0] sm:$0xff] %v2431
  %3381 = vst [vmem:[%s2 + $0x4a8] sm:$0xff] %v2686
  %3382 = vst [vmem:[%s2 + $0x4b0] sm:$0xff] %v2688
  %3383 = vst [vmem:[%s2 + $0x4b8] sm:$0xff] %v2943
  %3384 = vst [vmem:[%s2 + $0x4c0] sm:$0xff] %v2945
  %3385 = vst.msk [vmem:[%s2 + $0x4c8] sm:$0xff] %vm1464, %v3179
  %3386 = vst [vmem:[%s2 + $0x4d0] sm:$0xff] %v2435
  %3387 = vst [vmem:[%s2 + $0x4d8] sm:$0xff] %v2437
  %3388 = vst [vmem:[%s2 + $0x4e0] sm:$0xff] %v2692
  %3389 = vst [vmem:[%s2 + $0x4e8] sm:$0xff] %v2694
  %3390 = vst [vmem:[%s2 + $0x4f0] sm:$0xff] %v2949
  %3391 = vst [vmem:[%s2 + $0x4f8] sm:$0xff] %v2951
  %3392 = vst.msk [vmem:[%s2 + $0x500] sm:$0xff] %vm1464, %v3184
  %3393 = vst [vmem:[%s2 + $0x508] sm:$0xff] %v2441
  %3394 = vst [vmem:[%s2 + $0x510] sm:$0xff] %v2443
  %3395 = vst [vmem:[%s2 + $0x518] sm:$0xff] %v2698
  %3396 = vst [vmem:[%s2 + $0x520] sm:$0xff] %v2700
  %3397 = vst [vmem:[%s2 + $0x528] sm:$0xff] %v2955
  %3398 = vst [vmem:[%s2 + $0x530] sm:$0xff] %v2957
  %3399 = vst.msk [vmem:[%s2 + $0x538] sm:$0xff] %vm1464, %v3189
  %3400 = vst [vmem:[%s2 + $0x540] sm:$0xff] %v2447
  %3401 = vst [vmem:[%s2 + $0x548] sm:$0xff] %v2449
  %3402 = vst [vmem:[%s2 + $0x550] sm:$0xff] %v2704
  %3403 = vst [vmem:[%s2 + $0x558] sm:$0xff] %v2706
  %3404 = vst [vmem:[%s2 + $0x560] sm:$0xff] %v2961
  %3405 = vst [vmem:[%s2 + $0x568] sm:$0xff] %v2963
  %3406 = vst.msk [vmem:[%s2 + $0x570] sm:$0xff] %vm1464, %v3194
  %3407 = vst [vmem:[%s2 + $0x578] sm:$0xff] %v2453
  %3408 = vst [vmem:[%s2 + $0x580] sm:$0xff] %v2455
  %3409 = vst [vmem:[%s2 + $0x588] sm:$0xff] %v2710
  %3410 = vst [vmem:[%s2 + $0x590] sm:$0xff] %v2712
  %3411 = vst [vmem:[%s2 + $0x598] sm:$0xff] %v2967
  %3412 = vst [vmem:[%s2 + $0x5a0] sm:$0xff] %v2969
  %3413 = vst.msk [vmem:[%s2 + $0x5a8] sm:$0xff] %vm1464, %v3199
  %3414 = vst [vmem:[%s2 + $0x5b0] sm:$0xff] %v2459
  %3415 = vst [vmem:[%s2 + $0x5b8] sm:$0xff] %v2461
  %3416 = vst [vmem:[%s2 + $0x5c0] sm:$0xff] %v2716
  %3417 = vst [vmem:[%s2 + $0x5c8] sm:$0xff] %v2718
  %3418 = vst [vmem:[%s2 + $0x5d0] sm:$0xff] %v2973
  %3419 = vst [vmem:[%s2 + $0x5d8] sm:$0xff] %v2975
  %3420 = vst.msk [vmem:[%s2 + $0x5e0] sm:$0xff] %vm1464, %v3204
  %3421 = vst [vmem:[%s2 + $0x5e8] sm:$0xff] %v2465
  %3422 = vst [vmem:[%s2 + $0x5f0] sm:$0xff] %v2467
  %3423 = vst [vmem:[%s2 + $0x5f8] sm:$0xff] %v2722
  %3424 = vst [vmem:[%s2 + $0x600] sm:$0xff] %v2724
  %3425 = vst [vmem:[%s2 + $0x608] sm:$0xff] %v2979
  %3426 = vst [vmem:[%s2 + $0x610] sm:$0xff] %v2981
  %3427 = vst.msk [vmem:[%s2 + $0x618] sm:$0xff] %vm1464, %v3209
  %3428 = vst [vmem:[%s2 + $0x620] sm:$0xff] %v2471
  %3429 = vst [vmem:[%s2 + $0x628] sm:$0xff] %v2473
  %3430 = vst [vmem:[%s2 + $0x630] sm:$0xff] %v2728
  %3431 = vst [vmem:[%s2 + $0x638] sm:$0xff] %v2730
  %3432 = vst [vmem:[%s2 + $0x640] sm:$0xff] %v2985
  %3433 = vst [vmem:[%s2 + $0x648] sm:$0xff] %v2987
  %3434 = vst.msk [vmem:[%s2 + $0x650] sm:$0xff] %vm1464, %v3214
  %3435 = vst [vmem:[%s2 + $0x658] sm:$0xff] %v2477
  %3436 = vst [vmem:[%s2 + $0x660] sm:$0xff] %v2479
  %3437 = vst [vmem:[%s2 + $0x668] sm:$0xff] %v2734
  %3438 = vst [vmem:[%s2 + $0x670] sm:$0xff] %v2736
  %3439 = vst [vmem:[%s2 + $0x678] sm:$0xff] %v2991
  %3440 = vst [vmem:[%s2 + $0x680] sm:$0xff] %v2993
  %3441 = vst.msk [vmem:[%s2 + $0x688] sm:$0xff] %vm1464, %v3219
  %3442 = vst [vmem:[%s2 + $0x690] sm:$0xff] %v2483
  %3443 = vst [vmem:[%s2 + $0x698] sm:$0xff] %v2485
  %3444 = vst [vmem:[%s2 + $0x6a0] sm:$0xff] %v2740
  %3445 = vst [vmem:[%s2 + $0x6a8] sm:$0xff] %v2742
  %3446 = vst [vmem:[%s2 + $0x6b0] sm:$0xff] %v2997
  %3447 = vst [vmem:[%s2 + $0x6b8] sm:$0xff] %v2999
  %3448 = vst.msk [vmem:[%s2 + $0x6c0] sm:$0xff] %vm1464, %v3224
  %3449 = vst [vmem:[%s2 + $0x6c8] sm:$0xff] %v2489
  %3450 = vst [vmem:[%s2 + $0x6d0] sm:$0xff] %v2491
  %3451 = vst [vmem:[%s2 + $0x6d8] sm:$0xff] %v2746
  %3452 = vst [vmem:[%s2 + $0x6e0] sm:$0xff] %v2748
  %3453 = vst [vmem:[%s2 + $0x6e8] sm:$0xff] %v3003
  %3454 = vst [vmem:[%s2 + $0x6f0] sm:$0xff] %v3005
  %3455 = vst.msk [vmem:[%s2 + $0x6f8] sm:$0xff] %vm1464, %v3229
  // Predicated region
  $region10: #{kernel_generated_4_forward.1} parent=0 // pred_check
    _
  $region11: #{kernel_generated_4_forward.1} parent=0 // pred_check_branch
    %3457 = sbr.rel (0) target = $region13
  $region12: #{kernel_generated_4_forward.1} parent=0 // pred_region
    _
  $region13: #{kernel_generated_4_forward.1} parent=0 // pred_fallthru
    _
  // Predicated region
  $region14: #{kernel_generated_4_forward.1} parent=0 // pred_check
    _
  $region15: #{kernel_generated_4_forward.1} parent=0 // pred_check_branch
    %3459 = sbr.rel (0) target = $region17
  $region16: #{kernel_generated_4_forward.1} parent=0 // pred_region
    _
  $region17: #{kernel_generated_4_forward.1} parent=0 // pred_fallthru
    _

</llo_original>
